<compile_context>
chip_gen: v7x
topology: tpu7x:2x2x1
jax: 0.10.0
libtpu: 0.0.40
codegen_flags: <defaults>
</compile_context>

<pallas_src>
import functools
import numpy as np
import jax
import jax.numpy as jnp
from jax import lax
from jax.experimental import pallas as pl
from jax.experimental.pallas import tpu as pltpu

NEG_INF = -1e30  # plain Python float -> jaxpr literal, not a captured constant


def _elu(x):
    # TODO(synk): torch F.elu uses expm1; exp(x)-1 is used here (Mosaic-safe), same in ref.
    return jnp.where(x > 0, x, jnp.exp(x) - 1.0)


ACTIVATIONS = {
    'NON': lambda x: x,
    'TANH': jnp.tanh,
    'SIGMOID': jax.nn.sigmoid,
    'RELU': lambda x: jnp.maximum(x, 0.0),
    'ELU': _elu,
}


# ---------------------------------------------------------------------------
# Fused kernel: grid = (B,); each program runs the full forward for one sample.
# ---------------------------------------------------------------------------

def _lcgn_fused_kernel(img_ref, qenc_ref, lstm_ref, seqm_ref, entm_ref, *rest,
                       act_name, msg_iter_num):
    (w_init, b_init, init_mem,
     w_qin, b_qin, w_qt, b_qt, w_lg, b_lg,
     w_ploc, b_ploc, w_pctx, b_pctx,
     w_q_l, w_q_c, w_q_p, b_q,
     w_k_l, w_k_c, w_k_p, b_k,
     w_v_l, w_v_c, w_v_p, b_v,
     w_pk, b_pk, w_pv, b_pv,
     w_mu_c, w_mu_m, b_mu,
     w_cb_l, w_cb_c, b_cb,
     out_ref) = rest

    act = ACTIVATIONS[act_name]
    f32 = jnp.float32
    bf16 = jnp.bfloat16

    def mm(a, b):
        # bf16 MXU inputs, f32 accumulation (weights are already bf16; astype is a no-op).
        return jnp.dot(a.astype(bf16), b.astype(bf16), preferred_element_type=f32)

    def mm_nt(a, b):
        # a @ b.T without materializing the transpose.
        return lax.dot_general(a.astype(bf16), b.astype(bf16),
                               (((1,), (1,)), ((), ())),
                               preferred_element_type=f32)

    n_ent = out_ref.shape[1]
    ctx_dim = out_ref.shape[2]
    scale = float(1.0 / np.sqrt(ctx_dim))

    # ---- loc_ctx_init ----
    img = img_ref[0]                                             # (N, D_FEAT)
    nrm = jnp.sqrt(jnp.sum(img * img, axis=-1, keepdims=True))   # F.normalize(dim=-1)
    img = img / jnp.maximum(nrm, 1e-12)
    x_loc = mm(img, w_init[...]) + b_init[...]                   # initKB (stem dropout = id)
    x_ctx = jnp.broadcast_to(init_mem[...], (n_ent, ctx_dim))    # initMem.expand
    # eval mode: x_ctx_var_drop == 1 everywhere -> multiply elided

    lstm = lstm_ref[0]                                           # (S, CMD)
    qenc = qenc_ref[0]                                           # (1, CMD)
    seqm = seqm_ref[0]                                           # (1, S)   1.0 = masked
    entm = entm_ref[0]                                           # (N, N)   1.0 = masked

    h = act(mm(qenc, w_qin[...]) + b_qin[...])                   # qInput + act (t-invariant)
    lg_row = w_lg[...]                                           # (1, CMD) f32 (elementwise use)
    lg_b = b_lg[...]                                             # (1, 1)

    # ---- loop-invariant x_loc projections (x_loc never changes across iterations) ----
    ploc = mm(x_loc, w_ploc[...]) + b_ploc[...]                  # project_x_loc (hoisted)
    q_loc = mm(x_loc, w_q_l[...]) + b_q[...]                     # x_loc partials + biases
    k_loc = mm(x_loc, w_k_l[...]) + b_k[...]
    v_loc = mm(x_loc, w_v_l[...]) + b_v[...]

    for t in range(msg_iter_num):
        # ---- extract_textual_command ----
        q_cmd = mm(h, w_qt[t]) + b_qt[t]                         # (1, CMD)
        raw = mm_nt(q_cmd * lg_row, lstm) + lg_b                 # cmd_inter2logits -> (1, S)
        raw = jnp.where(seqm > 0.5, NEG_INF, raw)                # apply_mask1d (hoisted mask)
        m1 = jnp.max(raw, axis=-1, keepdims=True)
        e1 = jnp.exp(raw - m1)
        att = e1 * pl.reciprocal(jnp.sum(e1, axis=-1, keepdims=True), approx=True)
        cmd = mm(att, lstm)                                      # (1, CMD)

        # ---- propagate_message (concat-free via split weights) ----
        pctx = mm(x_ctx, w_pctx[...]) + b_pctx[...]              # project_x_ctx
        pp = ploc * pctx
        q = q_loc + mm(x_ctx, w_q_c[...]) + mm(pp, w_q_p[...])
        k = (k_loc + mm(x_ctx, w_k_c[...]) + mm(pp, w_k_p[...])) \
            * (mm(cmd, w_pk[...]) + b_pk[...])
        v = (v_loc + mm(x_ctx, w_v_c[...]) + mm(pp, w_v_p[...])) \
            * (mm(cmd, w_pv[...]) + b_pv[...])
        scores = mm_nt(q, k) * scale                             # (N, N)
        scores = jnp.where(entm > 0.5, NEG_INF, scores)          # apply_mask2d (hoisted mask)
        m2 = jnp.max(scores, axis=-1, keepdims=True)
        e2 = jnp.exp(scores - m2)
        prob = e2 * pl.reciprocal(jnp.sum(e2, axis=-1, keepdims=True), approx=True)
        msg = mm(prob, v)                                        # message
        x_ctx = mm(x_ctx, w_mu_c[...]) + mm(msg, w_mu_m[...]) + b_mu[...]   # mem_update

    # ---- combine_kb ----
    out_ref[0] = mm(x_loc, w_cb_l[...]) + mm(x_ctx, w_cb_c[...]) + b_cb[...]


# ---------------------------------------------------------------------------
# pallas_call glue
# ---------------------------------------------------------------------------

def _blk(shape):
    nd = len(shape)

    def imap(g):
        return (g,) + (0,) * (nd - 1)

    return pl.BlockSpec((1,) + tuple(shape[1:]), imap)


def _rep(w):
    nd = w.ndim

    def imap(g):
        return (0,) * nd

    return pl.BlockSpec(tuple(w.shape), imap)


def lcgn_forward(params, images, q_encoding, lstm_outputs, q_length, entity_num,
                 *, msg_iter_num, ctx_dim, cmd_input_act):
    B, N, _ = images.shape
    S = lstm_outputs.shape[1]
    cmd_dim = q_encoding.shape[-1]
    C = ctx_dim
    f32 = jnp.float32
    bf16 = jnp.bfloat16

    # Masks built once (hoisted out of the per-iteration path); 1.0 == masked position.
    seq_mask = (jnp.arange(S, dtype=f32)[None, :] >= q_length.reshape(B, 1)).astype(f32)
    seq_mask = seq_mask.reshape(B, 1, S)
    m1d = jnp.arange(N, dtype=f32)[None, :] >= entity_num.reshape(B, 1)
    ent_mask = (m1d[:, None, :] | m1d[:, :, None]).astype(f32)            # (B, N, N)

    def c(w):
        # Pre-cast MXU-only weights to bf16 once (reference applies the same rounding
        # per matmul, so numerics are identical; halves replicated weight traffic).
        return w.astype(bf16)

    # Split concatenated-input weight matrices -> per-part matmuls (no in-kernel concat).
    qw, kw, vw = params['q_wT'], params['k_wT'], params['v_wT']
    muw, cw = params['mu_wT'], params['combine_wT']
    weights = [
        c(params['initKB_wT']), params['initKB_b'], params['initMem'].reshape(1, C),
        c(params['qInput_wT']), params['qInput_b'],
        c(jnp.stack([params[f'qInput{t}_wT'] for t in range(msg_iter_num)])),
        jnp.stack([params[f'qInput{t}_b'] for t in range(msg_iter_num)]),
        params['logits_wT'].reshape(1, cmd_dim), params['logits_b'].reshape(1, 1),
        c(params['ploc_wT']), params['ploc_b'], c(params['pctx_wT']), params['pctx_b'],
        c(qw[:C]), c(qw[C:2 * C]), c(qw[2 * C:]), params['q_b'],
        c(kw[:C]), c(kw[C:2 * C]), c(kw[2 * C:]), params['k_b'],
        c(vw[:C]), c(vw[C:2 * C]), c(vw[2 * C:]), params['v_b'],
        c(params['pk_wT']), params['pk_b'], c(params['pv_wT']), params['pv_b'],
        c(muw[:C]), c(muw[C:]), params['mu_b'],
        c(cw[:C]), c(cw[C:]), params['combine_b'],
    ]

    kernel = functools.partial(_lcgn_fused_kernel,
                               act_name=cmd_input_act, msg_iter_num=msg_iter_num)

    return pl.pallas_call(
        kernel,
        out_shape=jax.ShapeDtypeStruct((B, N, C), f32),
        grid=(B,),
        in_specs=[_blk(images.shape), _blk(q_encoding.shape), _blk(lstm_outputs.shape),
                  _blk(seq_mask.shape), _blk(ent_mask.shape)]
                 + [_rep(w) for w in weights],
        out_specs=pl.BlockSpec((1, N, C), lambda g: (g, 0, 0)),
        compiler_params=pltpu.CompilerParams(dimension_semantics=("parallel",)),
    )(images, q_encoding, lstm_outputs, seq_mask, ent_mask, *weights)


# ---------------------------------------------------------------------------
# Deterministic parameter init (matches custom Linear init: U(-b, b), bias 0)
# ---------------------------------------------------------------------------

def _linear_params(key, in_f, out_f):
    bound = float(np.sqrt(3.0 / ((in_f + out_f) / 2.0)))
    w = jax.random.uniform(key, (out_f, in_f), jnp.float32, -bound, bound)
    b = jnp.zeros((out_f,), jnp.float32)
    return w.T, b.reshape(1, out_f)


def init_params(key, d_feat, ctx_dim, cmd_dim, msg_iter_num):
    keys = jax.random.split(key, 16 + msg_iter_num)
    ki = iter(keys)
    p = {}
    p['initKB_wT'], p['initKB_b'] = _linear_params(next(ki), d_feat, ctx_dim)
    p['initMem'] = jax.random.normal(next(ki), (1, 1, ctx_dim), jnp.float32)
    p['qInput_wT'], p['qInput_b'] = _linear_params(next(ki), cmd_dim, cmd_dim)
    for t in range(msg_iter_num):
        p[f'qInput{t}_wT'], p[f'qInput{t}_b'] = _linear_params(next(ki), cmd_dim, cmd_dim)
    p['logits_wT'], p['logits_b'] = _linear_params(next(ki), cmd_dim, 1)
    p['ploc_wT'], p['ploc_b'] = _linear_params(next(ki), ctx_dim, ctx_dim)
    p['pctx_wT'], p['pctx_b'] = _linear_params(next(ki), ctx_dim, ctx_dim)
    p['q_wT'], p['q_b'] = _linear_params(next(ki), 3 * ctx_dim, ctx_dim)
    p['k_wT'], p['k_b'] = _linear_params(next(ki), 3 * ctx_dim, ctx_dim)
    p['v_wT'], p['v_b'] = _linear_params(next(ki), 3 * ctx_dim, ctx_dim)
    p['pk_wT'], p['pk_b'] = _linear_params(next(ki), cmd_dim, ctx_dim)
    p['pv_wT'], p['pv_b'] = _linear_params(next(ki), cmd_dim, ctx_dim)
    p['mu_wT'], p['mu_b'] = _linear_params(next(ki), 2 * ctx_dim, ctx_dim)
    p['combine_wT'], p['combine_b'] = _linear_params(next(ki), 2 * ctx_dim, ctx_dim)
    return p


# ---------------------------------------------------------------------------
# Pure-JAX reference (mirrors the PyTorch eval-mode forward; same bf16 matmul
# input casts / f32 accumulation as the kernel) for verification.
# ---------------------------------------------------------------------------

def reference_forward(params, images, q_encoding, lstm_outputs, q_length, entity_num,
                      *, msg_iter_num, ctx_dim, cmd_input_act):
    act = ACTIVATIONS[cmd_input_act]
    bf = jnp.bfloat16
    f32 = jnp.float32

    def mm(a, b):
        return jnp.matmul(a.astype(bf), b.astype(bf), preferred_element_type=f32)

    def bmm(eq, a, b):
        return jnp.einsum(eq, a.astype(bf), b.astype(bf), preferred_element_type=f32)

    B, N, _ = images.shape
    S = lstm_outputs.shape[1]
    C = ctx_dim
    scale = float(1.0 / np.sqrt(C))

    nrm = jnp.sqrt(jnp.sum(images * images, -1, keepdims=True))
    imgs = images / jnp.maximum(nrm, 1e-12)
    x_loc = mm(imgs, params['initKB_wT']) + params['initKB_b']
    x_ctx = jnp.broadcast_to(params['initMem'], (B, N, C)).astype(f32)

    qenc = q_encoding[:, 0, :]
    seq_mask = jnp.arange(S, dtype=f32)[None, :] >= q_length.reshape(B, 1)    # (B,S)
    m1d = jnp.arange(N, dtype=f32)[None, :] >= entity_num.reshape(B, 1)       # (B,N)
    ent_mask = m1d[:, None, :] | m1d[:, :, None]                              # (B,N,N)

    h = act(mm(qenc, params['qInput_wT']) + params['qInput_b'])
    w_lg = params['logits_wT'].reshape(1, -1)
    b_lg = params['logits_b'].reshape(1, 1)

    for t in range(msg_iter_num):
        q_cmd = mm(h, params[f'qInput{t}_wT']) + params[f'qInput{t}_b']       # (B,CMD)
        raw = bmm('bc,bsc->bs', q_cmd * w_lg, lstm_outputs) + b_lg            # (B,S)
        raw = jnp.where(seq_mask, NEG_INF, raw)
        m1 = jnp.max(raw, -1, keepdims=True)
        e1 = jnp.exp(raw - m1)
        att = e1 / jnp.sum(e1, -1, keepdims=True)
        cmd = bmm('bs,bsc->bc', att, lstm_outputs)                            # (B,CMD)

        ploc = mm(x_loc, params['ploc_wT']) + params['ploc_b']
        pctx = mm(x_ctx, params['pctx_wT']) + params['pctx_b']
        xj = jnp.concatenate([x_loc, x_ctx, ploc * pctx], -1)
        q = mm(xj, params['q_wT']) + params['q_b']
        k = (mm(xj, params['k_wT']) + params['k_b']) \
            * (mm(cmd, params['pk_wT']) + params['pk_b'])[:, None, :]
        v = (mm(xj, params['v_wT']) + params['v_b']) \
            * (mm(cmd, params['pv_wT']) + params['pv_b'])[:, None, :]
        scores = bmm('bnc,bmc->bnm', q, k) * scale
        scores = jnp.where(ent_mask, NEG_INF, scores)
        m2 = jnp.max(scores, -1, keepdims=True)
        e2 = jnp.exp(scores - m2)
        prob = e2 / jnp.sum(e2, -1, keepdims=True)
        message = bmm('bnm,bmc->bnc', prob, v)
        x_ctx = mm(jnp.concatenate([x_ctx, message], -1), params['mu_wT']) + params['mu_b']

    return mm(jnp.concatenate([x_loc, x_ctx], -1), params['combine_wT']) + params['combine_b']


if __name__ == "__main__":
    B, N, S = 2, 8, 8
    D_FEAT, CTX_DIM, CMD_DIM = 16, 32, 32
    MSG_ITER_NUM = 2
    CMD_INPUT_ACT = 'ELU'

    root = jax.random.PRNGKey(0)
    k_p, k_img, k_q, k_lstm = jax.random.split(root, 4)
    params = init_params(k_p, D_FEAT, CTX_DIM, CMD_DIM, MSG_ITER_NUM)

    images = jax.random.normal(k_img, (B, N, D_FEAT), jnp.float32)
    q_encoding = jax.random.normal(k_q, (B, 1, CMD_DIM), jnp.float32)
    lstm_outputs = jax.random.normal(k_lstm, (B, S, CMD_DIM), jnp.float32)
    q_length = jnp.array([5.0, 8.0], jnp.float32).reshape(B, 1, 1)
    entity_num = jnp.array([6.0, 8.0], jnp.float32).reshape(B, 1, 1)

    out = lcgn_forward(params, images, q_encoding, lstm_outputs, q_length, entity_num,
                       msg_iter_num=MSG_ITER_NUM, ctx_dim=CTX_DIM,
                       cmd_input_act=CMD_INPUT_ACT)
    out = jax.block_until_ready(out)

    ref = reference_forward(params, images, q_encoding, lstm_outputs, q_length, entity_num,
                            msg_iter_num=MSG_ITER_NUM, ctx_dim=CTX_DIM,
                            cmd_input_act=CMD_INPUT_ACT)
    ref = jax.block_until_ready(ref)

    assert out.shape == (B, N, CTX_DIM)
    # Tolerance covers bf16 MXU input rounding boundaries + approx EUP reciprocal.
    np.testing.assert_allclose(np.asarray(out), np.asarray(ref), rtol=1e-2, atol=1e-2)
    print("KERNEL_OK")
</pallas_src>

<mosaic_0001>
module attributes {stable_mosaic.version = 11 : i64} {
  func.func @_lcgn_fused_kernel(%arg0: i32, %arg1: memref<1x8x16xf32, #tpu.memory_space<vmem>>, %arg2: memref<1x1x32xf32, #tpu.memory_space<vmem>>, %arg3: memref<1x8x32xf32, #tpu.memory_space<vmem>>, %arg4: memref<1x1x8xf32, #tpu.memory_space<vmem>>, %arg5: memref<1x8x8xf32, #tpu.memory_space<vmem>>, %arg6: memref<16x32xbf16, #tpu.memory_space<vmem>>, %arg7: memref<1x32xf32, #tpu.memory_space<vmem>>, %arg8: memref<1x32xf32, #tpu.memory_space<vmem>>, %arg9: memref<32x32xbf16, #tpu.memory_space<vmem>>, %arg10: memref<1x32xf32, #tpu.memory_space<vmem>>, %arg11: memref<2x32x32xbf16, #tpu.memory_space<vmem>>, %arg12: memref<2x1x32xf32, #tpu.memory_space<vmem>>, %arg13: memref<1x32xf32, #tpu.memory_space<vmem>>, %arg14: memref<1x1xf32, #tpu.memory_space<vmem>>, %arg15: memref<32x32xbf16, #tpu.memory_space<vmem>>, %arg16: memref<1x32xf32, #tpu.memory_space<vmem>>, %arg17: memref<32x32xbf16, #tpu.memory_space<vmem>>, %arg18: memref<1x32xf32, #tpu.memory_space<vmem>>, %arg19: memref<32x32xbf16, #tpu.memory_space<vmem>>, %arg20: memref<32x32xbf16, #tpu.memory_space<vmem>>, %arg21: memref<32x32xbf16, #tpu.memory_space<vmem>>, %arg22: memref<1x32xf32, #tpu.memory_space<vmem>>, %arg23: memref<32x32xbf16, #tpu.memory_space<vmem>>, %arg24: memref<32x32xbf16, #tpu.memory_space<vmem>>, %arg25: memref<32x32xbf16, #tpu.memory_space<vmem>>, %arg26: memref<1x32xf32, #tpu.memory_space<vmem>>, %arg27: memref<32x32xbf16, #tpu.memory_space<vmem>>, %arg28: memref<32x32xbf16, #tpu.memory_space<vmem>>, %arg29: memref<32x32xbf16, #tpu.memory_space<vmem>>, %arg30: memref<1x32xf32, #tpu.memory_space<vmem>>, %arg31: memref<32x32xbf16, #tpu.memory_space<vmem>>, %arg32: memref<1x32xf32, #tpu.memory_space<vmem>>, %arg33: memref<32x32xbf16, #tpu.memory_space<vmem>>, %arg34: memref<1x32xf32, #tpu.memory_space<vmem>>, %arg35: memref<32x32xbf16, #tpu.memory_space<vmem>>, %arg36: memref<32x32xbf16, #tpu.memory_space<vmem>>, %arg37: memref<1x32xf32, #tpu.memory_space<vmem>>, %arg38: memref<32x32xbf16, #tpu.memory_space<vmem>>, %arg39: memref<32x32xbf16, #tpu.memory_space<vmem>>, %arg40: memref<1x32xf32, #tpu.memory_space<vmem>>, %arg41: memref<1x8x32xf32, #tpu.memory_space<vmem>>) attributes {dimension_semantics = [#tpu.dimension_semantics<parallel>], iteration_bounds = array<i64: 2>, scalar_prefetch = 0 : i64, scratch_operands = 0 : i64, tpu.core_type = #tpu.core_type<tc>, window_params = [{transform_indices = @transform_0, window_bounds = array<i64: 1, 8, 16>}, {transform_indices = @transform_1, window_bounds = array<i64: 1, 1, 32>}, {transform_indices = @transform_2, window_bounds = array<i64: 1, 8, 32>}, {transform_indices = @transform_3, window_bounds = array<i64: 1, 1, 8>}, {transform_indices = @transform_4, window_bounds = array<i64: 1, 8, 8>}, {pipeline_mode = #tpu.pipeline_mode<synchronous>, transform_indices = @transform_5, window_bounds = array<i64: 16, 32>}, {pipeline_mode = #tpu.pipeline_mode<synchronous>, transform_indices = @transform_6, window_bounds = array<i64: 1, 32>}, {pipeline_mode = #tpu.pipeline_mode<synchronous>, transform_indices = @transform_7, window_bounds = array<i64: 1, 32>}, {pipeline_mode = #tpu.pipeline_mode<synchronous>, transform_indices = @transform_8, window_bounds = array<i64: 32, 32>}, {pipeline_mode = #tpu.pipeline_mode<synchronous>, transform_indices = @transform_9, window_bounds = array<i64: 1, 32>}, {pipeline_mode = #tpu.pipeline_mode<synchronous>, transform_indices = @transform_10, window_bounds = array<i64: 2, 32, 32>}, {pipeline_mode = #tpu.pipeline_mode<synchronous>, transform_indices = @transform_11, window_bounds = array<i64: 2, 1, 32>}, {pipeline_mode = #tpu.pipeline_mode<synchronous>, transform_indices = @transform_12, window_bounds = array<i64: 1, 32>}, {pipeline_mode = #tpu.pipeline_mode<synchronous>, transform_indices = @transform_13, window_bounds = array<i64: 1, 1>}, {pipeline_mode = #tpu.pipeline_mode<synchronous>, transform_indices = @transform_14, window_bounds = array<i64: 32, 32>}, {pipeline_mode = #tpu.pipeline_mode<synchronous>, transform_indices = @transform_15, window_bounds = array<i64: 1, 32>}, {pipeline_mode = #tpu.pipeline_mode<synchronous>, transform_indices = @transform_16, window_bounds = array<i64: 32, 32>}, {pipeline_mode = #tpu.pipeline_mode<synchronous>, transform_indices = @transform_17, window_bounds = array<i64: 1, 32>}, {pipeline_mode = #tpu.pipeline_mode<synchronous>, transform_indices = @transform_18, window_bounds = array<i64: 32, 32>}, {pipeline_mode = #tpu.pipeline_mode<synchronous>, transform_indices = @transform_19, window_bounds = array<i64: 32, 32>}, {pipeline_mode = #tpu.pipeline_mode<synchronous>, transform_indices = @transform_20, window_bounds = array<i64: 32, 32>}, {pipeline_mode = #tpu.pipeline_mode<synchronous>, transform_indices = @transform_21, window_bounds = array<i64: 1, 32>}, {pipeline_mode = #tpu.pipeline_mode<synchronous>, transform_indices = @transform_22, window_bounds = array<i64: 32, 32>}, {pipeline_mode = #tpu.pipeline_mode<synchronous>, transform_indices = @transform_23, window_bounds = array<i64: 32, 32>}, {pipeline_mode = #tpu.pipeline_mode<synchronous>, transform_indices = @transform_24, window_bounds = array<i64: 32, 32>}, {pipeline_mode = #tpu.pipeline_mode<synchronous>, transform_indices = @transform_25, window_bounds = array<i64: 1, 32>}, {pipeline_mode = #tpu.pipeline_mode<synchronous>, transform_indices = @transform_26, window_bounds = array<i64: 32, 32>}, {pipeline_mode = #tpu.pipeline_mode<synchronous>, transform_indices = @transform_27, window_bounds = array<i64: 32, 32>}, {pipeline_mode = #tpu.pipeline_mode<synchronous>, transform_indices = @transform_28, window_bounds = array<i64: 32, 32>}, {pipeline_mode = #tpu.pipeline_mode<synchronous>, transform_indices = @transform_29, window_bounds = array<i64: 1, 32>}, {pipeline_mode = #tpu.pipeline_mode<synchronous>, transform_indices = @transform_30, window_bounds = array<i64: 32, 32>}, {pipeline_mode = #tpu.pipeline_mode<synchronous>, transform_indices = @transform_31, window_bounds = array<i64: 1, 32>}, {pipeline_mode = #tpu.pipeline_mode<synchronous>, transform_indices = @transform_32, window_bounds = array<i64: 32, 32>}, {pipeline_mode = #tpu.pipeline_mode<synchronous>, transform_indices = @transform_33, window_bounds = array<i64: 1, 32>}, {pipeline_mode = #tpu.pipeline_mode<synchronous>, transform_indices = @transform_34, window_bounds = array<i64: 32, 32>}, {pipeline_mode = #tpu.pipeline_mode<synchronous>, transform_indices = @transform_35, window_bounds = array<i64: 32, 32>}, {pipeline_mode = #tpu.pipeline_mode<synchronous>, transform_indices = @transform_36, window_bounds = array<i64: 1, 32>}, {pipeline_mode = #tpu.pipeline_mode<synchronous>, transform_indices = @transform_37, window_bounds = array<i64: 32, 32>}, {pipeline_mode = #tpu.pipeline_mode<synchronous>, transform_indices = @transform_38, window_bounds = array<i64: 32, 32>}, {pipeline_mode = #tpu.pipeline_mode<synchronous>, transform_indices = @transform_39, window_bounds = array<i64: 1, 32>}, {transform_indices = @transform_40, window_bounds = array<i64: 1, 8, 32>}]} {
    %c0 = arith.constant 0 : index
    %c0_0 = arith.constant 0 : index
    %c0_1 = arith.constant 0 : index
    %0 = vector.load %arg1[%c0, %c0_0, %c0_1] : memref<1x8x16xf32, #tpu.memory_space<vmem>>, vector<1x8x16xf32>
    %1 = vector.shape_cast %0 : vector<1x8x16xf32> to vector<8x16xf32>
    %2 = arith.mulf %1, %1 : vector<8x16xf32>
    %cst = arith.constant dense<0.000000e+00> : vector<8xf32>
    %3 = vector.multi_reduction <add>, %2, %cst [1] : vector<8x16xf32> to vector<8xf32>
    %4 = vector.shape_cast %3 : vector<8xf32> to vector<8x1xf32>
    %5 = math.sqrt %4 : vector<8x1xf32>
    %cst_2 = arith.constant 9.99999996E-13 : f32
    %6 = vector.broadcast %cst_2 : f32 to vector<8x1xf32>
    %7 = arith.maximumf %5, %6 : vector<8x1xf32>
    %8 = vector.broadcast %7 : vector<8x1xf32> to vector<8x16xf32>
    %9 = arith.divf %1, %8 : vector<8x16xf32>
    %c0_3 = arith.constant 0 : index
    %c0_4 = arith.constant 0 : index
    %10 = vector.load %arg6[%c0_3, %c0_4] : memref<16x32xbf16, #tpu.memory_space<vmem>>, vector<16x32xbf16>
    %11 = arith.truncf %9 : vector<8x16xf32> to vector<8x16xbf16>
    %cst_5 = arith.constant dense<0.000000e+00> : vector<8x32xf32>
    %12 = tpu.matmul %11, %10, %cst_5 {dimension_numbers = #tpu.dot_dimension_numbers<[1], [0], [0], [1], [0, 0, 1, 1], [], []>} : vector<8x16xbf16>, vector<16x32xbf16>, vector<8x32xf32> -> vector<8x32xf32>
    %c0_6 = arith.constant 0 : index
    %c0_7 = arith.constant 0 : index
    %13 = vector.load %arg7[%c0_6, %c0_7] : memref<1x32xf32, #tpu.memory_space<vmem>>, vector<1x32xf32>
    %14 = vector.broadcast %13 : vector<1x32xf32> to vector<8x32xf32>
    %15 = arith.addf %12, %14 : vector<8x32xf32>
    %c0_8 = arith.constant 0 : index
    %c0_9 = arith.constant 0 : index
    %16 = vector.load %arg8[%c0_8, %c0_9] : memref<1x32xf32, #tpu.memory_space<vmem>>, vector<1x32xf32>
    %17 = vector.shape_cast %16 : vector<1x32xf32> to vector<1x32xf32>
    %18 = vector.broadcast %17 : vector<1x32xf32> to vector<8x32xf32>
    %c0_10 = arith.constant 0 : index
    %c0_11 = arith.constant 0 : index
    %c0_12 = arith.constant 0 : index
    %19 = vector.load %arg3[%c0_10, %c0_11, %c0_12] : memref<1x8x32xf32, #tpu.memory_space<vmem>>, vector<1x8x32xf32>
    %20 = vector.shape_cast %19 : vector<1x8x32xf32> to vector<8x32xf32>
    %c0_13 = arith.constant 0 : index
    %c0_14 = arith.constant 0 : index
    %c0_15 = arith.constant 0 : index
    %21 = vector.load %arg2[%c0_13, %c0_14, %c0_15] : memref<1x1x32xf32, #tpu.memory_space<vmem>>, vector<1x1x32xf32>
    %22 = vector.shape_cast %21 : vector<1x1x32xf32> to vector<1x32xf32>
    %c0_16 = arith.constant 0 : index
    %c0_17 = arith.constant 0 : index
    %c0_18 = arith.constant 0 : index
    %23 = vector.load %arg4[%c0_16, %c0_17, %c0_18] : memref<1x1x8xf32, #tpu.memory_space<vmem>>, vector<1x1x8xf32>
    %24 = vector.shape_cast %23 : vector<1x1x8xf32> to vector<1x8xf32>
    %c0_19 = arith.constant 0 : index
    %c0_20 = arith.constant 0 : index
    %c0_21 = arith.constant 0 : index
    %25 = vector.load %arg5[%c0_19, %c0_20, %c0_21] : memref<1x8x8xf32, #tpu.memory_space<vmem>>, vector<1x8x8xf32>
    %26 = vector.shape_cast %25 : vector<1x8x8xf32> to vector<8x8xf32>
    %c0_22 = arith.constant 0 : index
    %c0_23 = arith.constant 0 : index
    %27 = vector.load %arg9[%c0_22, %c0_23] : memref<32x32xbf16, #tpu.memory_space<vmem>>, vector<32x32xbf16>
    %28 = arith.truncf %22 : vector<1x32xf32> to vector<1x32xbf16>
    %cst_24 = arith.constant dense<0.000000e+00> : vector<1x32xf32>
    %29 = tpu.matmul %28, %27, %cst_24 {dimension_numbers = #tpu.dot_dimension_numbers<[1], [0], [0], [1], [0, 0, 1, 1], [], []>} : vector<1x32xbf16>, vector<32x32xbf16>, vector<1x32xf32> -> vector<1x32xf32>
    %c0_25 = arith.constant 0 : index
    %c0_26 = arith.constant 0 : index
    %30 = vector.load %arg10[%c0_25, %c0_26] : memref<1x32xf32, #tpu.memory_space<vmem>>, vector<1x32xf32>
    %31 = arith.addf %29, %30 : vector<1x32xf32>
    %cst_27 = arith.constant 0.000000e+00 : f32
    %32 = vector.broadcast %cst_27 : f32 to vector<1x32xf32>
    %33 = arith.cmpf ogt, %31, %32 : vector<1x32xf32>
    %34 = math.exp %31 : vector<1x32xf32>
    %cst_28 = arith.constant 1.000000e+00 : f32
    %35 = vector.broadcast %cst_28 : f32 to vector<1x32xf32>
    %36 = arith.subf %34, %35 : vector<1x32xf32>
    %37 = arith.select %33, %31, %36 : vector<1x32xi1>, vector<1x32xf32>
    %c0_29 = arith.constant 0 : index
    %c0_30 = arith.constant 0 : index
    %38 = vector.load %arg13[%c0_29, %c0_30] : memref<1x32xf32, #tpu.memory_space<vmem>>, vector<1x32xf32>
    %c0_31 = arith.constant 0 : index
    %c0_32 = arith.constant 0 : index
    %39 = vector.load %arg14[%c0_31, %c0_32] : memref<1x1xf32, #tpu.memory_space<vmem>>, vector<1x1xf32>
    %c0_33 = arith.constant 0 : index
    %c0_34 = arith.constant 0 : index
    %40 = vector.load %arg15[%c0_33, %c0_34] : memref<32x32xbf16, #tpu.memory_space<vmem>>, vector<32x32xbf16>
    %41 = arith.truncf %15 : vector<8x32xf32> to vector<8x32xbf16>
    %cst_35 = arith.constant dense<0.000000e+00> : vector<8x32xf32>
    %42 = tpu.matmul %41, %40, %cst_35 {dimension_numbers = #tpu.dot_dimension_numbers<[1], [0], [0], [1], [0, 0, 1, 1], [], []>} : vector<8x32xbf16>, vector<32x32xbf16>, vector<8x32xf32> -> vector<8x32xf32>
    %c0_36 = arith.constant 0 : index
    %c0_37 = arith.constant 0 : index
    %43 = vector.load %arg16[%c0_36, %c0_37] : memref<1x32xf32, #tpu.memory_space<vmem>>, vector<1x32xf32>
    %44 = vector.broadcast %43 : vector<1x32xf32> to vector<8x32xf32>
    %45 = arith.addf %42, %44 : vector<8x32xf32>
    %c0_38 = arith.constant 0 : index
    %c0_39 = arith.constant 0 : index
    %46 = vector.load %arg19[%c0_38, %c0_39] : memref<32x32xbf16, #tpu.memory_space<vmem>>, vector<32x32xbf16>
    %47 = arith.truncf %15 : vector<8x32xf32> to vector<8x32xbf16>
    %cst_40 = arith.constant dense<0.000000e+00> : vector<8x32xf32>
    %48 = tpu.matmul %47, %46, %cst_40 {dimension_numbers = #tpu.dot_dimension_numbers<[1], [0], [0], [1], [0, 0, 1, 1], [], []>} : vector<8x32xbf16>, vector<32x32xbf16>, vector<8x32xf32> -> vector<8x32xf32>
    %c0_41 = arith.constant 0 : index
    %c0_42 = arith.constant 0 : index
    %49 = vector.load %arg22[%c0_41, %c0_42] : memref<1x32xf32, #tpu.memory_space<vmem>>, vector<1x32xf32>
    %50 = vector.broadcast %49 : vector<1x32xf32> to vector<8x32xf32>
    %51 = arith.addf %48, %50 : vector<8x32xf32>
    %c0_43 = arith.constant 0 : index
    %c0_44 = arith.constant 0 : index
    %52 = vector.load %arg23[%c0_43, %c0_44] : memref<32x32xbf16, #tpu.memory_space<vmem>>, vector<32x32xbf16>
    %53 = arith.truncf %15 : vector<8x32xf32> to vector<8x32xbf16>
    %cst_45 = arith.constant dense<0.000000e+00> : vector<8x32xf32>
    %54 = tpu.matmul %53, %52, %cst_45 {dimension_numbers = #tpu.dot_dimension_numbers<[1], [0], [0], [1], [0, 0, 1, 1], [], []>} : vector<8x32xbf16>, vector<32x32xbf16>, vector<8x32xf32> -> vector<8x32xf32>
    %c0_46 = arith.constant 0 : index
    %c0_47 = arith.constant 0 : index
    %55 = vector.load %arg26[%c0_46, %c0_47] : memref<1x32xf32, #tpu.memory_space<vmem>>, vector<1x32xf32>
    %56 = vector.broadcast %55 : vector<1x32xf32> to vector<8x32xf32>
    %57 = arith.addf %54, %56 : vector<8x32xf32>
    %c0_48 = arith.constant 0 : index
    %c0_49 = arith.constant 0 : index
    %58 = vector.load %arg27[%c0_48, %c0_49] : memref<32x32xbf16, #tpu.memory_space<vmem>>, vector<32x32xbf16>
    %59 = arith.truncf %15 : vector<8x32xf32> to vector<8x32xbf16>
    %cst_50 = arith.constant dense<0.000000e+00> : vector<8x32xf32>
    %60 = tpu.matmul %59, %58, %cst_50 {dimension_numbers = #tpu.dot_dimension_numbers<[1], [0], [0], [1], [0, 0, 1, 1], [], []>} : vector<8x32xbf16>, vector<32x32xbf16>, vector<8x32xf32> -> vector<8x32xf32>
    %c0_51 = arith.constant 0 : index
    %c0_52 = arith.constant 0 : index
    %61 = vector.load %arg30[%c0_51, %c0_52] : memref<1x32xf32, #tpu.memory_space<vmem>>, vector<1x32xf32>
    %62 = vector.broadcast %61 : vector<1x32xf32> to vector<8x32xf32>
    %63 = arith.addf %60, %62 : vector<8x32xf32>
    %c0_53 = arith.constant 0 : index
    %c0_54 = arith.constant 0 : index
    %c0_55 = arith.constant 0 : index
    %64 = vector.load %arg11[%c0_53, %c0_54, %c0_55] : memref<2x32x32xbf16, #tpu.memory_space<vmem>>, vector<1x32x32xbf16>
    %65 = vector.shape_cast %64 : vector<1x32x32xbf16> to vector<32x32xbf16>
    %66 = arith.truncf %37 : vector<1x32xf32> to vector<1x32xbf16>
    %cst_56 = arith.constant dense<0.000000e+00> : vector<1x32xf32>
    %67 = tpu.matmul %66, %65, %cst_56 {dimension_numbers = #tpu.dot_dimension_numbers<[1], [0], [0], [1], [0, 0, 1, 1], [], []>} : vector<1x32xbf16>, vector<32x32xbf16>, vector<1x32xf32> -> vector<1x32xf32>
    %c0_57 = arith.constant 0 : index
    %c0_58 = arith.constant 0 : index
    %c0_59 = arith.constant 0 : index
    %68 = vector.load %arg12[%c0_57, %c0_58, %c0_59] : memref<2x1x32xf32, #tpu.memory_space<vmem>>, vector<1x1x32xf32>
    %69 = vector.shape_cast %68 : vector<1x1x32xf32> to vector<1x32xf32>
    %70 = arith.addf %67, %69 : vector<1x32xf32>
    %71 = arith.mulf %70, %38 : vector<1x32xf32>
    %72 = arith.truncf %71 : vector<1x32xf32> to vector<1x32xbf16>
    %73 = arith.truncf %20 : vector<8x32xf32> to vector<8x32xbf16>
    %cst_60 = arith.constant dense<0.000000e+00> : vector<1x8xf32>
    %74 = tpu.matmul %72, %73, %cst_60 {dimension_numbers = #tpu.dot_dimension_numbers<[1], [1], [0], [0], [0, 0, 1, 0], [], []>} : vector<1x32xbf16>, vector<8x32xbf16>, vector<1x8xf32> -> vector<1x8xf32>
    %75 = vector.broadcast %39 : vector<1x1xf32> to vector<1x8xf32>
    %76 = arith.addf %74, %75 : vector<1x8xf32>
    %cst_61 = arith.constant 5.000000e-01 : f32
    %77 = vector.broadcast %cst_61 : f32 to vector<1x8xf32>
    %78 = arith.cmpf ogt, %24, %77 : vector<1x8xf32>
    %cst_62 = arith.constant -1.000000e+30 : f32
    %79 = vector.broadcast %cst_62 : f32 to vector<1x8xf32>
    %80 = arith.select %78, %79, %76 : vector<1x8xi1>, vector<1x8xf32>
    %cst_63 = arith.constant dense<0xFF800000> : vector<1xf32>
    %81 = vector.multi_reduction <maximumf>, %80, %cst_63 [1] : vector<1x8xf32> to vector<1xf32>
    %82 = vector.shape_cast %81 : vector<1xf32> to vector<1x1xf32>
    %83 = vector.broadcast %82 : vector<1x1xf32> to vector<1x8xf32>
    %84 = arith.subf %80, %83 : vector<1x8xf32>
    %85 = math.exp %84 : vector<1x8xf32>
    %cst_64 = arith.constant dense<0.000000e+00> : vector<1xf32>
    %86 = vector.multi_reduction <add>, %85, %cst_64 [1] : vector<1x8xf32> to vector<1xf32>
    %87 = vector.shape_cast %86 : vector<1xf32> to vector<1x1xf32>
    %88 = tpu.reciprocal %87 {approx = true} : vector<1x1xf32> -> vector<1x1xf32>
    %89 = vector.broadcast %88 : vector<1x1xf32> to vector<1x8xf32>
    %90 = arith.mulf %85, %89 : vector<1x8xf32>
    %91 = arith.truncf %90 : vector<1x8xf32> to vector<1x8xbf16>
    %92 = arith.truncf %20 : vector<8x32xf32> to vector<8x32xbf16>
    %cst_65 = arith.constant dense<0.000000e+00> : vector<1x32xf32>
    %93 = tpu.matmul %91, %92, %cst_65 {dimension_numbers = #tpu.dot_dimension_numbers<[1], [0], [0], [1], [0, 0, 1, 1], [], []>} : vector<1x8xbf16>, vector<8x32xbf16>, vector<1x32xf32> -> vector<1x32xf32>
    %c0_66 = arith.constant 0 : index
    %c0_67 = arith.constant 0 : index
    %94 = vector.load %arg17[%c0_66, %c0_67] : memref<32x32xbf16, #tpu.memory_space<vmem>>, vector<32x32xbf16>
    %95 = arith.truncf %18 : vector<8x32xf32> to vector<8x32xbf16>
    %cst_68 = arith.constant dense<0.000000e+00> : vector<8x32xf32>
    %96 = tpu.matmul %95, %94, %cst_68 {dimension_numbers = #tpu.dot_dimension_numbers<[1], [0], [0], [1], [0, 0, 1, 1], [], []>} : vector<8x32xbf16>, vector<32x32xbf16>, vector<8x32xf32> -> vector<8x32xf32>
    %c0_69 = arith.constant 0 : index
    %c0_70 = arith.constant 0 : index
    %97 = vector.load %arg18[%c0_69, %c0_70] : memref<1x32xf32, #tpu.memory_space<vmem>>, vector<1x32xf32>
    %98 = vector.broadcast %97 : vector<1x32xf32> to vector<8x32xf32>
    %99 = arith.addf %96, %98 : vector<8x32xf32>
    %100 = arith.mulf %45, %99 : vector<8x32xf32>
    %c0_71 = arith.constant 0 : index
    %c0_72 = arith.constant 0 : index
    %101 = vector.load %arg20[%c0_71, %c0_72] : memref<32x32xbf16, #tpu.memory_space<vmem>>, vector<32x32xbf16>
    %102 = arith.truncf %18 : vector<8x32xf32> to vector<8x32xbf16>
    %cst_73 = arith.constant dense<0.000000e+00> : vector<8x32xf32>
    %103 = tpu.matmul %102, %101, %cst_73 {dimension_numbers = #tpu.dot_dimension_numbers<[1], [0], [0], [1], [0, 0, 1, 1], [], []>} : vector<8x32xbf16>, vector<32x32xbf16>, vector<8x32xf32> -> vector<8x32xf32>
    %104 = arith.addf %51, %103 : vector<8x32xf32>
    %c0_74 = arith.constant 0 : index
    %c0_75 = arith.constant 0 : index
    %105 = vector.load %arg21[%c0_74, %c0_75] : memref<32x32xbf16, #tpu.memory_space<vmem>>, vector<32x32xbf16>
    %106 = arith.truncf %100 : vector<8x32xf32> to vector<8x32xbf16>
    %cst_76 = arith.constant dense<0.000000e+00> : vector<8x32xf32>
    %107 = tpu.matmul %106, %105, %cst_76 {dimension_numbers = #tpu.dot_dimension_numbers<[1], [0], [0], [1], [0, 0, 1, 1], [], []>} : vector<8x32xbf16>, vector<32x32xbf16>, vector<8x32xf32> -> vector<8x32xf32>
    %108 = arith.addf %104, %107 : vector<8x32xf32>
    %c0_77 = arith.constant 0 : index
    %c0_78 = arith.constant 0 : index
    %109 = vector.load %arg24[%c0_77, %c0_78] : memref<32x32xbf16, #tpu.memory_space<vmem>>, vector<32x32xbf16>
    %110 = arith.truncf %18 : vector<8x32xf32> to vector<8x32xbf16>
    %cst_79 = arith.constant dense<0.000000e+00> : vector<8x32xf32>
    %111 = tpu.matmul %110, %109, %cst_79 {dimension_numbers = #tpu.dot_dimension_numbers<[1], [0], [0], [1], [0, 0, 1, 1], [], []>} : vector<8x32xbf16>, vector<32x32xbf16>, vector<8x32xf32> -> vector<8x32xf32>
    %112 = arith.addf %57, %111 : vector<8x32xf32>
    %c0_80 = arith.constant 0 : index
    %c0_81 = arith.constant 0 : index
    %113 = vector.load %arg25[%c0_80, %c0_81] : memref<32x32xbf16, #tpu.memory_space<vmem>>, vector<32x32xbf16>
    %114 = arith.truncf %100 : vector<8x32xf32> to vector<8x32xbf16>
    %cst_82 = arith.constant dense<0.000000e+00> : vector<8x32xf32>
    %115 = tpu.matmul %114, %113, %cst_82 {dimension_numbers = #tpu.dot_dimension_numbers<[1], [0], [0], [1], [0, 0, 1, 1], [], []>} : vector<8x32xbf16>, vector<32x32xbf16>, vector<8x32xf32> -> vector<8x32xf32>
    %116 = arith.addf %112, %115 : vector<8x32xf32>
    %c0_83 = arith.constant 0 : index
    %c0_84 = arith.constant 0 : index
    %117 = vector.load %arg31[%c0_83, %c0_84] : memref<32x32xbf16, #tpu.memory_space<vmem>>, vector<32x32xbf16>
    %118 = arith.truncf %93 : vector<1x32xf32> to vector<1x32xbf16>
    %cst_85 = arith.constant dense<0.000000e+00> : vector<1x32xf32>
    %119 = tpu.matmul %118, %117, %cst_85 {dimension_numbers = #tpu.dot_dimension_numbers<[1], [0], [0], [1], [0, 0, 1, 1], [], []>} : vector<1x32xbf16>, vector<32x32xbf16>, vector<1x32xf32> -> vector<1x32xf32>
    %c0_86 = arith.constant 0 : index
    %c0_87 = arith.constant 0 : index
    %120 = vector.load %arg32[%c0_86, %c0_87] : memref<1x32xf32, #tpu.memory_space<vmem>>, vector<1x32xf32>
    %121 = arith.addf %119, %120 : vector<1x32xf32>
    %122 = vector.broadcast %121 : vector<1x32xf32> to vector<8x32xf32>
    %123 = arith.mulf %116, %122 : vector<8x32xf32>
    %c0_88 = arith.constant 0 : index
    %c0_89 = arith.constant 0 : index
    %124 = vector.load %arg28[%c0_88, %c0_89] : memref<32x32xbf16, #tpu.memory_space<vmem>>, vector<32x32xbf16>
    %125 = arith.truncf %18 : vector<8x32xf32> to vector<8x32xbf16>
    %cst_90 = arith.constant dense<0.000000e+00> : vector<8x32xf32>
    %126 = tpu.matmul %125, %124, %cst_90 {dimension_numbers = #tpu.dot_dimension_numbers<[1], [0], [0], [1], [0, 0, 1, 1], [], []>} : vector<8x32xbf16>, vector<32x32xbf16>, vector<8x32xf32> -> vector<8x32xf32>
    %127 = arith.addf %63, %126 : vector<8x32xf32>
    %c0_91 = arith.constant 0 : index
    %c0_92 = arith.constant 0 : index
    %128 = vector.load %arg29[%c0_91, %c0_92] : memref<32x32xbf16, #tpu.memory_space<vmem>>, vector<32x32xbf16>
    %129 = arith.truncf %100 : vector<8x32xf32> to vector<8x32xbf16>
    %cst_93 = arith.constant dense<0.000000e+00> : vector<8x32xf32>
    %130 = tpu.matmul %129, %128, %cst_93 {dimension_numbers = #tpu.dot_dimension_numbers<[1], [0], [0], [1], [0, 0, 1, 1], [], []>} : vector<8x32xbf16>, vector<32x32xbf16>, vector<8x32xf32> -> vector<8x32xf32>
    %131 = arith.addf %127, %130 : vector<8x32xf32>
    %c0_94 = arith.constant 0 : index
    %c0_95 = arith.constant 0 : index
    %132 = vector.load %arg33[%c0_94, %c0_95] : memref<32x32xbf16, #tpu.memory_space<vmem>>, vector<32x32xbf16>
    %133 = arith.truncf %93 : vector<1x32xf32> to vector<1x32xbf16>
    %cst_96 = arith.constant dense<0.000000e+00> : vector<1x32xf32>
    %134 = tpu.matmul %133, %132, %cst_96 {dimension_numbers = #tpu.dot_dimension_numbers<[1], [0], [0], [1], [0, 0, 1, 1], [], []>} : vector<1x32xbf16>, vector<32x32xbf16>, vector<1x32xf32> -> vector<1x32xf32>
    %c0_97 = arith.constant 0 : index
    %c0_98 = arith.constant 0 : index
    %135 = vector.load %arg34[%c0_97, %c0_98] : memref<1x32xf32, #tpu.memory_space<vmem>>, vector<1x32xf32>
    %136 = arith.addf %134, %135 : vector<1x32xf32>
    %137 = vector.broadcast %136 : vector<1x32xf32> to vector<8x32xf32>
    %138 = arith.mulf %131, %137 : vector<8x32xf32>
    %139 = arith.truncf %108 : vector<8x32xf32> to vector<8x32xbf16>
    %140 = arith.truncf %123 : vector<8x32xf32> to vector<8x32xbf16>
    %cst_99 = arith.constant dense<0.000000e+00> : vector<8x8xf32>
    %141 = tpu.matmul %139, %140, %cst_99 {dimension_numbers = #tpu.dot_dimension_numbers<[1], [1], [0], [0], [0, 0, 1, 0], [], []>} : vector<8x32xbf16>, vector<8x32xbf16>, vector<8x8xf32> -> vector<8x8xf32>
    %cst_100 = arith.constant 0.176776692 : f32
    %142 = vector.broadcast %cst_100 : f32 to vector<8x8xf32>
    %143 = arith.mulf %141, %142 : vector<8x8xf32>
    %cst_101 = arith.constant 5.000000e-01 : f32
    %144 = vector.broadcast %cst_101 : f32 to vector<8x8xf32>
    %145 = arith.cmpf ogt, %26, %144 : vector<8x8xf32>
    %cst_102 = arith.constant -1.000000e+30 : f32
    %146 = vector.broadcast %cst_102 : f32 to vector<8x8xf32>
    %147 = arith.select %145, %146, %143 : vector<8x8xi1>, vector<8x8xf32>
    %cst_103 = arith.constant dense<0xFF800000> : vector<8xf32>
    %148 = vector.multi_reduction <maximumf>, %147, %cst_103 [1] : vector<8x8xf32> to vector<8xf32>
    %149 = vector.shape_cast %148 : vector<8xf32> to vector<8x1xf32>
    %150 = vector.broadcast %149 : vector<8x1xf32> to vector<8x8xf32>
    %151 = arith.subf %147, %150 : vector<8x8xf32>
    %152 = math.exp %151 : vector<8x8xf32>
    %cst_104 = arith.constant dense<0.000000e+00> : vector<8xf32>
    %153 = vector.multi_reduction <add>, %152, %cst_104 [1] : vector<8x8xf32> to vector<8xf32>
    %154 = vector.shape_cast %153 : vector<8xf32> to vector<8x1xf32>
    %155 = tpu.reciprocal %154 {approx = true} : vector<8x1xf32> -> vector<8x1xf32>
    %156 = vector.broadcast %155 : vector<8x1xf32> to vector<8x8xf32>
    %157 = arith.mulf %152, %156 : vector<8x8xf32>
    %158 = arith.truncf %157 : vector<8x8xf32> to vector<8x8xbf16>
    %159 = arith.truncf %138 : vector<8x32xf32> to vector<8x32xbf16>
    %cst_105 = arith.constant dense<0.000000e+00> : vector<8x32xf32>
    %160 = tpu.matmul %158, %159, %cst_105 {dimension_numbers = #tpu.dot_dimension_numbers<[1], [0], [0], [1], [0, 0, 1, 1], [], []>} : vector<8x8xbf16>, vector<8x32xbf16>, vector<8x32xf32> -> vector<8x32xf32>
    %c0_106 = arith.constant 0 : index
    %c0_107 = arith.constant 0 : index
    %161 = vector.load %arg35[%c0_106, %c0_107] : memref<32x32xbf16, #tpu.memory_space<vmem>>, vector<32x32xbf16>
    %162 = arith.truncf %18 : vector<8x32xf32> to vector<8x32xbf16>
    %cst_108 = arith.constant dense<0.000000e+00> : vector<8x32xf32>
    %163 = tpu.matmul %162, %161, %cst_108 {dimension_numbers = #tpu.dot_dimension_numbers<[1], [0], [0], [1], [0, 0, 1, 1], [], []>} : vector<8x32xbf16>, vector<32x32xbf16>, vector<8x32xf32> -> vector<8x32xf32>
    %c0_109 = arith.constant 0 : index
    %c0_110 = arith.constant 0 : index
    %164 = vector.load %arg36[%c0_109, %c0_110] : memref<32x32xbf16, #tpu.memory_space<vmem>>, vector<32x32xbf16>
    %165 = arith.truncf %160 : vector<8x32xf32> to vector<8x32xbf16>
    %cst_111 = arith.constant dense<0.000000e+00> : vector<8x32xf32>
    %166 = tpu.matmul %165, %164, %cst_111 {dimension_numbers = #tpu.dot_dimension_numbers<[1], [0], [0], [1], [0, 0, 1, 1], [], []>} : vector<8x32xbf16>, vector<32x32xbf16>, vector<8x32xf32> -> vector<8x32xf32>
    %167 = arith.addf %163, %166 : vector<8x32xf32>
    %c0_112 = arith.constant 0 : index
    %c0_113 = arith.constant 0 : index
    %168 = vector.load %arg37[%c0_112, %c0_113] : memref<1x32xf32, #tpu.memory_space<vmem>>, vector<1x32xf32>
    %169 = vector.broadcast %168 : vector<1x32xf32> to vector<8x32xf32>
    %170 = arith.addf %167, %169 : vector<8x32xf32>
    %c1 = arith.constant 1 : index
    %c0_114 = arith.constant 0 : index
    %c0_115 = arith.constant 0 : index
    %171 = vector.load %arg11[%c1, %c0_114, %c0_115] : memref<2x32x32xbf16, #tpu.memory_space<vmem>>, vector<1x32x32xbf16>
    %172 = vector.shape_cast %171 : vector<1x32x32xbf16> to vector<32x32xbf16>
    %173 = arith.truncf %37 : vector<1x32xf32> to vector<1x32xbf16>
    %cst_116 = arith.constant dense<0.000000e+00> : vector<1x32xf32>
    %174 = tpu.matmul %173, %172, %cst_116 {dimension_numbers = #tpu.dot_dimension_numbers<[1], [0], [0], [1], [0, 0, 1, 1], [], []>} : vector<1x32xbf16>, vector<32x32xbf16>, vector<1x32xf32> -> vector<1x32xf32>
    %c1_117 = arith.constant 1 : index
    %c0_118 = arith.constant 0 : index
    %c0_119 = arith.constant 0 : index
    %175 = vector.load %arg12[%c1_117, %c0_118, %c0_119] : memref<2x1x32xf32, #tpu.memory_space<vmem>>, vector<1x1x32xf32>
    %176 = vector.shape_cast %175 : vector<1x1x32xf32> to vector<1x32xf32>
    %177 = arith.addf %174, %176 : vector<1x32xf32>
    %178 = arith.mulf %177, %38 : vector<1x32xf32>
    %179 = arith.truncf %178 : vector<1x32xf32> to vector<1x32xbf16>
    %180 = arith.truncf %20 : vector<8x32xf32> to vector<8x32xbf16>
    %cst_120 = arith.constant dense<0.000000e+00> : vector<1x8xf32>
    %181 = tpu.matmul %179, %180, %cst_120 {dimension_numbers = #tpu.dot_dimension_numbers<[1], [1], [0], [0], [0, 0, 1, 0], [], []>} : vector<1x32xbf16>, vector<8x32xbf16>, vector<1x8xf32> -> vector<1x8xf32>
    %182 = vector.broadcast %39 : vector<1x1xf32> to vector<1x8xf32>
    %183 = arith.addf %181, %182 : vector<1x8xf32>
    %cst_121 = arith.constant 5.000000e-01 : f32
    %184 = vector.broadcast %cst_121 : f32 to vector<1x8xf32>
    %185 = arith.cmpf ogt, %24, %184 : vector<1x8xf32>
    %cst_122 = arith.constant -1.000000e+30 : f32
    %186 = vector.broadcast %cst_122 : f32 to vector<1x8xf32>
    %187 = arith.select %185, %186, %183 : vector<1x8xi1>, vector<1x8xf32>
    %cst_123 = arith.constant dense<0xFF800000> : vector<1xf32>
    %188 = vector.multi_reduction <maximumf>, %187, %cst_123 [1] : vector<1x8xf32> to vector<1xf32>
    %189 = vector.shape_cast %188 : vector<1xf32> to vector<1x1xf32>
    %190 = vector.broadcast %189 : vector<1x1xf32> to vector<1x8xf32>
    %191 = arith.subf %187, %190 : vector<1x8xf32>
    %192 = math.exp %191 : vector<1x8xf32>
    %cst_124 = arith.constant dense<0.000000e+00> : vector<1xf32>
    %193 = vector.multi_reduction <add>, %192, %cst_124 [1] : vector<1x8xf32> to vector<1xf32>
    %194 = vector.shape_cast %193 : vector<1xf32> to vector<1x1xf32>
    %195 = tpu.reciprocal %194 {approx = true} : vector<1x1xf32> -> vector<1x1xf32>
    %196 = vector.broadcast %195 : vector<1x1xf32> to vector<1x8xf32>
    %197 = arith.mulf %192, %196 : vector<1x8xf32>
    %198 = arith.truncf %197 : vector<1x8xf32> to vector<1x8xbf16>
    %199 = arith.truncf %20 : vector<8x32xf32> to vector<8x32xbf16>
    %cst_125 = arith.constant dense<0.000000e+00> : vector<1x32xf32>
    %200 = tpu.matmul %198, %199, %cst_125 {dimension_numbers = #tpu.dot_dimension_numbers<[1], [0], [0], [1], [0, 0, 1, 1], [], []>} : vector<1x8xbf16>, vector<8x32xbf16>, vector<1x32xf32> -> vector<1x32xf32>
    %c0_126 = arith.constant 0 : index
    %c0_127 = arith.constant 0 : index
    %201 = vector.load %arg17[%c0_126, %c0_127] : memref<32x32xbf16, #tpu.memory_space<vmem>>, vector<32x32xbf16>
    %202 = arith.truncf %170 : vector<8x32xf32> to vector<8x32xbf16>
    %cst_128 = arith.constant dense<0.000000e+00> : vector<8x32xf32>
    %203 = tpu.matmul %202, %201, %cst_128 {dimension_numbers = #tpu.dot_dimension_numbers<[1], [0], [0], [1], [0, 0, 1, 1], [], []>} : vector<8x32xbf16>, vector<32x32xbf16>, vector<8x32xf32> -> vector<8x32xf32>
    %c0_129 = arith.constant 0 : index
    %c0_130 = arith.constant 0 : index
    %204 = vector.load %arg18[%c0_129, %c0_130] : memref<1x32xf32, #tpu.memory_space<vmem>>, vector<1x32xf32>
    %205 = vector.broadcast %204 : vector<1x32xf32> to vector<8x32xf32>
    %206 = arith.addf %203, %205 : vector<8x32xf32>
    %207 = arith.mulf %45, %206 : vector<8x32xf32>
    %c0_131 = arith.constant 0 : index
    %c0_132 = arith.constant 0 : index
    %208 = vector.load %arg20[%c0_131, %c0_132] : memref<32x32xbf16, #tpu.memory_space<vmem>>, vector<32x32xbf16>
    %209 = arith.truncf %170 : vector<8x32xf32> to vector<8x32xbf16>
    %cst_133 = arith.constant dense<0.000000e+00> : vector<8x32xf32>
    %210 = tpu.matmul %209, %208, %cst_133 {dimension_numbers = #tpu.dot_dimension_numbers<[1], [0], [0], [1], [0, 0, 1, 1], [], []>} : vector<8x32xbf16>, vector<32x32xbf16>, vector<8x32xf32> -> vector<8x32xf32>
    %211 = arith.addf %51, %210 : vector<8x32xf32>
    %c0_134 = arith.constant 0 : index
    %c0_135 = arith.constant 0 : index
    %212 = vector.load %arg21[%c0_134, %c0_135] : memref<32x32xbf16, #tpu.memory_space<vmem>>, vector<32x32xbf16>
    %213 = arith.truncf %207 : vector<8x32xf32> to vector<8x32xbf16>
    %cst_136 = arith.constant dense<0.000000e+00> : vector<8x32xf32>
    %214 = tpu.matmul %213, %212, %cst_136 {dimension_numbers = #tpu.dot_dimension_numbers<[1], [0], [0], [1], [0, 0, 1, 1], [], []>} : vector<8x32xbf16>, vector<32x32xbf16>, vector<8x32xf32> -> vector<8x32xf32>
    %215 = arith.addf %211, %214 : vector<8x32xf32>
    %c0_137 = arith.constant 0 : index
    %c0_138 = arith.constant 0 : index
    %216 = vector.load %arg24[%c0_137, %c0_138] : memref<32x32xbf16, #tpu.memory_space<vmem>>, vector<32x32xbf16>
    %217 = arith.truncf %170 : vector<8x32xf32> to vector<8x32xbf16>
    %cst_139 = arith.constant dense<0.000000e+00> : vector<8x32xf32>
    %218 = tpu.matmul %217, %216, %cst_139 {dimension_numbers = #tpu.dot_dimension_numbers<[1], [0], [0], [1], [0, 0, 1, 1], [], []>} : vector<8x32xbf16>, vector<32x32xbf16>, vector<8x32xf32> -> vector<8x32xf32>
    %219 = arith.addf %57, %218 : vector<8x32xf32>
    %c0_140 = arith.constant 0 : index
    %c0_141 = arith.constant 0 : index
    %220 = vector.load %arg25[%c0_140, %c0_141] : memref<32x32xbf16, #tpu.memory_space<vmem>>, vector<32x32xbf16>
    %221 = arith.truncf %207 : vector<8x32xf32> to vector<8x32xbf16>
    %cst_142 = arith.constant dense<0.000000e+00> : vector<8x32xf32>
    %222 = tpu.matmul %221, %220, %cst_142 {dimension_numbers = #tpu.dot_dimension_numbers<[1], [0], [0], [1], [0, 0, 1, 1], [], []>} : vector<8x32xbf16>, vector<32x32xbf16>, vector<8x32xf32> -> vector<8x32xf32>
    %223 = arith.addf %219, %222 : vector<8x32xf32>
    %c0_143 = arith.constant 0 : index
    %c0_144 = arith.constant 0 : index
    %224 = vector.load %arg31[%c0_143, %c0_144] : memref<32x32xbf16, #tpu.memory_space<vmem>>, vector<32x32xbf16>
    %225 = arith.truncf %200 : vector<1x32xf32> to vector<1x32xbf16>
    %cst_145 = arith.constant dense<0.000000e+00> : vector<1x32xf32>
    %226 = tpu.matmul %225, %224, %cst_145 {dimension_numbers = #tpu.dot_dimension_numbers<[1], [0], [0], [1], [0, 0, 1, 1], [], []>} : vector<1x32xbf16>, vector<32x32xbf16>, vector<1x32xf32> -> vector<1x32xf32>
    %c0_146 = arith.constant 0 : index
    %c0_147 = arith.constant 0 : index
    %227 = vector.load %arg32[%c0_146, %c0_147] : memref<1x32xf32, #tpu.memory_space<vmem>>, vector<1x32xf32>
    %228 = arith.addf %226, %227 : vector<1x32xf32>
    %229 = vector.broadcast %228 : vector<1x32xf32> to vector<8x32xf32>
    %230 = arith.mulf %223, %229 : vector<8x32xf32>
    %c0_148 = arith.constant 0 : index
    %c0_149 = arith.constant 0 : index
    %231 = vector.load %arg28[%c0_148, %c0_149] : memref<32x32xbf16, #tpu.memory_space<vmem>>, vector<32x32xbf16>
    %232 = arith.truncf %170 : vector<8x32xf32> to vector<8x32xbf16>
    %cst_150 = arith.constant dense<0.000000e+00> : vector<8x32xf32>
    %233 = tpu.matmul %232, %231, %cst_150 {dimension_numbers = #tpu.dot_dimension_numbers<[1], [0], [0], [1], [0, 0, 1, 1], [], []>} : vector<8x32xbf16>, vector<32x32xbf16>, vector<8x32xf32> -> vector<8x32xf32>
    %234 = arith.addf %63, %233 : vector<8x32xf32>
    %c0_151 = arith.constant 0 : index
    %c0_152 = arith.constant 0 : index
    %235 = vector.load %arg29[%c0_151, %c0_152] : memref<32x32xbf16, #tpu.memory_space<vmem>>, vector<32x32xbf16>
    %236 = arith.truncf %207 : vector<8x32xf32> to vector<8x32xbf16>
    %cst_153 = arith.constant dense<0.000000e+00> : vector<8x32xf32>
    %237 = tpu.matmul %236, %235, %cst_153 {dimension_numbers = #tpu.dot_dimension_numbers<[1], [0], [0], [1], [0, 0, 1, 1], [], []>} : vector<8x32xbf16>, vector<32x32xbf16>, vector<8x32xf32> -> vector<8x32xf32>
    %238 = arith.addf %234, %237 : vector<8x32xf32>
    %c0_154 = arith.constant 0 : index
    %c0_155 = arith.constant 0 : index
    %239 = vector.load %arg33[%c0_154, %c0_155] : memref<32x32xbf16, #tpu.memory_space<vmem>>, vector<32x32xbf16>
    %240 = arith.truncf %200 : vector<1x32xf32> to vector<1x32xbf16>
    %cst_156 = arith.constant dense<0.000000e+00> : vector<1x32xf32>
    %241 = tpu.matmul %240, %239, %cst_156 {dimension_numbers = #tpu.dot_dimension_numbers<[1], [0], [0], [1], [0, 0, 1, 1], [], []>} : vector<1x32xbf16>, vector<32x32xbf16>, vector<1x32xf32> -> vector<1x32xf32>
    %c0_157 = arith.constant 0 : index
    %c0_158 = arith.constant 0 : index
    %242 = vector.load %arg34[%c0_157, %c0_158] : memref<1x32xf32, #tpu.memory_space<vmem>>, vector<1x32xf32>
    %243 = arith.addf %241, %242 : vector<1x32xf32>
    %244 = vector.broadcast %243 : vector<1x32xf32> to vector<8x32xf32>
    %245 = arith.mulf %238, %244 : vector<8x32xf32>
    %246 = arith.truncf %215 : vector<8x32xf32> to vector<8x32xbf16>
    %247 = arith.truncf %230 : vector<8x32xf32> to vector<8x32xbf16>
    %cst_159 = arith.constant dense<0.000000e+00> : vector<8x8xf32>
    %248 = tpu.matmul %246, %247, %cst_159 {dimension_numbers = #tpu.dot_dimension_numbers<[1], [1], [0], [0], [0, 0, 1, 0], [], []>} : vector<8x32xbf16>, vector<8x32xbf16>, vector<8x8xf32> -> vector<8x8xf32>
    %cst_160 = arith.constant 0.176776692 : f32
    %249 = vector.broadcast %cst_160 : f32 to vector<8x8xf32>
    %250 = arith.mulf %248, %249 : vector<8x8xf32>
    %cst_161 = arith.constant 5.000000e-01 : f32
    %251 = vector.broadcast %cst_161 : f32 to vector<8x8xf32>
    %252 = arith.cmpf ogt, %26, %251 : vector<8x8xf32>
    %cst_162 = arith.constant -1.000000e+30 : f32
    %253 = vector.broadcast %cst_162 : f32 to vector<8x8xf32>
    %254 = arith.select %252, %253, %250 : vector<8x8xi1>, vector<8x8xf32>
    %cst_163 = arith.constant dense<0xFF800000> : vector<8xf32>
    %255 = vector.multi_reduction <maximumf>, %254, %cst_163 [1] : vector<8x8xf32> to vector<8xf32>
    %256 = vector.shape_cast %255 : vector<8xf32> to vector<8x1xf32>
    %257 = vector.broadcast %256 : vector<8x1xf32> to vector<8x8xf32>
    %258 = arith.subf %254, %257 : vector<8x8xf32>
    %259 = math.exp %258 : vector<8x8xf32>
    %cst_164 = arith.constant dense<0.000000e+00> : vector<8xf32>
    %260 = vector.multi_reduction <add>, %259, %cst_164 [1] : vector<8x8xf32> to vector<8xf32>
    %261 = vector.shape_cast %260 : vector<8xf32> to vector<8x1xf32>
    %262 = tpu.reciprocal %261 {approx = true} : vector<8x1xf32> -> vector<8x1xf32>
    %263 = vector.broadcast %262 : vector<8x1xf32> to vector<8x8xf32>
    %264 = arith.mulf %259, %263 : vector<8x8xf32>
    %265 = arith.truncf %264 : vector<8x8xf32> to vector<8x8xbf16>
    %266 = arith.truncf %245 : vector<8x32xf32> to vector<8x32xbf16>
    %cst_165 = arith.constant dense<0.000000e+00> : vector<8x32xf32>
    %267 = tpu.matmul %265, %266, %cst_165 {dimension_numbers = #tpu.dot_dimension_numbers<[1], [0], [0], [1], [0, 0, 1, 1], [], []>} : vector<8x8xbf16>, vector<8x32xbf16>, vector<8x32xf32> -> vector<8x32xf32>
    %c0_166 = arith.constant 0 : index
    %c0_167 = arith.constant 0 : index
    %268 = vector.load %arg35[%c0_166, %c0_167] : memref<32x32xbf16, #tpu.memory_space<vmem>>, vector<32x32xbf16>
    %269 = arith.truncf %170 : vector<8x32xf32> to vector<8x32xbf16>
    %cst_168 = arith.constant dense<0.000000e+00> : vector<8x32xf32>
    %270 = tpu.matmul %269, %268, %cst_168 {dimension_numbers = #tpu.dot_dimension_numbers<[1], [0], [0], [1], [0, 0, 1, 1], [], []>} : vector<8x32xbf16>, vector<32x32xbf16>, vector<8x32xf32> -> vector<8x32xf32>
    %c0_169 = arith.constant 0 : index
    %c0_170 = arith.constant 0 : index
    %271 = vector.load %arg36[%c0_169, %c0_170] : memref<32x32xbf16, #tpu.memory_space<vmem>>, vector<32x32xbf16>
    %272 = arith.truncf %267 : vector<8x32xf32> to vector<8x32xbf16>
    %cst_171 = arith.constant dense<0.000000e+00> : vector<8x32xf32>
    %273 = tpu.matmul %272, %271, %cst_171 {dimension_numbers = #tpu.dot_dimension_numbers<[1], [0], [0], [1], [0, 0, 1, 1], [], []>} : vector<8x32xbf16>, vector<32x32xbf16>, vector<8x32xf32> -> vector<8x32xf32>
    %274 = arith.addf %270, %273 : vector<8x32xf32>
    %c0_172 = arith.constant 0 : index
    %c0_173 = arith.constant 0 : index
    %275 = vector.load %arg37[%c0_172, %c0_173] : memref<1x32xf32, #tpu.memory_space<vmem>>, vector<1x32xf32>
    %276 = vector.broadcast %275 : vector<1x32xf32> to vector<8x32xf32>
    %277 = arith.addf %274, %276 : vector<8x32xf32>
    %c0_174 = arith.constant 0 : index
    %c0_175 = arith.constant 0 : index
    %278 = vector.load %arg38[%c0_174, %c0_175] : memref<32x32xbf16, #tpu.memory_space<vmem>>, vector<32x32xbf16>
    %279 = arith.truncf %15 : vector<8x32xf32> to vector<8x32xbf16>
    %cst_176 = arith.constant dense<0.000000e+00> : vector<8x32xf32>
    %280 = tpu.matmul %279, %278, %cst_176 {dimension_numbers = #tpu.dot_dimension_numbers<[1], [0], [0], [1], [0, 0, 1, 1], [], []>} : vector<8x32xbf16>, vector<32x32xbf16>, vector<8x32xf32> -> vector<8x32xf32>
    %c0_177 = arith.constant 0 : index
    %c0_178 = arith.constant 0 : index
    %281 = vector.load %arg39[%c0_177, %c0_178] : memref<32x32xbf16, #tpu.memory_space<vmem>>, vector<32x32xbf16>
    %282 = arith.truncf %277 : vector<8x32xf32> to vector<8x32xbf16>
    %cst_179 = arith.constant dense<0.000000e+00> : vector<8x32xf32>
    %283 = tpu.matmul %282, %281, %cst_179 {dimension_numbers = #tpu.dot_dimension_numbers<[1], [0], [0], [1], [0, 0, 1, 1], [], []>} : vector<8x32xbf16>, vector<32x32xbf16>, vector<8x32xf32> -> vector<8x32xf32>
    %284 = arith.addf %280, %283 : vector<8x32xf32>
    %c0_180 = arith.constant 0 : index
    %c0_181 = arith.constant 0 : index
    %285 = vector.load %arg40[%c0_180, %c0_181] : memref<1x32xf32, #tpu.memory_space<vmem>>, vector<1x32xf32>
    %286 = vector.broadcast %285 : vector<1x32xf32> to vector<8x32xf32>
    %287 = arith.addf %284, %286 : vector<8x32xf32>
    %c0_182 = arith.constant 0 : index
    %c0_183 = arith.constant 0 : index
    %c0_184 = arith.constant 0 : index
    %288 = vector.load %arg41[%c0_182, %c0_183, %c0_184] : memref<1x8x32xf32, #tpu.memory_space<vmem>>, vector<1x8x32xf32>
    %289 = vector.shape_cast %288 : vector<1x8x32xf32> to vector<8x32xf32>
    %290 = vector.shape_cast %287 : vector<8x32xf32> to vector<1x8x32xf32>
    tpu.vector_store %arg41[%c0_182, %c0_183, %c0_184], %290 {strides = array<i32>} : memref<1x8x32xf32, #tpu.memory_space<vmem>>, vector<1x8x32xf32>,
    return
  }
  func.func @transform_0(%arg0: i32) -> (i32, i32, i32) {
    %c0_i32 = arith.constant 0 : i32
    %c0_i32_0 = arith.constant 0 : i32
    %c0_i32_1 = arith.constant 0 : i32
    return %arg0, %c0_i32, %c0_i32_0 : i32, i32, i32
  }
  func.func @transform_1(%arg0: i32) -> (i32, i32, i32) {
    %c0_i32 = arith.constant 0 : i32
    %c0_i32_0 = arith.constant 0 : i32
    %c0_i32_1 = arith.constant 0 : i32
    return %arg0, %c0_i32, %c0_i32_0 : i32, i32, i32
  }
  func.func @transform_2(%arg0: i32) -> (i32, i32, i32) {
    %c0_i32 = arith.constant 0 : i32
    %c0_i32_0 = arith.constant 0 : i32
    %c0_i32_1 = arith.constant 0 : i32
    return %arg0, %c0_i32, %c0_i32_0 : i32, i32, i32
  }
  func.func @transform_3(%arg0: i32) -> (i32, i32, i32) {
    %c0_i32 = arith.constant 0 : i32
    %c0_i32_0 = arith.constant 0 : i32
    %c0_i32_1 = arith.constant 0 : i32
    return %arg0, %c0_i32, %c0_i32_0 : i32, i32, i32
  }
  func.func @transform_4(%arg0: i32) -> (i32, i32, i32) {
    %c0_i32 = arith.constant 0 : i32
    %c0_i32_0 = arith.constant 0 : i32
    %c0_i32_1 = arith.constant 0 : i32
    return %arg0, %c0_i32, %c0_i32_0 : i32, i32, i32
  }
  func.func @transform_5(%arg0: i32) -> (i32, i32) {
    %c0_i32 = arith.constant 0 : i32
    %c0_i32_0 = arith.constant 0 : i32
    %c0_i32_1 = arith.constant 0 : i32
    return %c0_i32, %c0_i32_0 : i32, i32
  }
  func.func @transform_6(%arg0: i32) -> (i32, i32) {
    %c0_i32 = arith.constant 0 : i32
    %c0_i32_0 = arith.constant 0 : i32
    %c0_i32_1 = arith.constant 0 : i32
    return %c0_i32, %c0_i32_0 : i32, i32
  }
  func.func @transform_7(%arg0: i32) -> (i32, i32) {
    %c0_i32 = arith.constant 0 : i32
    %c0_i32_0 = arith.constant 0 : i32
    %c0_i32_1 = arith.constant 0 : i32
    return %c0_i32, %c0_i32_0 : i32, i32
  }
  func.func @transform_8(%arg0: i32) -> (i32, i32) {
    %c0_i32 = arith.constant 0 : i32
    %c0_i32_0 = arith.constant 0 : i32
    %c0_i32_1 = arith.constant 0 : i32
    return %c0_i32, %c0_i32_0 : i32, i32
  }
  func.func @transform_9(%arg0: i32) -> (i32, i32) {
    %c0_i32 = arith.constant 0 : i32
    %c0_i32_0 = arith.constant 0 : i32
    %c0_i32_1 = arith.constant 0 : i32
    return %c0_i32, %c0_i32_0 : i32, i32
  }
  func.func @transform_10(%arg0: i32) -> (i32, i32, i32) {
    %c0_i32 = arith.constant 0 : i32
    %c0_i32_0 = arith.constant 0 : i32
    %c0_i32_1 = arith.constant 0 : i32
    %c0_i32_2 = arith.constant 0 : i32
    return %c0_i32, %c0_i32_0, %c0_i32_1 : i32, i32, i32
  }
  func.func @transform_11(%arg0: i32) -> (i32, i32, i32) {
    %c0_i32 = arith.constant 0 : i32
    %c0_i32_0 = arith.constant 0 : i32
    %c0_i32_1 = arith.constant 0 : i32
    %c0_i32_2 = arith.constant 0 : i32
    return %c0_i32, %c0_i32_0, %c0_i32_1 : i32, i32, i32
  }
  func.func @transform_12(%arg0: i32) -> (i32, i32) {
    %c0_i32 = arith.constant 0 : i32
    %c0_i32_0 = arith.constant 0 : i32
    %c0_i32_1 = arith.constant 0 : i32
    return %c0_i32, %c0_i32_0 : i32, i32
  }
  func.func @transform_13(%arg0: i32) -> (i32, i32) {
    %c0_i32 = arith.constant 0 : i32
    %c0_i32_0 = arith.constant 0 : i32
    %c0_i32_1 = arith.constant 0 : i32
    return %c0_i32, %c0_i32_0 : i32, i32
  }
  func.func @transform_14(%arg0: i32) -> (i32, i32) {
    %c0_i32 = arith.constant 0 : i32
    %c0_i32_0 = arith.constant 0 : i32
    %c0_i32_1 = arith.constant 0 : i32
    return %c0_i32, %c0_i32_0 : i32, i32
  }
  func.func @transform_15(%arg0: i32) -> (i32, i32) {
    %c0_i32 = arith.constant 0 : i32
    %c0_i32_0 = arith.constant 0 : i32
    %c0_i32_1 = arith.constant 0 : i32
    return %c0_i32, %c0_i32_0 : i32, i32
  }
  func.func @transform_16(%arg0: i32) -> (i32, i32) {
    %c0_i32 = arith.constant 0 : i32
    %c0_i32_0 = arith.constant 0 : i32
    %c0_i32_1 = arith.constant 0 : i32
    return %c0_i32, %c0_i32_0 : i32, i32
  }
  func.func @transform_17(%arg0: i32) -> (i32, i32) {
    %c0_i32 = arith.constant 0 : i32
    %c0_i32_0 = arith.constant 0 : i32
    %c0_i32_1 = arith.constant 0 : i32
    return %c0_i32, %c0_i32_0 : i32, i32
  }
  func.func @transform_18(%arg0: i32) -> (i32, i32) {
    %c0_i32 = arith.constant 0 : i32
    %c0_i32_0 = arith.constant 0 : i32
    %c0_i32_1 = arith.constant 0 : i32
    return %c0_i32, %c0_i32_0 : i32, i32
  }
  func.func @transform_19(%arg0: i32) -> (i32, i32) {
    %c0_i32 = arith.constant 0 : i32
    %c0_i32_0 = arith.constant 0 : i32
    %c0_i32_1 = arith.constant 0 : i32
    return %c0_i32, %c0_i32_0 : i32, i32
  }
  func.func @transform_20(%arg0: i32) -> (i32, i32) {
    %c0_i32 = arith.constant 0 : i32
    %c0_i32_0 = arith.constant 0 : i32
    %c0_i32_1 = arith.constant 0 : i32
    return %c0_i32, %c0_i32_0 : i32, i32
  }
  func.func @transform_21(%arg0: i32) -> (i32, i32) {
    %c0_i32 = arith.constant 0 : i32
    %c0_i32_0 = arith.constant 0 : i32
    %c0_i32_1 = arith.constant 0 : i32
    return %c0_i32, %c0_i32_0 : i32, i32
  }
  func.func @transform_22(%arg0: i32) -> (i32, i32) {
    %c0_i32 = arith.constant 0 : i32
    %c0_i32_0 = arith.constant 0 : i32
    %c0_i32_1 = arith.constant 0 : i32
    return %c0_i32, %c0_i32_0 : i32, i32
  }
  func.func @transform_23(%arg0: i32) -> (i32, i32) {
    %c0_i32 = arith.constant 0 : i32
    %c0_i32_0 = arith.constant 0 : i32
    %c0_i32_1 = arith.constant 0 : i32
    return %c0_i32, %c0_i32_0 : i32, i32
  }
  func.func @transform_24(%arg0: i32) -> (i32, i32) {
    %c0_i32 = arith.constant 0 : i32
    %c0_i32_0 = arith.constant 0 : i32
    %c0_i32_1 = arith.constant 0 : i32
    return %c0_i32, %c0_i32_0 : i32, i32
  }
  func.func @transform_25(%arg0: i32) -> (i32, i32) {
    %c0_i32 = arith.constant 0 : i32
    %c0_i32_0 = arith.constant 0 : i32
    %c0_i32_1 = arith.constant 0 : i32
    return %c0_i32, %c0_i32_0 : i32, i32
  }
  func.func @transform_26(%arg0: i32) -> (i32, i32) {
    %c0_i32 = arith.constant 0 : i32
    %c0_i32_0 = arith.constant 0 : i32
    %c0_i32_1 = arith.constant 0 : i32
    return %c0_i32, %c0_i32_0 : i32, i32
  }
  func.func @transform_27(%arg0: i32) -> (i32, i32) {
    %c0_i32 = arith.constant 0 : i32
    %c0_i32_0 = arith.constant 0 : i32
    %c0_i32_1 = arith.constant 0 : i32
    return %c0_i32, %c0_i32_0 : i32, i32
  }
  func.func @transform_28(%arg0: i32) -> (i32, i32) {
    %c0_i32 = arith.constant 0 : i32
    %c0_i32_0 = arith.constant 0 : i32
    %c0_i32_1 = arith.constant 0 : i32
    return %c0_i32, %c0_i32_0 : i32, i32
  }
  func.func @transform_29(%arg0: i32) -> (i32, i32) {
    %c0_i32 = arith.constant 0 : i32
    %c0_i32_0 = arith.constant 0 : i32
    %c0_i32_1 = arith.constant 0 : i32
    return %c0_i32, %c0_i32_0 : i32, i32
  }
  func.func @transform_30(%arg0: i32) -> (i32, i32) {
    %c0_i32 = arith.constant 0 : i32
    %c0_i32_0 = arith.constant 0 : i32
    %c0_i32_1 = arith.constant 0 : i32
    return %c0_i32, %c0_i32_0 : i32, i32
  }
  func.func @transform_31(%arg0: i32) -> (i32, i32) {
    %c0_i32 = arith.constant 0 : i32
    %c0_i32_0 = arith.constant 0 : i32
    %c0_i32_1 = arith.constant 0 : i32
    return %c0_i32, %c0_i32_0 : i32, i32
  }
  func.func @transform_32(%arg0: i32) -> (i32, i32) {
    %c0_i32 = arith.constant 0 : i32
    %c0_i32_0 = arith.constant 0 : i32
    %c0_i32_1 = arith.constant 0 : i32
    return %c0_i32, %c0_i32_0 : i32, i32
  }
  func.func @transform_33(%arg0: i32) -> (i32, i32) {
    %c0_i32 = arith.constant 0 : i32
    %c0_i32_0 = arith.constant 0 : i32
    %c0_i32_1 = arith.constant 0 : i32
    return %c0_i32, %c0_i32_0 : i32, i32
  }
  func.func @transform_34(%arg0: i32) -> (i32, i32) {
    %c0_i32 = arith.constant 0 : i32
    %c0_i32_0 = arith.constant 0 : i32
    %c0_i32_1 = arith.constant 0 : i32
    return %c0_i32, %c0_i32_0 : i32, i32
  }
  func.func @transform_35(%arg0: i32) -> (i32, i32) {
    %c0_i32 = arith.constant 0 : i32
    %c0_i32_0 = arith.constant 0 : i32
    %c0_i32_1 = arith.constant 0 : i32
    return %c0_i32, %c0_i32_0 : i32, i32
  }
  func.func @transform_36(%arg0: i32) -> (i32, i32) {
    %c0_i32 = arith.constant 0 : i32
    %c0_i32_0 = arith.constant 0 : i32
    %c0_i32_1 = arith.constant 0 : i32
    return %c0_i32, %c0_i32_0 : i32, i32
  }
  func.func @transform_37(%arg0: i32) -> (i32, i32) {
    %c0_i32 = arith.constant 0 : i32
    %c0_i32_0 = arith.constant 0 : i32
    %c0_i32_1 = arith.constant 0 : i32
    return %c0_i32, %c0_i32_0 : i32, i32
  }
  func.func @transform_38(%arg0: i32) -> (i32, i32) {
    %c0_i32 = arith.constant 0 : i32
    %c0_i32_0 = arith.constant 0 : i32
    %c0_i32_1 = arith.constant 0 : i32
    return %c0_i32, %c0_i32_0 : i32, i32
  }
  func.func @transform_39(%arg0: i32) -> (i32, i32) {
    %c0_i32 = arith.constant 0 : i32
    %c0_i32_0 = arith.constant 0 : i32
    %c0_i32_1 = arith.constant 0 : i32
    return %c0_i32, %c0_i32_0 : i32, i32
  }
  func.func @transform_40(%arg0: i32) -> (i32, i32, i32) {
    %c0_i32 = arith.constant 0 : i32
    %c0_i32_0 = arith.constant 0 : i32
    %c0_i32_1 = arith.constant 0 : i32
    return %arg0, %c0_i32, %c0_i32_0 : i32, i32, i32
  }
}

</mosaic_0001>

<llo_original>
// kernel: tpu_custom_call.1
$region0: #{tpu_custom_call.1}
  #allocation0 [shape = 'u32[]', space=smem, size = 0x4, offset = 0x4, fixed_abs, tag = 'smem constant byte address 0x4 - core index']
  #allocation1 [shape = 'u32[144,128]{1,0:T(1,128)}', space=vmem, size = 0x12000, scoped, tag = 'internal scratch']
  #allocation2 [shape = 'f32[1,1]{1,0:T(1,128)S(1)}', space=vmem, size = 0x200, scoped, tag = 'scoped memory for tpu_custom_call.1']
  %s0 = inlined_call_operand.smem [shape: u32[41], index: -1, kind: input, shape index: {}]
  %s1 = sld [smem:[%s0]]
  %s2 = scalar_lea.smem %s0, 1
  %s3 = sld [smem:[%s2]]
  %s4 = scalar_lea.smem %s0, 2
  %s5 = sld [smem:[%s4]]
  %s6 = scalar_lea.smem %s0, 3
  %s7 = sld [smem:[%s6]]
  %s8 = scalar_lea.smem %s0, 4
  %s9 = sld [smem:[%s8]]
  %s10 = scalar_lea.smem %s0, 5
  %s11 = sld [smem:[%s10]]
  %s12 = scalar_lea.smem %s0, 6
  %s13 = sld [smem:[%s12]]
  %s14 = scalar_lea.smem %s0, 7
  %s15 = sld [smem:[%s14]]
  %s16 = scalar_lea.smem %s0, 8
  %s17 = sld [smem:[%s16]]
  %s18 = scalar_lea.smem %s0, 9
  %s19 = sld [smem:[%s18]]
  %s20 = scalar_lea.smem %s0, 10
  %s21 = sld [smem:[%s20]]
  %s22 = scalar_lea.smem %s0, 11
  %s23 = sld [smem:[%s22]]
  %s24 = scalar_lea.smem %s0, 12
  %s25 = sld [smem:[%s24]]
  %s26 = scalar_lea.smem %s0, 13
  %s27 = sld [smem:[%s26]]
  %s28 = scalar_lea.smem %s0, 14
  %s29 = sld [smem:[%s28]]
  %s30 = scalar_lea.smem %s0, 15
  %s31 = sld [smem:[%s30]]
  %s32 = scalar_lea.smem %s0, 16
  %s33 = sld [smem:[%s32]]
  %s34 = scalar_lea.smem %s0, 17
  %s35 = sld [smem:[%s34]]
  %s36 = scalar_lea.smem %s0, 18
  %s37 = sld [smem:[%s36]]
  %s38 = scalar_lea.smem %s0, 19
  %s39 = sld [smem:[%s38]]
  %s40 = scalar_lea.smem %s0, 20
  %s41 = sld [smem:[%s40]]
  %s42 = scalar_lea.smem %s0, 21
  %s43 = sld [smem:[%s42]]
  %s44 = scalar_lea.smem %s0, 22
  %s45 = sld [smem:[%s44]]
  %s46 = scalar_lea.smem %s0, 23
  %s47 = sld [smem:[%s46]]
  %s48 = scalar_lea.smem %s0, 24
  %s49 = sld [smem:[%s48]]
  %s50 = scalar_lea.smem %s0, 25
  %s51 = sld [smem:[%s50]]
  %s52 = scalar_lea.smem %s0, 26
  %s53 = sld [smem:[%s52]]
  %s54 = scalar_lea.smem %s0, 27
  %s55 = sld [smem:[%s54]]
  %s56 = scalar_lea.smem %s0, 28
  %s57 = sld [smem:[%s56]]
  %s58 = scalar_lea.smem %s0, 29
  %s59 = sld [smem:[%s58]]
  %s60 = scalar_lea.smem %s0, 30
  %s61 = sld [smem:[%s60]]
  %s62 = scalar_lea.smem %s0, 31
  %s63 = sld [smem:[%s62]]
  %s64 = scalar_lea.smem %s0, 32
  %s65 = sld [smem:[%s64]]
  %s66 = scalar_lea.smem %s0, 33
  %s67 = sld [smem:[%s66]]
  %s68 = scalar_lea.smem %s0, 34
  %s69 = sld [smem:[%s68]]
  %s70 = scalar_lea.smem %s0, 35
  %s71 = sld [smem:[%s70]]
  %s72 = scalar_lea.smem %s0, 36
  %s73 = sld [smem:[%s72]]
  %s74 = scalar_lea.smem %s0, 37
  %s75 = sld [smem:[%s74]]
  %s76 = scalar_lea.smem %s0, 38
  %s77 = sld [smem:[%s76]]
  %s78 = scalar_lea.smem %s0, 39
  %s79 = sld [smem:[%s78]]
  %s80 = scalar_lea.smem %s0, 40
  %s81 = sld [smem:[%s80]]
  %s82 = sld [smem:[#allocation0]]
  $region313: #{tpu_custom_call.1} parent=0
    _
  %s84 = ssub.s32 1, %s82
  %s85 = scalar_select 0, %s84, %s82
  %v86 = vstv %s27
  %87 = vst [vmem:[#allocation2] sm:$0x1] %v86
  $region1: #{tpu_custom_call.1} parent=0
    #allocation3 [shape = 'u8[8192]{0}', space=vmem, size = 0x2000, scoped, tag = 'input window, operand 0']
    #allocation4 [shape = 's32[2]{0}', space=sflag, size = 0x8, scoped, tag = 'scoped memory for tpu_custom_call.1']
    #allocation5 [shape = 's32[2]{0}', space=sflag, size = 0x8, scoped, tag = 'scoped memory for tpu_custom_call.1']
    #allocation6 [shape = 'u8[1024]{0}', space=vmem, size = 0x400, scoped, tag = 'input window, operand 1']
    #allocation7 [shape = 's32[2]{0}', space=sflag, size = 0x8, scoped, tag = 'scoped memory for tpu_custom_call.1']
    #allocation8 [shape = 'u8[8192]{0}', space=vmem, size = 0x2000, scoped, tag = 'input window, operand 2']
    #allocation9 [shape = 'u8[1024]{0}', space=vmem, size = 0x400, scoped, tag = 'input window, operand 3']
    #allocation10 [shape = 's32[2]{0}', space=sflag, size = 0x8, scoped, tag = 'scoped memory for tpu_custom_call.1']
    #allocation11 [shape = 'u8[8192]{0}', space=vmem, size = 0x2000, scoped, tag = 'input window, operand 4']
    #allocation12 [shape = 'u8[4096]{0}', space=vmem, size = 0x1000, scoped, tag = 'input window, operand 5, single buffered']
    #allocation13 [shape = 's32[1]{0}', space=sflag, size = 0x4, scoped, tag = 'scoped memory for tpu_custom_call.1']
    #allocation14 [shape = 'u8[512]{0}', space=vmem, size = 0x400, scoped, tag = 'input window, operand 6, single buffered']
    #allocation15 [shape = 'u8[512]{0}', space=vmem, size = 0x400, scoped, tag = 'input window, operand 7, single buffered']
    #allocation16 [shape = 's32[1]{0}', space=sflag, size = 0x4, scoped, tag = 'scoped memory for tpu_custom_call.1']
    #allocation17 [shape = 'u8[8192]{0}', space=vmem, size = 0x2000, scoped, tag = 'input window, operand 8, single buffered']
    #allocation18 [shape = 'u8[512]{0}', space=vmem, size = 0x400, scoped, tag = 'input window, operand 9, single buffered']
    #allocation19 [shape = 's32[1]{0}', space=sflag, size = 0x4, scoped, tag = 'scoped memory for tpu_custom_call.1']
    #allocation20 [shape = 'u8[1024]{0}', space=vmem, size = 0x400, scoped, tag = 'input window, operand 11, single buffered']
    #allocation21 [shape = 'u8[512]{0}', space=vmem, size = 0x400, scoped, tag = 'input window, operand 12, single buffered']
    #allocation22 [shape = 's32[1]{0}', space=sflag, size = 0x4, scoped, tag = 'scoped memory for tpu_custom_call.1']
    #allocation23 [shape = 'u8[512]{0}', space=vmem, size = 0x400, scoped, tag = 'input window, operand 15, single buffered']
    #allocation24 [shape = 'u8[8192]{0}', space=vmem, size = 0x2000, scoped, tag = 'input window, operand 16, single buffered']
    #allocation25 [shape = 's32[1]{0}', space=sflag, size = 0x4, scoped, tag = 'scoped memory for tpu_custom_call.1']
    #allocation26 [shape = 'u8[512]{0}', space=vmem, size = 0x400, scoped, tag = 'input window, operand 17, single buffered']
    #allocation27 [shape = 'u8[8192]{0}', space=vmem, size = 0x2000, scoped, tag = 'input window, operand 19, single buffered']
    #allocation28 [shape = 's32[1]{0}', space=sflag, size = 0x4, scoped, tag = 'scoped memory for tpu_custom_call.1']
    #allocation29 [shape = 'u8[8192]{0}', space=vmem, size = 0x2000, scoped, tag = 'input window, operand 20, single buffered']
    #allocation30 [shape = 'u8[512]{0}', space=vmem, size = 0x400, scoped, tag = 'input window, operand 21, single buffered']
    #allocation31 [shape = 's32[1]{0}', space=sflag, size = 0x4, scoped, tag = 'scoped memory for tpu_custom_call.1']
    #allocation32 [shape = 'u8[8192]{0}', space=vmem, size = 0x2000, scoped, tag = 'input window, operand 23, single buffered']
    #allocation33 [shape = 'u8[8192]{0}', space=vmem, size = 0x2000, scoped, tag = 'input window, operand 24, single buffered']
    #allocation34 [shape = 's32[1]{0}', space=sflag, size = 0x4, scoped, tag = 'scoped memory for tpu_custom_call.1']
    #allocation35 [shape = 'u8[512]{0}', space=vmem, size = 0x400, scoped, tag = 'input window, operand 25, single buffered']
    #allocation36 [shape = 'u8[8192]{0}', space=vmem, size = 0x2000, scoped, tag = 'input window, operand 27, single buffered']
    #allocation37 [shape = 's32[1]{0}', space=sflag, size = 0x4, scoped, tag = 'scoped memory for tpu_custom_call.1']
    #allocation38 [shape = 'u8[8192]{0}', space=vmem, size = 0x2000, scoped, tag = 'input window, operand 28, single buffered']
    #allocation39 [shape = 'u8[512]{0}', space=vmem, size = 0x400, scoped, tag = 'input window, operand 29, single buffered']
    #allocation40 [shape = 's32[1]{0}', space=sflag, size = 0x4, scoped, tag = 'scoped memory for tpu_custom_call.1']
    #allocation41 [shape = 'u8[512]{0}', space=vmem, size = 0x400, scoped, tag = 'input window, operand 31, single buffered']
    #allocation42 [shape = 'u8[8192]{0}', space=vmem, size = 0x2000, scoped, tag = 'input window, operand 32, single buffered']
    #allocation43 [shape = 's32[1]{0}', space=sflag, size = 0x4, scoped, tag = 'scoped memory for tpu_custom_call.1']
    #allocation44 [shape = 'u8[512]{0}', space=vmem, size = 0x400, scoped, tag = 'input window, operand 33, single buffered']
    #allocation45 [shape = 'u8[8192]{0}', space=vmem, size = 0x2000, scoped, tag = 'input window, operand 35, single buffered']
    #allocation46 [shape = 's32[1]{0}', space=sflag, size = 0x4, scoped, tag = 'scoped memory for tpu_custom_call.1']
    #allocation47 [shape = 'u8[8192]{0}', space=vmem, size = 0x2000, scoped, tag = 'input window, operand 37, single buffered']
    #allocation48 [shape = 'u8[8192]{0}', space=vmem, size = 0x2000, scoped, tag = 'input window, operand 38, single buffered']
    #allocation49 [shape = 's32[1]{0}', space=sflag, size = 0x4, scoped, tag = 'scoped memory for tpu_custom_call.1']
    #allocation50 [shape = 'u8[8192]{0}', space=vmem, size = 0x2000, scoped, tag = 'output window, operand 0']
    %88 = vsyncpa [#allocation4], 0
    %s89 = scalar_lea.sflag [#allocation4], 1
    %90 = vsyncpa %s89, 0
    %91 = vsyncpa [#allocation7], 0
    %s92 = scalar_lea.sflag [#allocation7], 1
    %93 = vsyncpa %s92, 0
    %94 = vsyncpa [#allocation10], 0
    %s95 = scalar_lea.sflag [#allocation10], 1
    %96 = vsyncpa %s95, 0
    %97 = vsyncpa [#allocation13], 0
    %98 = vsyncpa [#allocation16], 0
    %99 = vsyncpa [#allocation19], 0
    %100 = vsyncpa [#allocation22], 0
    %101 = vsyncpa [#allocation25], 0
    %102 = vsyncpa [#allocation28], 0
    %103 = vsyncpa [#allocation31], 0
    %104 = vsyncpa [#allocation34], 0
    %105 = vsyncpa [#allocation37], 0
    %106 = vsyncpa [#allocation40], 0
    %107 = vsyncpa [#allocation43], 0
    %108 = vsyncpa [#allocation46], 0
    %109 = vsyncpa [#allocation49], 0
    %110 = vsyncpa [#allocation5], 0
    %s111 = scalar_lea.sflag [#allocation5], 1
    %112 = vsyncpa %s111, 0
    loop: start=0, step=1, limit=4
    $region2: #{tpu_custom_call.1} parent=1 // loop_pre_header
      _
    $region3: #{tpu_custom_call.1} parent=1 // loop_header
      %s114 = sphi 0, %s118
      %p115 = scmp.ge.s32.totalorder %s114, 4
      %s124 = sphi 0, %s126
      %s127 = sphi 0, %s124
      %s128 = sphi 0, %s127
      %s144 = sphi 0, %s128
      %s150 = sphi 0, %s152
      %s153 = sphi 0, %s150
      %s154 = sphi 0, %s153
      %s170 = sphi 0, %s154
      %s176 = sphi 0, %s178
      %s179 = sphi 0, %s176
      %s180 = sphi 0, %s179
      %s196 = sphi 0, %s180
      %s202 = sphi 0, %s204
      %s205 = sphi 0, %s202
      %s206 = sphi 0, %s205
      %s222 = sphi 0, %s206
      %s228 = sphi 0, %s230
      %s231 = sphi 0, %s228
      %s232 = sphi 0, %s231
      %s248 = sphi 0, %s232
      %s252 = sphi 0, %s252
      %s254 = sphi 0, %s252
      %s255 = sphi 0, %s254
      %s269 = sphi 0, %s255
      %s273 = sphi 0, %s273
      %s275 = sphi 0, %s273
      %s276 = sphi 0, %s275
      %s290 = sphi 0, %s276
      %s294 = sphi 0, %s294
      %s296 = sphi 0, %s294
      %s297 = sphi 0, %s296
      %s311 = sphi 0, %s297
      %s315 = sphi 0, %s315
      %s317 = sphi 0, %s315
      %s318 = sphi 0, %s317
      %s332 = sphi 0, %s318
      %s336 = sphi 0, %s336
      %s338 = sphi 0, %s336
      %s339 = sphi 0, %s338
      %s353 = sphi 0, %s339
      %s357 = sphi 0, %s357
      %s359 = sphi 0, %s357
      %s360 = sphi 0, %s359
      %s374 = sphi 0, %s360
      %s378 = sphi 0, %s378
      %s380 = sphi 0, %s378
      %s381 = sphi 0, %s380
      %s395 = sphi 0, %s381
      %s399 = sphi 0, %s399
      %s401 = sphi 0, %s399
      %s402 = sphi 0, %s401
      %s416 = sphi 0, %s402
      %s420 = sphi 0, %s420
      %s422 = sphi 0, %s420
      %s423 = sphi 0, %s422
      %s437 = sphi 0, %s423
      %s441 = sphi 0, %s441
      %s443 = sphi 0, %s441
      %s444 = sphi 0, %s443
      %s458 = sphi 0, %s444
      %s462 = sphi 0, %s462
      %s464 = sphi 0, %s462
      %s465 = sphi 0, %s464
      %s479 = sphi 0, %s465
      %s483 = sphi 0, %s483
      %s485 = sphi 0, %s483
      %s486 = sphi 0, %s485
      %s500 = sphi 0, %s486
      %s504 = sphi 0, %s504
      %s506 = sphi 0, %s504
      %s507 = sphi 0, %s506
      %s521 = sphi 0, %s507
      %s525 = sphi 0, %s525
      %s527 = sphi 0, %s525
      %s528 = sphi 0, %s527
      %s542 = sphi 0, %s528
      %s546 = sphi 0, %s546
      %s548 = sphi 0, %s546
      %s549 = sphi 0, %s548
      %s563 = sphi 0, %s549
      %s567 = sphi 0, %s567
      %s569 = sphi 0, %s567
      %s570 = sphi 0, %s569
      %s584 = sphi 0, %s570
      %s588 = sphi 0, %s588
      %s590 = sphi 0, %s588
      %s591 = sphi 0, %s590
      %s605 = sphi 0, %s591
      %s609 = sphi 0, %s609
      %s611 = sphi 0, %s609
      %s612 = sphi 0, %s611
      %s626 = sphi 0, %s612
      %s630 = sphi 0, %s630
      %s632 = sphi 0, %s630
      %s633 = sphi 0, %s632
      %s647 = sphi 0, %s633
      %s651 = sphi 0, %s651
      %s653 = sphi 0, %s651
      %s654 = sphi 0, %s653
      %s668 = sphi 0, %s654
      %s672 = sphi 0, %s672
      %s674 = sphi 0, %s672
      %s675 = sphi 0, %s674
      %s689 = sphi 0, %s675
      %s693 = sphi 0, %s693
      %s695 = sphi 0, %s693
      %s696 = sphi 0, %s695
      %s710 = sphi 0, %s696
      %s714 = sphi 0, %s714
      %s716 = sphi 0, %s714
      %s717 = sphi 0, %s716
      %s731 = sphi 0, %s717
      %s735 = sphi 0, %s735
      %s737 = sphi 0, %s735
      %s738 = sphi 0, %s737
      %s752 = sphi 0, %s738
      %s756 = sphi 0, %s756
      %s758 = sphi 0, %s756
      %s759 = sphi 0, %s758
      %s773 = sphi 0, %s759
      %s777 = sphi 0, %s777
      %s779 = sphi 0, %s777
      %s780 = sphi 0, %s779
      %s794 = sphi 0, %s780
      %s798 = sphi 0, %s798
      %s800 = sphi 0, %s798
      %s801 = sphi 0, %s800
      %s815 = sphi 0, %s801
      %s819 = sphi 0, %s819
      %s821 = sphi 0, %s819
      %s822 = sphi 0, %s821
      %s836 = sphi 0, %s822
      %s840 = sphi 0, %s840
      %s842 = sphi 0, %s840
      %s843 = sphi 0, %s842
      %s857 = sphi 0, %s843
      %s861 = sphi 0, %s861
      %s863 = sphi 0, %s861
      %s864 = sphi 0, %s863
      %s878 = sphi 0, %s864
      %s882 = sphi 0, %s882
      %s884 = sphi 0, %s882
      %s885 = sphi 0, %s884
      %s899 = sphi 0, %s885
      %s903 = sphi 0, %s903
      %s905 = sphi 0, %s903
      %s906 = sphi 0, %s905
      %s920 = sphi 0, %s906
      %s924 = sphi 0, %s924
      %s926 = sphi 0, %s924
      %s927 = sphi 0, %s926
      %s941 = sphi 0, %s927
      %s945 = sphi 0, %s945
      %s947 = sphi 0, %s945
      %s948 = sphi 0, %s947
      %s962 = sphi 0, %s948
      %s966 = sphi 0, %s966
      %s968 = sphi 0, %s966
      %s969 = sphi 0, %s968
      %s983 = sphi 0, %s969
      %s989 = sphi 0, %s991
      %s992 = sphi 0, %s989
      %s993 = sphi 0, %s992
      %s1009 = sphi 0, %s993
    $region4: #{tpu_custom_call.1} parent=1 // loop_header_branch
      %117 = sbr.rel (%p115) target = $region8
    $region5: #{tpu_custom_call.1} parent=1 // loop_body
      %s119 = ssub.s32 %s114, 1
      %s120 = ssub.s32 %s114, 2
      %s121 = sadd.s32 %s114, 1
      %s122 = ssub.s32 %s114, %s121
      %p123 = scmp.eq.s32.totalorder %s122, 0
      %s125 = sadd.s32 %s124, 1
      %s126 = scalar_select %p123, %s124, %s125
      %p129 = pneg %p123
      %p130 = scmp.eq.s32.totalorder %s114, 1
      %p131 = por %p129, %p130
      %p132 = scmp.ne.s32.totalorder %s124, %s127
      %p133 = scmp.eq.s32.totalorder %s114, 0
      %p134 = por %p132, %p133
      %p135 = scmp.ne.s32.totalorder %s124, %s127
      %p136 = scmp.eq.s32.totalorder %s119, 1
      %p137 = por %p135, %p136
      %p138 = scmp.ne.s32.totalorder %s127, %s128
      %p139 = scmp.eq.s32.totalorder %s119, 0
      %p140 = por %p138, %p139
      %p141 = scmp.ne.s32.totalorder %s127, %s128
      %p142 = scmp.eq.s32.totalorder %s120, 1
      %p143 = por %p141, %p142
      %p145 = scmp.ne.s32.totalorder %s128, %s144
      %p146 = scmp.eq.s32.totalorder %s120, 0
      %p147 = por %p145, %p146
      %s148 = ssub.s32 %s114, %s121
      %p149 = scmp.eq.s32.totalorder %s148, 0
      %s151 = sadd.s32 %s150, 1
      %s152 = scalar_select %p149, %s150, %s151
      %p155 = pneg %p149
      %p156 = scmp.eq.s32.totalorder %s114, 1
      %p157 = por %p155, %p156
      %p158 = scmp.ne.s32.totalorder %s150, %s153
      %p159 = scmp.eq.s32.totalorder %s114, 0
      %p160 = por %p158, %p159
      %p161 = scmp.ne.s32.totalorder %s150, %s153
      %p162 = scmp.eq.s32.totalorder %s119, 1
      %p163 = por %p161, %p162
      %p164 = scmp.ne.s32.totalorder %s153, %s154
      %p165 = scmp.eq.s32.totalorder %s119, 0
      %p166 = por %p164, %p165
      %p167 = scmp.ne.s32.totalorder %s153, %s154
      %p168 = scmp.eq.s32.totalorder %s120, 1
      %p169 = por %p167, %p168
      %p171 = scmp.ne.s32.totalorder %s154, %s170
      %p172 = scmp.eq.s32.totalorder %s120, 0
      %p173 = por %p171, %p172
      %s174 = ssub.s32 %s114, %s121
      %p175 = scmp.eq.s32.totalorder %s174, 0
      %s177 = sadd.s32 %s176, 1
      %s178 = scalar_select %p175, %s176, %s177
      %p181 = pneg %p175
      %p182 = scmp.eq.s32.totalorder %s114, 1
      %p183 = por %p181, %p182
      %p184 = scmp.ne.s32.totalorder %s176, %s179
      %p185 = scmp.eq.s32.totalorder %s114, 0
      %p186 = por %p184, %p185
      %p187 = scmp.ne.s32.totalorder %s176, %s179
      %p188 = scmp.eq.s32.totalorder %s119, 1
      %p189 = por %p187, %p188
      %p190 = scmp.ne.s32.totalorder %s179, %s180
      %p191 = scmp.eq.s32.totalorder %s119, 0
      %p192 = por %p190, %p191
      %p193 = scmp.ne.s32.totalorder %s179, %s180
      %p194 = scmp.eq.s32.totalorder %s120, 1
      %p195 = por %p193, %p194
      %p197 = scmp.ne.s32.totalorder %s180, %s196
      %p198 = scmp.eq.s32.totalorder %s120, 0
      %p199 = por %p197, %p198
      %s200 = ssub.s32 %s114, %s121
      %p201 = scmp.eq.s32.totalorder %s200, 0
      %s203 = sadd.s32 %s202, 1
      %s204 = scalar_select %p201, %s202, %s203
      %p207 = pneg %p201
      %p208 = scmp.eq.s32.totalorder %s114, 1
      %p209 = por %p207, %p208
      %p210 = scmp.ne.s32.totalorder %s202, %s205
      %p211 = scmp.eq.s32.totalorder %s114, 0
      %p212 = por %p210, %p211
      %p213 = scmp.ne.s32.totalorder %s202, %s205
      %p214 = scmp.eq.s32.totalorder %s119, 1
      %p215 = por %p213, %p214
      %p216 = scmp.ne.s32.totalorder %s205, %s206
      %p217 = scmp.eq.s32.totalorder %s119, 0
      %p218 = por %p216, %p217
      %p219 = scmp.ne.s32.totalorder %s205, %s206
      %p220 = scmp.eq.s32.totalorder %s120, 1
      %p221 = por %p219, %p220
      %p223 = scmp.ne.s32.totalorder %s206, %s222
      %p224 = scmp.eq.s32.totalorder %s120, 0
      %p225 = por %p223, %p224
      %s226 = ssub.s32 %s114, %s121
      %p227 = scmp.eq.s32.totalorder %s226, 0
      %s229 = sadd.s32 %s228, 1
      %s230 = scalar_select %p227, %s228, %s229
      %p233 = pneg %p227
      %p234 = scmp.eq.s32.totalorder %s114, 1
      %p235 = por %p233, %p234
      %p236 = scmp.ne.s32.totalorder %s228, %s231
      %p237 = scmp.eq.s32.totalorder %s114, 0
      %p238 = por %p236, %p237
      %p239 = scmp.ne.s32.totalorder %s228, %s231
      %p240 = scmp.eq.s32.totalorder %s119, 1
      %p241 = por %p239, %p240
      %p242 = scmp.ne.s32.totalorder %s231, %s232
      %p243 = scmp.eq.s32.totalorder %s119, 0
      %p244 = por %p242, %p243
      %p245 = scmp.ne.s32.totalorder %s231, %s232
      %p246 = scmp.eq.s32.totalorder %s120, 1
      %p247 = por %p245, %p246
      %p249 = scmp.ne.s32.totalorder %s232, %s248
      %p250 = scmp.eq.s32.totalorder %s120, 0
      %p251 = por %p249, %p250
      %s253 = sadd.s32 %s252, 1
      %p256 = scmp.eq.s32.totalorder %s114, 1
      %p257 = scmp.ne.s32.totalorder %s252, %s254
      %p258 = scmp.eq.s32.totalorder %s114, 0
      %p259 = por %p257, %p258
      %p260 = scmp.ne.s32.totalorder %s252, %s254
      %p261 = scmp.eq.s32.totalorder %s119, 1
      %p262 = por %p260, %p261
      %p263 = scmp.ne.s32.totalorder %s254, %s255
      %p264 = scmp.eq.s32.totalorder %s119, 0
      %p265 = por %p263, %p264
      %p266 = scmp.ne.s32.totalorder %s254, %s255
      %p267 = scmp.eq.s32.totalorder %s120, 1
      %p268 = por %p266, %p267
      %p270 = scmp.ne.s32.totalorder %s255, %s269
      %p271 = scmp.eq.s32.totalorder %s120, 0
      %p272 = por %p270, %p271
      %s274 = sadd.s32 %s273, 1
      %p277 = scmp.eq.s32.totalorder %s114, 1
      %p278 = scmp.ne.s32.totalorder %s273, %s275
      %p279 = scmp.eq.s32.totalorder %s114, 0
      %p280 = por %p278, %p279
      %p281 = scmp.ne.s32.totalorder %s273, %s275
      %p282 = scmp.eq.s32.totalorder %s119, 1
      %p283 = por %p281, %p282
      %p284 = scmp.ne.s32.totalorder %s275, %s276
      %p285 = scmp.eq.s32.totalorder %s119, 0
      %p286 = por %p284, %p285
      %p287 = scmp.ne.s32.totalorder %s275, %s276
      %p288 = scmp.eq.s32.totalorder %s120, 1
      %p289 = por %p287, %p288
      %p291 = scmp.ne.s32.totalorder %s276, %s290
      %p292 = scmp.eq.s32.totalorder %s120, 0
      %p293 = por %p291, %p292
      %s295 = sadd.s32 %s294, 1
      %p298 = scmp.eq.s32.totalorder %s114, 1
      %p299 = scmp.ne.s32.totalorder %s294, %s296
      %p300 = scmp.eq.s32.totalorder %s114, 0
      %p301 = por %p299, %p300
      %p302 = scmp.ne.s32.totalorder %s294, %s296
      %p303 = scmp.eq.s32.totalorder %s119, 1
      %p304 = por %p302, %p303
      %p305 = scmp.ne.s32.totalorder %s296, %s297
      %p306 = scmp.eq.s32.totalorder %s119, 0
      %p307 = por %p305, %p306
      %p308 = scmp.ne.s32.totalorder %s296, %s297
      %p309 = scmp.eq.s32.totalorder %s120, 1
      %p310 = por %p308, %p309
      %p312 = scmp.ne.s32.totalorder %s297, %s311
      %p313 = scmp.eq.s32.totalorder %s120, 0
      %p314 = por %p312, %p313
      %s316 = sadd.s32 %s315, 1
      %p319 = scmp.eq.s32.totalorder %s114, 1
      %p320 = scmp.ne.s32.totalorder %s315, %s317
      %p321 = scmp.eq.s32.totalorder %s114, 0
      %p322 = por %p320, %p321
      %p323 = scmp.ne.s32.totalorder %s315, %s317
      %p324 = scmp.eq.s32.totalorder %s119, 1
      %p325 = por %p323, %p324
      %p326 = scmp.ne.s32.totalorder %s317, %s318
      %p327 = scmp.eq.s32.totalorder %s119, 0
      %p328 = por %p326, %p327
      %p329 = scmp.ne.s32.totalorder %s317, %s318
      %p330 = scmp.eq.s32.totalorder %s120, 1
      %p331 = por %p329, %p330
      %p333 = scmp.ne.s32.totalorder %s318, %s332
      %p334 = scmp.eq.s32.totalorder %s120, 0
      %p335 = por %p333, %p334
      %s337 = sadd.s32 %s336, 1
      %p340 = scmp.eq.s32.totalorder %s114, 1
      %p341 = scmp.ne.s32.totalorder %s336, %s338
      %p342 = scmp.eq.s32.totalorder %s114, 0
      %p343 = por %p341, %p342
      %p344 = scmp.ne.s32.totalorder %s336, %s338
      %p345 = scmp.eq.s32.totalorder %s119, 1
      %p346 = por %p344, %p345
      %p347 = scmp.ne.s32.totalorder %s338, %s339
      %p348 = scmp.eq.s32.totalorder %s119, 0
      %p349 = por %p347, %p348
      %p350 = scmp.ne.s32.totalorder %s338, %s339
      %p351 = scmp.eq.s32.totalorder %s120, 1
      %p352 = por %p350, %p351
      %p354 = scmp.ne.s32.totalorder %s339, %s353
      %p355 = scmp.eq.s32.totalorder %s120, 0
      %p356 = por %p354, %p355
      %s358 = sadd.s32 %s357, 1
      %p361 = scmp.eq.s32.totalorder %s114, 1
      %p362 = scmp.ne.s32.totalorder %s357, %s359
      %p363 = scmp.eq.s32.totalorder %s114, 0
      %p364 = por %p362, %p363
      %p365 = scmp.ne.s32.totalorder %s357, %s359
      %p366 = scmp.eq.s32.totalorder %s119, 1
      %p367 = por %p365, %p366
      %p368 = scmp.ne.s32.totalorder %s359, %s360
      %p369 = scmp.eq.s32.totalorder %s119, 0
      %p370 = por %p368, %p369
      %p371 = scmp.ne.s32.totalorder %s359, %s360
      %p372 = scmp.eq.s32.totalorder %s120, 1
      %p373 = por %p371, %p372
      %p375 = scmp.ne.s32.totalorder %s360, %s374
      %p376 = scmp.eq.s32.totalorder %s120, 0
      %p377 = por %p375, %p376
      %s379 = sadd.s32 %s378, 1
      %p382 = scmp.eq.s32.totalorder %s114, 1
      %p383 = scmp.ne.s32.totalorder %s378, %s380
      %p384 = scmp.eq.s32.totalorder %s114, 0
      %p385 = por %p383, %p384
      %p386 = scmp.ne.s32.totalorder %s378, %s380
      %p387 = scmp.eq.s32.totalorder %s119, 1
      %p388 = por %p386, %p387
      %p389 = scmp.ne.s32.totalorder %s380, %s381
      %p390 = scmp.eq.s32.totalorder %s119, 0
      %p391 = por %p389, %p390
      %p392 = scmp.ne.s32.totalorder %s380, %s381
      %p393 = scmp.eq.s32.totalorder %s120, 1
      %p394 = por %p392, %p393
      %p396 = scmp.ne.s32.totalorder %s381, %s395
      %p397 = scmp.eq.s32.totalorder %s120, 0
      %p398 = por %p396, %p397
      %s400 = sadd.s32 %s399, 1
      %p403 = scmp.eq.s32.totalorder %s114, 1
      %p404 = scmp.ne.s32.totalorder %s399, %s401
      %p405 = scmp.eq.s32.totalorder %s114, 0
      %p406 = por %p404, %p405
      %p407 = scmp.ne.s32.totalorder %s399, %s401
      %p408 = scmp.eq.s32.totalorder %s119, 1
      %p409 = por %p407, %p408
      %p410 = scmp.ne.s32.totalorder %s401, %s402
      %p411 = scmp.eq.s32.totalorder %s119, 0
      %p412 = por %p410, %p411
      %p413 = scmp.ne.s32.totalorder %s401, %s402
      %p414 = scmp.eq.s32.totalorder %s120, 1
      %p415 = por %p413, %p414
      %p417 = scmp.ne.s32.totalorder %s402, %s416
      %p418 = scmp.eq.s32.totalorder %s120, 0
      %p419 = por %p417, %p418
      %s421 = sadd.s32 %s420, 1
      %p424 = scmp.eq.s32.totalorder %s114, 1
      %p425 = scmp.ne.s32.totalorder %s420, %s422
      %p426 = scmp.eq.s32.totalorder %s114, 0
      %p427 = por %p425, %p426
      %p428 = scmp.ne.s32.totalorder %s420, %s422
      %p429 = scmp.eq.s32.totalorder %s119, 1
      %p430 = por %p428, %p429
      %p431 = scmp.ne.s32.totalorder %s422, %s423
      %p432 = scmp.eq.s32.totalorder %s119, 0
      %p433 = por %p431, %p432
      %p434 = scmp.ne.s32.totalorder %s422, %s423
      %p435 = scmp.eq.s32.totalorder %s120, 1
      %p436 = por %p434, %p435
      %p438 = scmp.ne.s32.totalorder %s423, %s437
      %p439 = scmp.eq.s32.totalorder %s120, 0
      %p440 = por %p438, %p439
      %s442 = sadd.s32 %s441, 1
      %p445 = scmp.eq.s32.totalorder %s114, 1
      %p446 = scmp.ne.s32.totalorder %s441, %s443
      %p447 = scmp.eq.s32.totalorder %s114, 0
      %p448 = por %p446, %p447
      %p449 = scmp.ne.s32.totalorder %s441, %s443
      %p450 = scmp.eq.s32.totalorder %s119, 1
      %p451 = por %p449, %p450
      %p452 = scmp.ne.s32.totalorder %s443, %s444
      %p453 = scmp.eq.s32.totalorder %s119, 0
      %p454 = por %p452, %p453
      %p455 = scmp.ne.s32.totalorder %s443, %s444
      %p456 = scmp.eq.s32.totalorder %s120, 1
      %p457 = por %p455, %p456
      %p459 = scmp.ne.s32.totalorder %s444, %s458
      %p460 = scmp.eq.s32.totalorder %s120, 0
      %p461 = por %p459, %p460
      %s463 = sadd.s32 %s462, 1
      %p466 = scmp.eq.s32.totalorder %s114, 1
      %p467 = scmp.ne.s32.totalorder %s462, %s464
      %p468 = scmp.eq.s32.totalorder %s114, 0
      %p469 = por %p467, %p468
      %p470 = scmp.ne.s32.totalorder %s462, %s464
      %p471 = scmp.eq.s32.totalorder %s119, 1
      %p472 = por %p470, %p471
      %p473 = scmp.ne.s32.totalorder %s464, %s465
      %p474 = scmp.eq.s32.totalorder %s119, 0
      %p475 = por %p473, %p474
      %p476 = scmp.ne.s32.totalorder %s464, %s465
      %p477 = scmp.eq.s32.totalorder %s120, 1
      %p478 = por %p476, %p477
      %p480 = scmp.ne.s32.totalorder %s465, %s479
      %p481 = scmp.eq.s32.totalorder %s120, 0
      %p482 = por %p480, %p481
      %s484 = sadd.s32 %s483, 1
      %p487 = scmp.eq.s32.totalorder %s114, 1
      %p488 = scmp.ne.s32.totalorder %s483, %s485
      %p489 = scmp.eq.s32.totalorder %s114, 0
      %p490 = por %p488, %p489
      %p491 = scmp.ne.s32.totalorder %s483, %s485
      %p492 = scmp.eq.s32.totalorder %s119, 1
      %p493 = por %p491, %p492
      %p494 = scmp.ne.s32.totalorder %s485, %s486
      %p495 = scmp.eq.s32.totalorder %s119, 0
      %p496 = por %p494, %p495
      %p497 = scmp.ne.s32.totalorder %s485, %s486
      %p498 = scmp.eq.s32.totalorder %s120, 1
      %p499 = por %p497, %p498
      %p501 = scmp.ne.s32.totalorder %s486, %s500
      %p502 = scmp.eq.s32.totalorder %s120, 0
      %p503 = por %p501, %p502
      %s505 = sadd.s32 %s504, 1
      %p508 = scmp.eq.s32.totalorder %s114, 1
      %p509 = scmp.ne.s32.totalorder %s504, %s506
      %p510 = scmp.eq.s32.totalorder %s114, 0
      %p511 = por %p509, %p510
      %p512 = scmp.ne.s32.totalorder %s504, %s506
      %p513 = scmp.eq.s32.totalorder %s119, 1
      %p514 = por %p512, %p513
      %p515 = scmp.ne.s32.totalorder %s506, %s507
      %p516 = scmp.eq.s32.totalorder %s119, 0
      %p517 = por %p515, %p516
      %p518 = scmp.ne.s32.totalorder %s506, %s507
      %p519 = scmp.eq.s32.totalorder %s120, 1
      %p520 = por %p518, %p519
      %p522 = scmp.ne.s32.totalorder %s507, %s521
      %p523 = scmp.eq.s32.totalorder %s120, 0
      %p524 = por %p522, %p523
      %s526 = sadd.s32 %s525, 1
      %p529 = scmp.eq.s32.totalorder %s114, 1
      %p530 = scmp.ne.s32.totalorder %s525, %s527
      %p531 = scmp.eq.s32.totalorder %s114, 0
      %p532 = por %p530, %p531
      %p533 = scmp.ne.s32.totalorder %s525, %s527
      %p534 = scmp.eq.s32.totalorder %s119, 1
      %p535 = por %p533, %p534
      %p536 = scmp.ne.s32.totalorder %s527, %s528
      %p537 = scmp.eq.s32.totalorder %s119, 0
      %p538 = por %p536, %p537
      %p539 = scmp.ne.s32.totalorder %s527, %s528
      %p540 = scmp.eq.s32.totalorder %s120, 1
      %p541 = por %p539, %p540
      %p543 = scmp.ne.s32.totalorder %s528, %s542
      %p544 = scmp.eq.s32.totalorder %s120, 0
      %p545 = por %p543, %p544
      %s547 = sadd.s32 %s546, 1
      %p550 = scmp.eq.s32.totalorder %s114, 1
      %p551 = scmp.ne.s32.totalorder %s546, %s548
      %p552 = scmp.eq.s32.totalorder %s114, 0
      %p553 = por %p551, %p552
      %p554 = scmp.ne.s32.totalorder %s546, %s548
      %p555 = scmp.eq.s32.totalorder %s119, 1
      %p556 = por %p554, %p555
      %p557 = scmp.ne.s32.totalorder %s548, %s549
      %p558 = scmp.eq.s32.totalorder %s119, 0
      %p559 = por %p557, %p558
      %p560 = scmp.ne.s32.totalorder %s548, %s549
      %p561 = scmp.eq.s32.totalorder %s120, 1
      %p562 = por %p560, %p561
      %p564 = scmp.ne.s32.totalorder %s549, %s563
      %p565 = scmp.eq.s32.totalorder %s120, 0
      %p566 = por %p564, %p565
      %s568 = sadd.s32 %s567, 1
      %p571 = scmp.eq.s32.totalorder %s114, 1
      %p572 = scmp.ne.s32.totalorder %s567, %s569
      %p573 = scmp.eq.s32.totalorder %s114, 0
      %p574 = por %p572, %p573
      %p575 = scmp.ne.s32.totalorder %s567, %s569
      %p576 = scmp.eq.s32.totalorder %s119, 1
      %p577 = por %p575, %p576
      %p578 = scmp.ne.s32.totalorder %s569, %s570
      %p579 = scmp.eq.s32.totalorder %s119, 0
      %p580 = por %p578, %p579
      %p581 = scmp.ne.s32.totalorder %s569, %s570
      %p582 = scmp.eq.s32.totalorder %s120, 1
      %p583 = por %p581, %p582
      %p585 = scmp.ne.s32.totalorder %s570, %s584
      %p586 = scmp.eq.s32.totalorder %s120, 0
      %p587 = por %p585, %p586
      %s589 = sadd.s32 %s588, 1
      %p592 = scmp.eq.s32.totalorder %s114, 1
      %p593 = scmp.ne.s32.totalorder %s588, %s590
      %p594 = scmp.eq.s32.totalorder %s114, 0
      %p595 = por %p593, %p594
      %p596 = scmp.ne.s32.totalorder %s588, %s590
      %p597 = scmp.eq.s32.totalorder %s119, 1
      %p598 = por %p596, %p597
      %p599 = scmp.ne.s32.totalorder %s590, %s591
      %p600 = scmp.eq.s32.totalorder %s119, 0
      %p601 = por %p599, %p600
      %p602 = scmp.ne.s32.totalorder %s590, %s591
      %p603 = scmp.eq.s32.totalorder %s120, 1
      %p604 = por %p602, %p603
      %p606 = scmp.ne.s32.totalorder %s591, %s605
      %p607 = scmp.eq.s32.totalorder %s120, 0
      %p608 = por %p606, %p607
      %s610 = sadd.s32 %s609, 1
      %p613 = scmp.eq.s32.totalorder %s114, 1
      %p614 = scmp.ne.s32.totalorder %s609, %s611
      %p615 = scmp.eq.s32.totalorder %s114, 0
      %p616 = por %p614, %p615
      %p617 = scmp.ne.s32.totalorder %s609, %s611
      %p618 = scmp.eq.s32.totalorder %s119, 1
      %p619 = por %p617, %p618
      %p620 = scmp.ne.s32.totalorder %s611, %s612
      %p621 = scmp.eq.s32.totalorder %s119, 0
      %p622 = por %p620, %p621
      %p623 = scmp.ne.s32.totalorder %s611, %s612
      %p624 = scmp.eq.s32.totalorder %s120, 1
      %p625 = por %p623, %p624
      %p627 = scmp.ne.s32.totalorder %s612, %s626
      %p628 = scmp.eq.s32.totalorder %s120, 0
      %p629 = por %p627, %p628
      %s631 = sadd.s32 %s630, 1
      %p634 = scmp.eq.s32.totalorder %s114, 1
      %p635 = scmp.ne.s32.totalorder %s630, %s632
      %p636 = scmp.eq.s32.totalorder %s114, 0
      %p637 = por %p635, %p636
      %p638 = scmp.ne.s32.totalorder %s630, %s632
      %p639 = scmp.eq.s32.totalorder %s119, 1
      %p640 = por %p638, %p639
      %p641 = scmp.ne.s32.totalorder %s632, %s633
      %p642 = scmp.eq.s32.totalorder %s119, 0
      %p643 = por %p641, %p642
      %p644 = scmp.ne.s32.totalorder %s632, %s633
      %p645 = scmp.eq.s32.totalorder %s120, 1
      %p646 = por %p644, %p645
      %p648 = scmp.ne.s32.totalorder %s633, %s647
      %p649 = scmp.eq.s32.totalorder %s120, 0
      %p650 = por %p648, %p649
      %s652 = sadd.s32 %s651, 1
      %p655 = scmp.eq.s32.totalorder %s114, 1
      %p656 = scmp.ne.s32.totalorder %s651, %s653
      %p657 = scmp.eq.s32.totalorder %s114, 0
      %p658 = por %p656, %p657
      %p659 = scmp.ne.s32.totalorder %s651, %s653
      %p660 = scmp.eq.s32.totalorder %s119, 1
      %p661 = por %p659, %p660
      %p662 = scmp.ne.s32.totalorder %s653, %s654
      %p663 = scmp.eq.s32.totalorder %s119, 0
      %p664 = por %p662, %p663
      %p665 = scmp.ne.s32.totalorder %s653, %s654
      %p666 = scmp.eq.s32.totalorder %s120, 1
      %p667 = por %p665, %p666
      %p669 = scmp.ne.s32.totalorder %s654, %s668
      %p670 = scmp.eq.s32.totalorder %s120, 0
      %p671 = por %p669, %p670
      %s673 = sadd.s32 %s672, 1
      %p676 = scmp.eq.s32.totalorder %s114, 1
      %p677 = scmp.ne.s32.totalorder %s672, %s674
      %p678 = scmp.eq.s32.totalorder %s114, 0
      %p679 = por %p677, %p678
      %p680 = scmp.ne.s32.totalorder %s672, %s674
      %p681 = scmp.eq.s32.totalorder %s119, 1
      %p682 = por %p680, %p681
      %p683 = scmp.ne.s32.totalorder %s674, %s675
      %p684 = scmp.eq.s32.totalorder %s119, 0
      %p685 = por %p683, %p684
      %p686 = scmp.ne.s32.totalorder %s674, %s675
      %p687 = scmp.eq.s32.totalorder %s120, 1
      %p688 = por %p686, %p687
      %p690 = scmp.ne.s32.totalorder %s675, %s689
      %p691 = scmp.eq.s32.totalorder %s120, 0
      %p692 = por %p690, %p691
      %s694 = sadd.s32 %s693, 1
      %p697 = scmp.eq.s32.totalorder %s114, 1
      %p698 = scmp.ne.s32.totalorder %s693, %s695
      %p699 = scmp.eq.s32.totalorder %s114, 0
      %p700 = por %p698, %p699
      %p701 = scmp.ne.s32.totalorder %s693, %s695
      %p702 = scmp.eq.s32.totalorder %s119, 1
      %p703 = por %p701, %p702
      %p704 = scmp.ne.s32.totalorder %s695, %s696
      %p705 = scmp.eq.s32.totalorder %s119, 0
      %p706 = por %p704, %p705
      %p707 = scmp.ne.s32.totalorder %s695, %s696
      %p708 = scmp.eq.s32.totalorder %s120, 1
      %p709 = por %p707, %p708
      %p711 = scmp.ne.s32.totalorder %s696, %s710
      %p712 = scmp.eq.s32.totalorder %s120, 0
      %p713 = por %p711, %p712
      %s715 = sadd.s32 %s714, 1
      %p718 = scmp.eq.s32.totalorder %s114, 1
      %p719 = scmp.ne.s32.totalorder %s714, %s716
      %p720 = scmp.eq.s32.totalorder %s114, 0
      %p721 = por %p719, %p720
      %p722 = scmp.ne.s32.totalorder %s714, %s716
      %p723 = scmp.eq.s32.totalorder %s119, 1
      %p724 = por %p722, %p723
      %p725 = scmp.ne.s32.totalorder %s716, %s717
      %p726 = scmp.eq.s32.totalorder %s119, 0
      %p727 = por %p725, %p726
      %p728 = scmp.ne.s32.totalorder %s716, %s717
      %p729 = scmp.eq.s32.totalorder %s120, 1
      %p730 = por %p728, %p729
      %p732 = scmp.ne.s32.totalorder %s717, %s731
      %p733 = scmp.eq.s32.totalorder %s120, 0
      %p734 = por %p732, %p733
      %s736 = sadd.s32 %s735, 1
      %p739 = scmp.eq.s32.totalorder %s114, 1
      %p740 = scmp.ne.s32.totalorder %s735, %s737
      %p741 = scmp.eq.s32.totalorder %s114, 0
      %p742 = por %p740, %p741
      %p743 = scmp.ne.s32.totalorder %s735, %s737
      %p744 = scmp.eq.s32.totalorder %s119, 1
      %p745 = por %p743, %p744
      %p746 = scmp.ne.s32.totalorder %s737, %s738
      %p747 = scmp.eq.s32.totalorder %s119, 0
      %p748 = por %p746, %p747
      %p749 = scmp.ne.s32.totalorder %s737, %s738
      %p750 = scmp.eq.s32.totalorder %s120, 1
      %p751 = por %p749, %p750
      %p753 = scmp.ne.s32.totalorder %s738, %s752
      %p754 = scmp.eq.s32.totalorder %s120, 0
      %p755 = por %p753, %p754
      %s757 = sadd.s32 %s756, 1
      %p760 = scmp.eq.s32.totalorder %s114, 1
      %p761 = scmp.ne.s32.totalorder %s756, %s758
      %p762 = scmp.eq.s32.totalorder %s114, 0
      %p763 = por %p761, %p762
      %p764 = scmp.ne.s32.totalorder %s756, %s758
      %p765 = scmp.eq.s32.totalorder %s119, 1
      %p766 = por %p764, %p765
      %p767 = scmp.ne.s32.totalorder %s758, %s759
      %p768 = scmp.eq.s32.totalorder %s119, 0
      %p769 = por %p767, %p768
      %p770 = scmp.ne.s32.totalorder %s758, %s759
      %p771 = scmp.eq.s32.totalorder %s120, 1
      %p772 = por %p770, %p771
      %p774 = scmp.ne.s32.totalorder %s759, %s773
      %p775 = scmp.eq.s32.totalorder %s120, 0
      %p776 = por %p774, %p775
      %s778 = sadd.s32 %s777, 1
      %p781 = scmp.eq.s32.totalorder %s114, 1
      %p782 = scmp.ne.s32.totalorder %s777, %s779
      %p783 = scmp.eq.s32.totalorder %s114, 0
      %p784 = por %p782, %p783
      %p785 = scmp.ne.s32.totalorder %s777, %s779
      %p786 = scmp.eq.s32.totalorder %s119, 1
      %p787 = por %p785, %p786
      %p788 = scmp.ne.s32.totalorder %s779, %s780
      %p789 = scmp.eq.s32.totalorder %s119, 0
      %p790 = por %p788, %p789
      %p791 = scmp.ne.s32.totalorder %s779, %s780
      %p792 = scmp.eq.s32.totalorder %s120, 1
      %p793 = por %p791, %p792
      %p795 = scmp.ne.s32.totalorder %s780, %s794
      %p796 = scmp.eq.s32.totalorder %s120, 0
      %p797 = por %p795, %p796
      %s799 = sadd.s32 %s798, 1
      %p802 = scmp.eq.s32.totalorder %s114, 1
      %p803 = scmp.ne.s32.totalorder %s798, %s800
      %p804 = scmp.eq.s32.totalorder %s114, 0
      %p805 = por %p803, %p804
      %p806 = scmp.ne.s32.totalorder %s798, %s800
      %p807 = scmp.eq.s32.totalorder %s119, 1
      %p808 = por %p806, %p807
      %p809 = scmp.ne.s32.totalorder %s800, %s801
      %p810 = scmp.eq.s32.totalorder %s119, 0
      %p811 = por %p809, %p810
      %p812 = scmp.ne.s32.totalorder %s800, %s801
      %p813 = scmp.eq.s32.totalorder %s120, 1
      %p814 = por %p812, %p813
      %p816 = scmp.ne.s32.totalorder %s801, %s815
      %p817 = scmp.eq.s32.totalorder %s120, 0
      %p818 = por %p816, %p817
      %s820 = sadd.s32 %s819, 1
      %p823 = scmp.eq.s32.totalorder %s114, 1
      %p824 = scmp.ne.s32.totalorder %s819, %s821
      %p825 = scmp.eq.s32.totalorder %s114, 0
      %p826 = por %p824, %p825
      %p827 = scmp.ne.s32.totalorder %s819, %s821
      %p828 = scmp.eq.s32.totalorder %s119, 1
      %p829 = por %p827, %p828
      %p830 = scmp.ne.s32.totalorder %s821, %s822
      %p831 = scmp.eq.s32.totalorder %s119, 0
      %p832 = por %p830, %p831
      %p833 = scmp.ne.s32.totalorder %s821, %s822
      %p834 = scmp.eq.s32.totalorder %s120, 1
      %p835 = por %p833, %p834
      %p837 = scmp.ne.s32.totalorder %s822, %s836
      %p838 = scmp.eq.s32.totalorder %s120, 0
      %p839 = por %p837, %p838
      %s841 = sadd.s32 %s840, 1
      %p844 = scmp.eq.s32.totalorder %s114, 1
      %p845 = scmp.ne.s32.totalorder %s840, %s842
      %p846 = scmp.eq.s32.totalorder %s114, 0
      %p847 = por %p845, %p846
      %p848 = scmp.ne.s32.totalorder %s840, %s842
      %p849 = scmp.eq.s32.totalorder %s119, 1
      %p850 = por %p848, %p849
      %p851 = scmp.ne.s32.totalorder %s842, %s843
      %p852 = scmp.eq.s32.totalorder %s119, 0
      %p853 = por %p851, %p852
      %p854 = scmp.ne.s32.totalorder %s842, %s843
      %p855 = scmp.eq.s32.totalorder %s120, 1
      %p856 = por %p854, %p855
      %p858 = scmp.ne.s32.totalorder %s843, %s857
      %p859 = scmp.eq.s32.totalorder %s120, 0
      %p860 = por %p858, %p859
      %s862 = sadd.s32 %s861, 1
      %p865 = scmp.eq.s32.totalorder %s114, 1
      %p866 = scmp.ne.s32.totalorder %s861, %s863
      %p867 = scmp.eq.s32.totalorder %s114, 0
      %p868 = por %p866, %p867
      %p869 = scmp.ne.s32.totalorder %s861, %s863
      %p870 = scmp.eq.s32.totalorder %s119, 1
      %p871 = por %p869, %p870
      %p872 = scmp.ne.s32.totalorder %s863, %s864
      %p873 = scmp.eq.s32.totalorder %s119, 0
      %p874 = por %p872, %p873
      %p875 = scmp.ne.s32.totalorder %s863, %s864
      %p876 = scmp.eq.s32.totalorder %s120, 1
      %p877 = por %p875, %p876
      %p879 = scmp.ne.s32.totalorder %s864, %s878
      %p880 = scmp.eq.s32.totalorder %s120, 0
      %p881 = por %p879, %p880
      %s883 = sadd.s32 %s882, 1
      %p886 = scmp.eq.s32.totalorder %s114, 1
      %p887 = scmp.ne.s32.totalorder %s882, %s884
      %p888 = scmp.eq.s32.totalorder %s114, 0
      %p889 = por %p887, %p888
      %p890 = scmp.ne.s32.totalorder %s882, %s884
      %p891 = scmp.eq.s32.totalorder %s119, 1
      %p892 = por %p890, %p891
      %p893 = scmp.ne.s32.totalorder %s884, %s885
      %p894 = scmp.eq.s32.totalorder %s119, 0
      %p895 = por %p893, %p894
      %p896 = scmp.ne.s32.totalorder %s884, %s885
      %p897 = scmp.eq.s32.totalorder %s120, 1
      %p898 = por %p896, %p897
      %p900 = scmp.ne.s32.totalorder %s885, %s899
      %p901 = scmp.eq.s32.totalorder %s120, 0
      %p902 = por %p900, %p901
      %s904 = sadd.s32 %s903, 1
      %p907 = scmp.eq.s32.totalorder %s114, 1
      %p908 = scmp.ne.s32.totalorder %s903, %s905
      %p909 = scmp.eq.s32.totalorder %s114, 0
      %p910 = por %p908, %p909
      %p911 = scmp.ne.s32.totalorder %s903, %s905
      %p912 = scmp.eq.s32.totalorder %s119, 1
      %p913 = por %p911, %p912
      %p914 = scmp.ne.s32.totalorder %s905, %s906
      %p915 = scmp.eq.s32.totalorder %s119, 0
      %p916 = por %p914, %p915
      %p917 = scmp.ne.s32.totalorder %s905, %s906
      %p918 = scmp.eq.s32.totalorder %s120, 1
      %p919 = por %p917, %p918
      %p921 = scmp.ne.s32.totalorder %s906, %s920
      %p922 = scmp.eq.s32.totalorder %s120, 0
      %p923 = por %p921, %p922
      %s925 = sadd.s32 %s924, 1
      %p928 = scmp.eq.s32.totalorder %s114, 1
      %p929 = scmp.ne.s32.totalorder %s924, %s926
      %p930 = scmp.eq.s32.totalorder %s114, 0
      %p931 = por %p929, %p930
      %p932 = scmp.ne.s32.totalorder %s924, %s926
      %p933 = scmp.eq.s32.totalorder %s119, 1
      %p934 = por %p932, %p933
      %p935 = scmp.ne.s32.totalorder %s926, %s927
      %p936 = scmp.eq.s32.totalorder %s119, 0
      %p937 = por %p935, %p936
      %p938 = scmp.ne.s32.totalorder %s926, %s927
      %p939 = scmp.eq.s32.totalorder %s120, 1
      %p940 = por %p938, %p939
      %p942 = scmp.ne.s32.totalorder %s927, %s941
      %p943 = scmp.eq.s32.totalorder %s120, 0
      %p944 = por %p942, %p943
      %s946 = sadd.s32 %s945, 1
      %p949 = scmp.eq.s32.totalorder %s114, 1
      %p950 = scmp.ne.s32.totalorder %s945, %s947
      %p951 = scmp.eq.s32.totalorder %s114, 0
      %p952 = por %p950, %p951
      %p953 = scmp.ne.s32.totalorder %s945, %s947
      %p954 = scmp.eq.s32.totalorder %s119, 1
      %p955 = por %p953, %p954
      %p956 = scmp.ne.s32.totalorder %s947, %s948
      %p957 = scmp.eq.s32.totalorder %s119, 0
      %p958 = por %p956, %p957
      %p959 = scmp.ne.s32.totalorder %s947, %s948
      %p960 = scmp.eq.s32.totalorder %s120, 1
      %p961 = por %p959, %p960
      %p963 = scmp.ne.s32.totalorder %s948, %s962
      %p964 = scmp.eq.s32.totalorder %s120, 0
      %p965 = por %p963, %p964
      %s967 = sadd.s32 %s966, 1
      %p970 = scmp.eq.s32.totalorder %s114, 1
      %p971 = scmp.ne.s32.totalorder %s966, %s968
      %p972 = scmp.eq.s32.totalorder %s114, 0
      %p973 = por %p971, %p972
      %p974 = scmp.ne.s32.totalorder %s966, %s968
      %p975 = scmp.eq.s32.totalorder %s119, 1
      %p976 = por %p974, %p975
      %p977 = scmp.ne.s32.totalorder %s968, %s969
      %p978 = scmp.eq.s32.totalorder %s119, 0
      %p979 = por %p977, %p978
      %p980 = scmp.ne.s32.totalorder %s968, %s969
      %p981 = scmp.eq.s32.totalorder %s120, 1
      %p982 = por %p980, %p981
      %p984 = scmp.ne.s32.totalorder %s969, %s983
      %p985 = scmp.eq.s32.totalorder %s120, 0
      %p986 = por %p984, %p985
      %s987 = ssub.s32 %s114, %s121
      %p988 = scmp.eq.s32.totalorder %s987, 0
      %s990 = sadd.s32 %s989, 1
      %s991 = scalar_select %p988, %s989, %s990
      %p994 = pneg %p988
      %p995 = scmp.eq.s32.totalorder %s114, 1
      %p996 = por %p994, %p995
      %p997 = scmp.ne.s32.totalorder %s989, %s992
      %p998 = scmp.eq.s32.totalorder %s114, 0
      %p999 = por %p997, %p998
      %p1000 = scmp.ne.s32.totalorder %s989, %s992
      %p1001 = scmp.eq.s32.totalorder %s119, 1
      %p1002 = por %p1000, %p1001
      %p1003 = scmp.ne.s32.totalorder %s992, %s993
      %p1004 = scmp.eq.s32.totalorder %s119, 0
      %p1005 = por %p1003, %p1004
      %p1006 = scmp.ne.s32.totalorder %s992, %s993
      %p1007 = scmp.eq.s32.totalorder %s120, 1
      %p1008 = por %p1006, %p1007
      %p1010 = scmp.ne.s32.totalorder %s993, %s1009
      %p1011 = scmp.eq.s32.totalorder %s120, 0
      %p1012 = por %p1010, %p1011
      %p1013 = scmp.le.s32.totalorder 1, %s114
      %p1014 = scmp.lt.s32.totalorder %s114, 3
      %p1015 = pnand %p1013, %p1014
      %p1016 = pneg %p1015
      // Predicated region
      $region9: #{tpu_custom_call.1} parent=5 // pred_check
        _
      $region10: #{tpu_custom_call.1} parent=5 // pred_check_branch
        %1018 = sbr.rel (%p1015) target = $region12
      $region11: #{tpu_custom_call.1} parent=5 // pred_region
        %s1019 = ssub.s32 %s114, 1
        // Predicated region
        $region13: #{tpu_custom_call.1} parent=11 // pred_check
          %p1020 = pneg %p265
        $region14: #{tpu_custom_call.1} parent=11 // pred_check_branch
          %1022 = sbr.rel (%p1020) target = $region16
        $region15: #{tpu_custom_call.1} parent=11 // pred_region
          %s1024 = ssub.s32 128, 128
          %1025 = vsyncadd [#allocation13], %s1024
          %s1026 = sshll.u32 [#allocation12], 4
          %s1027 = int_to_ptr.vmem [resolvable:$true] %s1026
          %1032 = dma.hbm_to_vmem [thread:$0]  %s11, 128, %s1027, [#allocation13], 64, 64, 4
        $region16: #{tpu_custom_call.1} parent=11 // pred_fallthru
          _
        // Predicated region
        $region17: #{tpu_custom_call.1} parent=11 // pred_check
          %p1033 = pneg %p286
        $region18: #{tpu_custom_call.1} parent=11 // pred_check_branch
          %1035 = sbr.rel (%p1033) target = $region20
        $region19: #{tpu_custom_call.1} parent=11 // pred_region
          %s1037 = ssub.s32 16, 16
          %1038 = vsyncadd [#allocation13], %s1037
          %s1040 = sshll.u32 [#allocation14], 4
          %s1041 = int_to_ptr.vmem [resolvable:$true] %s1040
          %1043 = dma.hbm_to_vmem [thread:$0]  %s13, 16, %s1041, [#allocation13]
        $region20: #{tpu_custom_call.1} parent=11 // pred_fallthru
          _
        // Predicated region
        $region21: #{tpu_custom_call.1} parent=11 // pred_check
          %p1044 = pneg %p307
        $region22: #{tpu_custom_call.1} parent=11 // pred_check_branch
          %1046 = sbr.rel (%p1044) target = $region24
        $region23: #{tpu_custom_call.1} parent=11 // pred_region
          %s1048 = ssub.s32 16, 16
          %1049 = vsyncadd [#allocation16], %s1048
          %s1051 = sshll.u32 [#allocation15], 4
          %s1052 = int_to_ptr.vmem [resolvable:$true] %s1051
          %1054 = dma.hbm_to_vmem [thread:$0]  %s15, 16, %s1052, [#allocation16]
        $region24: #{tpu_custom_call.1} parent=11 // pred_fallthru
          _
        // Predicated region
        $region25: #{tpu_custom_call.1} parent=11 // pred_check
          %p1055 = pneg %p328
        $region26: #{tpu_custom_call.1} parent=11 // pred_check_branch
          %1057 = sbr.rel (%p1055) target = $region28
        $region27: #{tpu_custom_call.1} parent=11 // pred_region
          %s1059 = ssub.s32 256, 256
          %1060 = vsyncadd [#allocation16], %s1059
          %s1061 = sshll.u32 [#allocation17], 4
          %s1062 = int_to_ptr.vmem [resolvable:$true] %s1061
          %1067 = dma.hbm_to_vmem [thread:$0]  %s17, 256, %s1062, [#allocation16], 64, 64, 4
        $region28: #{tpu_custom_call.1} parent=11 // pred_fallthru
          _
        // Predicated region
        $region29: #{tpu_custom_call.1} parent=11 // pred_check
          %p1068 = pneg %p349
        $region30: #{tpu_custom_call.1} parent=11 // pred_check_branch
          %1070 = sbr.rel (%p1068) target = $region32
        $region31: #{tpu_custom_call.1} parent=11 // pred_region
          %s1072 = ssub.s32 16, 16
          %1073 = vsyncadd [#allocation19], %s1072
          %s1075 = sshll.u32 [#allocation18], 4
          %s1076 = int_to_ptr.vmem [resolvable:$true] %s1075
          %1078 = dma.hbm_to_vmem [thread:$0]  %s19, 16, %s1076, [#allocation19]
        $region32: #{tpu_custom_call.1} parent=11 // pred_fallthru
          _
        // Predicated region
        $region33: #{tpu_custom_call.1} parent=11 // pred_check
          %p1079 = pneg %p370
        $region34: #{tpu_custom_call.1} parent=11 // pred_check_branch
          %1081 = sbr.rel (%p1079) target = $region36
        $region35: #{tpu_custom_call.1} parent=11 // pred_region
          _
        $region36: #{tpu_custom_call.1} parent=11 // pred_fallthru
          _
        // Predicated region
        $region37: #{tpu_custom_call.1} parent=11 // pred_check
          %p1082 = pneg %p391
        $region38: #{tpu_custom_call.1} parent=11 // pred_check_branch
          %1084 = sbr.rel (%p1082) target = $region40
        $region39: #{tpu_custom_call.1} parent=11 // pred_region
          %s1086 = ssub.s32 32, 32
          %1087 = vsyncadd [#allocation19], %s1086
          %s1088 = sshll.u32 [#allocation20], 4
          %s1089 = int_to_ptr.vmem [resolvable:$true] %s1088
          %1094 = dma.hbm_to_vmem [thread:$0]  %s23, 32, %s1089, [#allocation19], 16, 16, 1
        $region40: #{tpu_custom_call.1} parent=11 // pred_fallthru
          _
        // Predicated region
        $region41: #{tpu_custom_call.1} parent=11 // pred_check
          %p1095 = pneg %p412
        $region42: #{tpu_custom_call.1} parent=11 // pred_check_branch
          %1097 = sbr.rel (%p1095) target = $region44
        $region43: #{tpu_custom_call.1} parent=11 // pred_region
          %s1099 = ssub.s32 16, 16
          %1100 = vsyncadd [#allocation22], %s1099
          %s1102 = sshll.u32 [#allocation21], 4
          %s1103 = int_to_ptr.vmem [resolvable:$true] %s1102
          %1105 = dma.hbm_to_vmem [thread:$0]  %s25, 16, %s1103, [#allocation22]
        $region44: #{tpu_custom_call.1} parent=11 // pred_fallthru
          _
        // Predicated region
        $region45: #{tpu_custom_call.1} parent=11 // pred_check
          %p1106 = pneg %p433
        $region46: #{tpu_custom_call.1} parent=11 // pred_check_branch
          %1108 = sbr.rel (%p1106) target = $region48
        $region47: #{tpu_custom_call.1} parent=11 // pred_region
          _
        $region48: #{tpu_custom_call.1} parent=11 // pred_fallthru
          _
        // Predicated region
        $region49: #{tpu_custom_call.1} parent=11 // pred_check
          %p1109 = pneg %p454
        $region50: #{tpu_custom_call.1} parent=11 // pred_check_branch
          %1111 = sbr.rel (%p1109) target = $region52
        $region51: #{tpu_custom_call.1} parent=11 // pred_region
          _
        $region52: #{tpu_custom_call.1} parent=11 // pred_fallthru
          _
        // Predicated region
        $region53: #{tpu_custom_call.1} parent=11 // pred_check
          %p1112 = pneg %p475
        $region54: #{tpu_custom_call.1} parent=11 // pred_check_branch
          %1114 = sbr.rel (%p1112) target = $region56
        $region55: #{tpu_custom_call.1} parent=11 // pred_region
          %s1116 = ssub.s32 16, 16
          %1117 = vsyncadd [#allocation22], %s1116
          %s1119 = sshll.u32 [#allocation23], 4
          %s1120 = int_to_ptr.vmem [resolvable:$true] %s1119
          %1122 = dma.hbm_to_vmem [thread:$0]  %s31, 16, %s1120, [#allocation22]
        $region56: #{tpu_custom_call.1} parent=11 // pred_fallthru
          _
        // Predicated region
        $region57: #{tpu_custom_call.1} parent=11 // pred_check
          %p1123 = pneg %p496
        $region58: #{tpu_custom_call.1} parent=11 // pred_check_branch
          %1125 = sbr.rel (%p1123) target = $region60
        $region59: #{tpu_custom_call.1} parent=11 // pred_region
          %s1127 = ssub.s32 256, 256
          %1128 = vsyncadd [#allocation25], %s1127
          %s1129 = sshll.u32 [#allocation24], 4
          %s1130 = int_to_ptr.vmem [resolvable:$true] %s1129
          %1135 = dma.hbm_to_vmem [thread:$0]  %s33, 256, %s1130, [#allocation25], 64, 64, 4
        $region60: #{tpu_custom_call.1} parent=11 // pred_fallthru
          _
        // Predicated region
        $region61: #{tpu_custom_call.1} parent=11 // pred_check
          %p1136 = pneg %p517
        $region62: #{tpu_custom_call.1} parent=11 // pred_check_branch
          %1138 = sbr.rel (%p1136) target = $region64
        $region63: #{tpu_custom_call.1} parent=11 // pred_region
          %s1140 = ssub.s32 16, 16
          %1141 = vsyncadd [#allocation25], %s1140
          %s1143 = sshll.u32 [#allocation26], 4
          %s1144 = int_to_ptr.vmem [resolvable:$true] %s1143
          %1146 = dma.hbm_to_vmem [thread:$0]  %s35, 16, %s1144, [#allocation25]
        $region64: #{tpu_custom_call.1} parent=11 // pred_fallthru
          _
        // Predicated region
        $region65: #{tpu_custom_call.1} parent=11 // pred_check
          %p1147 = pneg %p538
        $region66: #{tpu_custom_call.1} parent=11 // pred_check_branch
          %1149 = sbr.rel (%p1147) target = $region68
        $region67: #{tpu_custom_call.1} parent=11 // pred_region
          _
        $region68: #{tpu_custom_call.1} parent=11 // pred_fallthru
          _
        // Predicated region
        $region69: #{tpu_custom_call.1} parent=11 // pred_check
          %p1150 = pneg %p559
        $region70: #{tpu_custom_call.1} parent=11 // pred_check_branch
          %1152 = sbr.rel (%p1150) target = $region72
        $region71: #{tpu_custom_call.1} parent=11 // pred_region
          %s1154 = ssub.s32 256, 256
          %1155 = vsyncadd [#allocation28], %s1154
          %s1156 = sshll.u32 [#allocation27], 4
          %s1157 = int_to_ptr.vmem [resolvable:$true] %s1156
          %1162 = dma.hbm_to_vmem [thread:$0]  %s39, 256, %s1157, [#allocation28], 64, 64, 4
        $region72: #{tpu_custom_call.1} parent=11 // pred_fallthru
          _
        // Predicated region
        $region73: #{tpu_custom_call.1} parent=11 // pred_check
          %p1163 = pneg %p580
        $region74: #{tpu_custom_call.1} parent=11 // pred_check_branch
          %1165 = sbr.rel (%p1163) target = $region76
        $region75: #{tpu_custom_call.1} parent=11 // pred_region
          %s1167 = ssub.s32 256, 256
          %1168 = vsyncadd [#allocation28], %s1167
          %s1169 = sshll.u32 [#allocation29], 4
          %s1170 = int_to_ptr.vmem [resolvable:$true] %s1169
          %1175 = dma.hbm_to_vmem [thread:$0]  %s41, 256, %s1170, [#allocation28], 64, 64, 4
        $region76: #{tpu_custom_call.1} parent=11 // pred_fallthru
          _
        // Predicated region
        $region77: #{tpu_custom_call.1} parent=11 // pred_check
          %p1176 = pneg %p601
        $region78: #{tpu_custom_call.1} parent=11 // pred_check_branch
          %1178 = sbr.rel (%p1176) target = $region80
        $region79: #{tpu_custom_call.1} parent=11 // pred_region
          %s1180 = ssub.s32 16, 16
          %1181 = vsyncadd [#allocation31], %s1180
          %s1183 = sshll.u32 [#allocation30], 4
          %s1184 = int_to_ptr.vmem [resolvable:$true] %s1183
          %1186 = dma.hbm_to_vmem [thread:$0]  %s43, 16, %s1184, [#allocation31]
        $region80: #{tpu_custom_call.1} parent=11 // pred_fallthru
          _
        // Predicated region
        $region81: #{tpu_custom_call.1} parent=11 // pred_check
          %p1187 = pneg %p622
        $region82: #{tpu_custom_call.1} parent=11 // pred_check_branch
          %1189 = sbr.rel (%p1187) target = $region84
        $region83: #{tpu_custom_call.1} parent=11 // pred_region
          _
        $region84: #{tpu_custom_call.1} parent=11 // pred_fallthru
          _
        // Predicated region
        $region85: #{tpu_custom_call.1} parent=11 // pred_check
          %p1190 = pneg %p643
        $region86: #{tpu_custom_call.1} parent=11 // pred_check_branch
          %1192 = sbr.rel (%p1190) target = $region88
        $region87: #{tpu_custom_call.1} parent=11 // pred_region
          %s1194 = ssub.s32 256, 256
          %1195 = vsyncadd [#allocation31], %s1194
          %s1196 = sshll.u32 [#allocation32], 4
          %s1197 = int_to_ptr.vmem [resolvable:$true] %s1196
          %1202 = dma.hbm_to_vmem [thread:$0]  %s47, 256, %s1197, [#allocation31], 64, 64, 4
        $region88: #{tpu_custom_call.1} parent=11 // pred_fallthru
          _
        // Predicated region
        $region89: #{tpu_custom_call.1} parent=11 // pred_check
          %p1203 = pneg %p664
        $region90: #{tpu_custom_call.1} parent=11 // pred_check_branch
          %1205 = sbr.rel (%p1203) target = $region92
        $region91: #{tpu_custom_call.1} parent=11 // pred_region
          %s1207 = ssub.s32 256, 256
          %1208 = vsyncadd [#allocation34], %s1207
          %s1209 = sshll.u32 [#allocation33], 4
          %s1210 = int_to_ptr.vmem [resolvable:$true] %s1209
          %1215 = dma.hbm_to_vmem [thread:$0]  %s49, 256, %s1210, [#allocation34], 64, 64, 4
        $region92: #{tpu_custom_call.1} parent=11 // pred_fallthru
          _
        // Predicated region
        $region93: #{tpu_custom_call.1} parent=11 // pred_check
          %p1216 = pneg %p685
        $region94: #{tpu_custom_call.1} parent=11 // pred_check_branch
          %1218 = sbr.rel (%p1216) target = $region96
        $region95: #{tpu_custom_call.1} parent=11 // pred_region
          %s1220 = ssub.s32 16, 16
          %1221 = vsyncadd [#allocation34], %s1220
          %s1223 = sshll.u32 [#allocation35], 4
          %s1224 = int_to_ptr.vmem [resolvable:$true] %s1223
          %1226 = dma.hbm_to_vmem [thread:$0]  %s51, 16, %s1224, [#allocation34]
        $region96: #{tpu_custom_call.1} parent=11 // pred_fallthru
          _
        // Predicated region
        $region97: #{tpu_custom_call.1} parent=11 // pred_check
          %p1227 = pneg %p706
        $region98: #{tpu_custom_call.1} parent=11 // pred_check_branch
          %1229 = sbr.rel (%p1227) target = $region100
        $region99: #{tpu_custom_call.1} parent=11 // pred_region
          _
        $region100: #{tpu_custom_call.1} parent=11 // pred_fallthru
          _
        // Predicated region
        $region101: #{tpu_custom_call.1} parent=11 // pred_check
          %p1230 = pneg %p727
        $region102: #{tpu_custom_call.1} parent=11 // pred_check_branch
          %1232 = sbr.rel (%p1230) target = $region104
        $region103: #{tpu_custom_call.1} parent=11 // pred_region
          %s1234 = ssub.s32 256, 256
          %1235 = vsyncadd [#allocation37], %s1234
          %s1236 = sshll.u32 [#allocation36], 4
          %s1237 = int_to_ptr.vmem [resolvable:$true] %s1236
          %1242 = dma.hbm_to_vmem [thread:$0]  %s55, 256, %s1237, [#allocation37], 64, 64, 4
        $region104: #{tpu_custom_call.1} parent=11 // pred_fallthru
          _
        // Predicated region
        $region105: #{tpu_custom_call.1} parent=11 // pred_check
          %p1243 = pneg %p748
        $region106: #{tpu_custom_call.1} parent=11 // pred_check_branch
          %1245 = sbr.rel (%p1243) target = $region108
        $region107: #{tpu_custom_call.1} parent=11 // pred_region
          %s1247 = ssub.s32 256, 256
          %1248 = vsyncadd [#allocation37], %s1247
          %s1249 = sshll.u32 [#allocation38], 4
          %s1250 = int_to_ptr.vmem [resolvable:$true] %s1249
          %1255 = dma.hbm_to_vmem [thread:$0]  %s57, 256, %s1250, [#allocation37], 64, 64, 4
        $region108: #{tpu_custom_call.1} parent=11 // pred_fallthru
          _
        // Predicated region
        $region109: #{tpu_custom_call.1} parent=11 // pred_check
          %p1256 = pneg %p769
        $region110: #{tpu_custom_call.1} parent=11 // pred_check_branch
          %1258 = sbr.rel (%p1256) target = $region112
        $region111: #{tpu_custom_call.1} parent=11 // pred_region
          %s1260 = ssub.s32 16, 16
          %1261 = vsyncadd [#allocation40], %s1260
          %s1263 = sshll.u32 [#allocation39], 4
          %s1264 = int_to_ptr.vmem [resolvable:$true] %s1263
          %1266 = dma.hbm_to_vmem [thread:$0]  %s59, 16, %s1264, [#allocation40]
        $region112: #{tpu_custom_call.1} parent=11 // pred_fallthru
          _
        // Predicated region
        $region113: #{tpu_custom_call.1} parent=11 // pred_check
          %p1267 = pneg %p790
        $region114: #{tpu_custom_call.1} parent=11 // pred_check_branch
          %1269 = sbr.rel (%p1267) target = $region116
        $region115: #{tpu_custom_call.1} parent=11 // pred_region
          _
        $region116: #{tpu_custom_call.1} parent=11 // pred_fallthru
          _
        // Predicated region
        $region117: #{tpu_custom_call.1} parent=11 // pred_check
          %p1270 = pneg %p811
        $region118: #{tpu_custom_call.1} parent=11 // pred_check_branch
          %1272 = sbr.rel (%p1270) target = $region120
        $region119: #{tpu_custom_call.1} parent=11 // pred_region
          %s1274 = ssub.s32 16, 16
          %1275 = vsyncadd [#allocation40], %s1274
          %s1277 = sshll.u32 [#allocation41], 4
          %s1278 = int_to_ptr.vmem [resolvable:$true] %s1277
          %1280 = dma.hbm_to_vmem [thread:$0]  %s63, 16, %s1278, [#allocation40]
        $region120: #{tpu_custom_call.1} parent=11 // pred_fallthru
          _
        // Predicated region
        $region121: #{tpu_custom_call.1} parent=11 // pred_check
          %p1281 = pneg %p832
        $region122: #{tpu_custom_call.1} parent=11 // pred_check_branch
          %1283 = sbr.rel (%p1281) target = $region124
        $region123: #{tpu_custom_call.1} parent=11 // pred_region
          %s1285 = ssub.s32 256, 256
          %1286 = vsyncadd [#allocation43], %s1285
          %s1287 = sshll.u32 [#allocation42], 4
          %s1288 = int_to_ptr.vmem [resolvable:$true] %s1287
          %1293 = dma.hbm_to_vmem [thread:$0]  %s65, 256, %s1288, [#allocation43], 64, 64, 4
        $region124: #{tpu_custom_call.1} parent=11 // pred_fallthru
          _
        // Predicated region
        $region125: #{tpu_custom_call.1} parent=11 // pred_check
          %p1294 = pneg %p853
        $region126: #{tpu_custom_call.1} parent=11 // pred_check_branch
          %1296 = sbr.rel (%p1294) target = $region128
        $region127: #{tpu_custom_call.1} parent=11 // pred_region
          %s1298 = ssub.s32 16, 16
          %1299 = vsyncadd [#allocation43], %s1298
          %s1301 = sshll.u32 [#allocation44], 4
          %s1302 = int_to_ptr.vmem [resolvable:$true] %s1301
          %1304 = dma.hbm_to_vmem [thread:$0]  %s67, 16, %s1302, [#allocation43]
        $region128: #{tpu_custom_call.1} parent=11 // pred_fallthru
          _
        // Predicated region
        $region129: #{tpu_custom_call.1} parent=11 // pred_check
          %p1305 = pneg %p874
        $region130: #{tpu_custom_call.1} parent=11 // pred_check_branch
          %1307 = sbr.rel (%p1305) target = $region132
        $region131: #{tpu_custom_call.1} parent=11 // pred_region
          _
        $region132: #{tpu_custom_call.1} parent=11 // pred_fallthru
          _
        // Predicated region
        $region133: #{tpu_custom_call.1} parent=11 // pred_check
          %p1308 = pneg %p895
        $region134: #{tpu_custom_call.1} parent=11 // pred_check_branch
          %1310 = sbr.rel (%p1308) target = $region136
        $region135: #{tpu_custom_call.1} parent=11 // pred_region
          %s1312 = ssub.s32 256, 256
          %1313 = vsyncadd [#allocation46], %s1312
          %s1314 = sshll.u32 [#allocation45], 4
          %s1315 = int_to_ptr.vmem [resolvable:$true] %s1314
          %1320 = dma.hbm_to_vmem [thread:$0]  %s71, 256, %s1315, [#allocation46], 64, 64, 4
        $region136: #{tpu_custom_call.1} parent=11 // pred_fallthru
          _
        // Predicated region
        $region137: #{tpu_custom_call.1} parent=11 // pred_check
          %p1321 = pneg %p916
        $region138: #{tpu_custom_call.1} parent=11 // pred_check_branch
          %1323 = sbr.rel (%p1321) target = $region140
        $region139: #{tpu_custom_call.1} parent=11 // pred_region
          _
        $region140: #{tpu_custom_call.1} parent=11 // pred_fallthru
          _
        // Predicated region
        $region141: #{tpu_custom_call.1} parent=11 // pred_check
          %p1324 = pneg %p937
        $region142: #{tpu_custom_call.1} parent=11 // pred_check_branch
          %1326 = sbr.rel (%p1324) target = $region144
        $region143: #{tpu_custom_call.1} parent=11 // pred_region
          %s1328 = ssub.s32 256, 256
          %1329 = vsyncadd [#allocation46], %s1328
          %s1330 = sshll.u32 [#allocation47], 4
          %s1331 = int_to_ptr.vmem [resolvable:$true] %s1330
          %1336 = dma.hbm_to_vmem [thread:$0]  %s75, 256, %s1331, [#allocation46], 64, 64, 4
        $region144: #{tpu_custom_call.1} parent=11 // pred_fallthru
          _
        // Predicated region
        $region145: #{tpu_custom_call.1} parent=11 // pred_check
          %p1337 = pneg %p958
        $region146: #{tpu_custom_call.1} parent=11 // pred_check_branch
          %1339 = sbr.rel (%p1337) target = $region148
        $region147: #{tpu_custom_call.1} parent=11 // pred_region
          %s1341 = ssub.s32 256, 256
          %1342 = vsyncadd [#allocation49], %s1341
          %s1343 = sshll.u32 [#allocation48], 4
          %s1344 = int_to_ptr.vmem [resolvable:$true] %s1343
          %1349 = dma.hbm_to_vmem [thread:$0]  %s77, 256, %s1344, [#allocation49], 64, 64, 4
        $region148: #{tpu_custom_call.1} parent=11 // pred_fallthru
          _
        // Predicated region
        $region149: #{tpu_custom_call.1} parent=11 // pred_check
          %p1350 = pneg %p979
        $region150: #{tpu_custom_call.1} parent=11 // pred_check_branch
          %1352 = sbr.rel (%p1350) target = $region152
        $region151: #{tpu_custom_call.1} parent=11 // pred_region
          _
        $region152: #{tpu_custom_call.1} parent=11 // pred_fallthru
          _
      $region12: #{tpu_custom_call.1} parent=5 // pred_fallthru
        _
      %p1353 = scmp.lt.s32.totalorder %s114, 2
      // Predicated region
      $region153: #{tpu_custom_call.1} parent=5 // pred_check
        %p1354 = pneg %p1353
      $region154: #{tpu_custom_call.1} parent=5 // pred_check_branch
        %1356 = sbr.rel (%p1354) target = $region156
      $region155: #{tpu_custom_call.1} parent=5 // pred_region
        // Predicated region
        $region157: #{tpu_custom_call.1} parent=155 // pred_check
          %p1357 = pneg %p134
        $region158: #{tpu_custom_call.1} parent=155 // pred_check_branch
          %1359 = sbr.rel (%p1357) target = $region160
        $region159: #{tpu_custom_call.1} parent=155 // pred_region
          %s1360 = sand.u32 %s124, 1
          %s1361 = scalar_lea.sflag [#allocation4], %s1360
          %s1362 = sand.u32 %s124, 1
          %s1363 = smul.addr %s1362, 8
          %s1364 = scalar_lea.vmem [#allocation3], %s1363
          %s1366 = ssub.s32 128, 128
          %1367 = vsyncadd %s1361, %s1366
          %s1368 = smul.addr %s114, 128
          %s1369 = scalar_lea.hbm %s1, %s1368
          %s1371 = sshll.u32 %s1364, 4
          %s1372 = int_to_ptr.vmem [resolvable:$true] %s1371
          %1374 = dma.hbm_to_vmem [thread:$0]  %s1369, 128, %s1372, %s1361
        $region160: #{tpu_custom_call.1} parent=155 // pred_fallthru
          _
        // Predicated region
        $region161: #{tpu_custom_call.1} parent=155 // pred_check
          %p1375 = pneg %p160
        $region162: #{tpu_custom_call.1} parent=155 // pred_check_branch
          %1377 = sbr.rel (%p1375) target = $region164
        $region163: #{tpu_custom_call.1} parent=155 // pred_region
          %s1378 = sand.u32 %s114, 1
          %s1379 = scalar_lea.sflag [#allocation7], %s1378
          %s1380 = sand.u32 %s150, 1
          %s1381 = scalar_lea.vmem [#allocation6], %s1380
          %s1383 = ssub.s32 16, 16
          %1384 = vsyncadd %s1379, %s1383
          %s1385 = smul.addr %s114, 16
          %s1386 = scalar_lea.hbm %s3, %s1385
          %s1388 = sshll.u32 %s1381, 4
          %s1389 = int_to_ptr.vmem [resolvable:$true] %s1388
          %1391 = dma.hbm_to_vmem [thread:$0]  %s1386, 16, %s1389, %s1379
        $region164: #{tpu_custom_call.1} parent=155 // pred_fallthru
          _
        // Predicated region
        $region165: #{tpu_custom_call.1} parent=155 // pred_check
          %p1392 = pneg %p186
        $region166: #{tpu_custom_call.1} parent=155 // pred_check_branch
          %1394 = sbr.rel (%p1392) target = $region168
        $region167: #{tpu_custom_call.1} parent=155 // pred_region
          %s1395 = sand.u32 %s114, 1
          %s1396 = scalar_lea.sflag [#allocation7], %s1395
          %s1397 = sand.u32 %s176, 1
          %s1398 = smul.addr %s1397, 8
          %s1399 = scalar_lea.vmem [#allocation8], %s1398
          %s1401 = ssub.s32 128, 128
          %1402 = vsyncadd %s1396, %s1401
          %s1403 = smul.addr %s114, 128
          %s1404 = scalar_lea.hbm %s5, %s1403
          %s1406 = sshll.u32 %s1399, 4
          %s1407 = int_to_ptr.vmem [resolvable:$true] %s1406
          %1409 = dma.hbm_to_vmem [thread:$0]  %s1404, 128, %s1407, %s1396
        $region168: #{tpu_custom_call.1} parent=155 // pred_fallthru
          _
        // Predicated region
        $region169: #{tpu_custom_call.1} parent=155 // pred_check
          %p1410 = pneg %p212
        $region170: #{tpu_custom_call.1} parent=155 // pred_check_branch
          %1412 = sbr.rel (%p1410) target = $region172
        $region171: #{tpu_custom_call.1} parent=155 // pred_region
          %s1413 = sand.u32 %s114, 1
          %s1414 = scalar_lea.sflag [#allocation10], %s1413
          %s1415 = sand.u32 %s202, 1
          %s1416 = scalar_lea.vmem [#allocation9], %s1415
          %s1418 = ssub.s32 16, 16
          %1419 = vsyncadd %s1414, %s1418
          %s1420 = smul.addr %s114, 16
          %s1421 = scalar_lea.hbm %s7, %s1420
          %s1423 = sshll.u32 %s1416, 4
          %s1424 = int_to_ptr.vmem [resolvable:$true] %s1423
          %1426 = dma.hbm_to_vmem [thread:$0]  %s1421, 16, %s1424, %s1414
        $region172: #{tpu_custom_call.1} parent=155 // pred_fallthru
          _
        // Predicated region
        $region173: #{tpu_custom_call.1} parent=155 // pred_check
          %p1427 = pneg %p238
        $region174: #{tpu_custom_call.1} parent=155 // pred_check_branch
          %1429 = sbr.rel (%p1427) target = $region176
        $region175: #{tpu_custom_call.1} parent=155 // pred_region
          %s1430 = sand.u32 %s114, 1
          %s1431 = scalar_lea.sflag [#allocation10], %s1430
          %s1432 = sand.u32 %s228, 1
          %s1433 = smul.addr %s1432, 8
          %s1434 = scalar_lea.vmem [#allocation11], %s1433
          %s1436 = ssub.s32 128, 128
          %1437 = vsyncadd %s1431, %s1436
          %s1438 = smul.addr %s114, 128
          %s1439 = scalar_lea.hbm %s9, %s1438
          %s1441 = sshll.u32 %s1434, 4
          %s1442 = int_to_ptr.vmem [resolvable:$true] %s1441
          %1444 = dma.hbm_to_vmem [thread:$0]  %s1439, 128, %s1442, %s1431
        $region176: #{tpu_custom_call.1} parent=155 // pred_fallthru
          _
      $region156: #{tpu_custom_call.1} parent=5 // pred_fallthru
        _
      %p1445 = scmp.le.s32.totalorder 1, %s114
      %p1446 = scmp.lt.s32.totalorder %s114, 3
      %p1447 = pnand %p1445, %p1446
      %p1448 = pneg %p1447
      // Predicated region
      $region177: #{tpu_custom_call.1} parent=5 // pred_check
        _
      $region178: #{tpu_custom_call.1} parent=5 // pred_check_branch
        %1450 = sbr.rel (%p1447) target = $region180
      $region179: #{tpu_custom_call.1} parent=5 // pred_region
        %s1451 = ssub.s32 %s114, 1
        %s1452 = sand.u32 %s127, 1
        %s1453 = scalar_lea.sflag [#allocation4], %s1452
        %s1454 = sand.u32 %s127, 1
        %s1455 = smul.addr %s1454, 8
        %s1456 = scalar_lea.vmem [#allocation3], %s1455
        // Predicated region
        $region181: #{tpu_custom_call.1} parent=179 // pred_check
          %p1457 = pneg %p140
        $region182: #{tpu_custom_call.1} parent=179 // pred_check_branch
          %1459 = sbr.rel (%p1457) target = $region184
        $region183: #{tpu_custom_call.1} parent=179 // pred_region
          %1460 = dma.done %s1453, 128
        $region184: #{tpu_custom_call.1} parent=179 // pred_fallthru
          _
        %s1461 = sand.u32 %s119, 1
        %s1462 = scalar_lea.sflag [#allocation7], %s1461
        %s1463 = sand.u32 %s153, 1
        %s1464 = scalar_lea.vmem [#allocation6], %s1463
        // Predicated region
        $region185: #{tpu_custom_call.1} parent=179 // pred_check
          %p1465 = pneg %p166
        $region186: #{tpu_custom_call.1} parent=179 // pred_check_branch
          %1467 = sbr.rel (%p1465) target = $region188
        $region187: #{tpu_custom_call.1} parent=179 // pred_region
          %1468 = dma.done %s1462, 16
        $region188: #{tpu_custom_call.1} parent=179 // pred_fallthru
          _
        %s1469 = sand.u32 %s119, 1
        %s1470 = scalar_lea.sflag [#allocation7], %s1469
        %s1471 = sand.u32 %s179, 1
        %s1472 = smul.addr %s1471, 8
        %s1473 = scalar_lea.vmem [#allocation8], %s1472
        // Predicated region
        $region189: #{tpu_custom_call.1} parent=179 // pred_check
          %p1474 = pneg %p192
        $region190: #{tpu_custom_call.1} parent=179 // pred_check_branch
          %1476 = sbr.rel (%p1474) target = $region192
        $region191: #{tpu_custom_call.1} parent=179 // pred_region
          %1477 = dma.done %s1470, 128
        $region192: #{tpu_custom_call.1} parent=179 // pred_fallthru
          _
        %s1478 = sand.u32 %s119, 1
        %s1479 = scalar_lea.sflag [#allocation10], %s1478
        %s1480 = sand.u32 %s205, 1
        %s1481 = scalar_lea.vmem [#allocation9], %s1480
        // Predicated region
        $region193: #{tpu_custom_call.1} parent=179 // pred_check
          %p1482 = pneg %p218
        $region194: #{tpu_custom_call.1} parent=179 // pred_check_branch
          %1484 = sbr.rel (%p1482) target = $region196
        $region195: #{tpu_custom_call.1} parent=179 // pred_region
          %1485 = dma.done %s1479, 16
        $region196: #{tpu_custom_call.1} parent=179 // pred_fallthru
          _
        %s1486 = sand.u32 %s119, 1
        %s1487 = scalar_lea.sflag [#allocation10], %s1486
        %s1488 = sand.u32 %s231, 1
        %s1489 = smul.addr %s1488, 8
        %s1490 = scalar_lea.vmem [#allocation11], %s1489
        // Predicated region
        $region197: #{tpu_custom_call.1} parent=179 // pred_check
          %p1491 = pneg %p244
        $region198: #{tpu_custom_call.1} parent=179 // pred_check_branch
          %1493 = sbr.rel (%p1491) target = $region200
        $region199: #{tpu_custom_call.1} parent=179 // pred_region
          %1494 = dma.done %s1487, 128
        $region200: #{tpu_custom_call.1} parent=179 // pred_fallthru
          _
        // Predicated region
        $region201: #{tpu_custom_call.1} parent=179 // pred_check
          %p1495 = pneg %p265
        $region202: #{tpu_custom_call.1} parent=179 // pred_check_branch
          %1497 = sbr.rel (%p1495) target = $region204
        $region203: #{tpu_custom_call.1} parent=179 // pred_region
          %1498 = dma.done [#allocation13], 128
        $region204: #{tpu_custom_call.1} parent=179 // pred_fallthru
          _
        // Predicated region
        $region205: #{tpu_custom_call.1} parent=179 // pred_check
          %p1499 = pneg %p286
        $region206: #{tpu_custom_call.1} parent=179 // pred_check_branch
          %1501 = sbr.rel (%p1499) target = $region208
        $region207: #{tpu_custom_call.1} parent=179 // pred_region
          %1502 = dma.done [#allocation13], 16
        $region208: #{tpu_custom_call.1} parent=179 // pred_fallthru
          _
        // Predicated region
        $region209: #{tpu_custom_call.1} parent=179 // pred_check
          %p1503 = pneg %p307
        $region210: #{tpu_custom_call.1} parent=179 // pred_check_branch
          %1505 = sbr.rel (%p1503) target = $region212
        $region211: #{tpu_custom_call.1} parent=179 // pred_region
          %1506 = dma.done [#allocation16], 16
        $region212: #{tpu_custom_call.1} parent=179 // pred_fallthru
          _
        // Predicated region
        $region213: #{tpu_custom_call.1} parent=179 // pred_check
          %p1507 = pneg %p328
        $region214: #{tpu_custom_call.1} parent=179 // pred_check_branch
          %1509 = sbr.rel (%p1507) target = $region216
        $region215: #{tpu_custom_call.1} parent=179 // pred_region
          %1510 = dma.done [#allocation16], 256
        $region216: #{tpu_custom_call.1} parent=179 // pred_fallthru
          _
        // Predicated region
        $region217: #{tpu_custom_call.1} parent=179 // pred_check
          %p1511 = pneg %p349
        $region218: #{tpu_custom_call.1} parent=179 // pred_check_branch
          %1513 = sbr.rel (%p1511) target = $region220
        $region219: #{tpu_custom_call.1} parent=179 // pred_region
          %1514 = dma.done [#allocation19], 16
        $region220: #{tpu_custom_call.1} parent=179 // pred_fallthru
          _
        // Predicated region
        $region221: #{tpu_custom_call.1} parent=179 // pred_check
          %p1515 = pneg %p391
        $region222: #{tpu_custom_call.1} parent=179 // pred_check_branch
          %1517 = sbr.rel (%p1515) target = $region224
        $region223: #{tpu_custom_call.1} parent=179 // pred_region
          %1518 = dma.done [#allocation19], 32
        $region224: #{tpu_custom_call.1} parent=179 // pred_fallthru
          _
        // Predicated region
        $region225: #{tpu_custom_call.1} parent=179 // pred_check
          %p1519 = pneg %p412
        $region226: #{tpu_custom_call.1} parent=179 // pred_check_branch
          %1521 = sbr.rel (%p1519) target = $region228
        $region227: #{tpu_custom_call.1} parent=179 // pred_region
          %1522 = dma.done [#allocation22], 16
        $region228: #{tpu_custom_call.1} parent=179 // pred_fallthru
          _
        // Predicated region
        $region229: #{tpu_custom_call.1} parent=179 // pred_check
          %p1523 = pneg %p475
        $region230: #{tpu_custom_call.1} parent=179 // pred_check_branch
          %1525 = sbr.rel (%p1523) target = $region232
        $region231: #{tpu_custom_call.1} parent=179 // pred_region
          %1526 = dma.done [#allocation22], 16
        $region232: #{tpu_custom_call.1} parent=179 // pred_fallthru
          _
        // Predicated region
        $region233: #{tpu_custom_call.1} parent=179 // pred_check
          %p1527 = pneg %p496
        $region234: #{tpu_custom_call.1} parent=179 // pred_check_branch
          %1529 = sbr.rel (%p1527) target = $region236
        $region235: #{tpu_custom_call.1} parent=179 // pred_region
          %1530 = dma.done [#allocation25], 256
        $region236: #{tpu_custom_call.1} parent=179 // pred_fallthru
          _
        // Predicated region
        $region237: #{tpu_custom_call.1} parent=179 // pred_check
          %p1531 = pneg %p517
        $region238: #{tpu_custom_call.1} parent=179 // pred_check_branch
          %1533 = sbr.rel (%p1531) target = $region240
        $region239: #{tpu_custom_call.1} parent=179 // pred_region
          %1534 = dma.done [#allocation25], 16
        $region240: #{tpu_custom_call.1} parent=179 // pred_fallthru
          _
        // Predicated region
        $region241: #{tpu_custom_call.1} parent=179 // pred_check
          %p1535 = pneg %p559
        $region242: #{tpu_custom_call.1} parent=179 // pred_check_branch
          %1537 = sbr.rel (%p1535) target = $region244
        $region243: #{tpu_custom_call.1} parent=179 // pred_region
          %1538 = dma.done [#allocation28], 256
        $region244: #{tpu_custom_call.1} parent=179 // pred_fallthru
          _
        // Predicated region
        $region245: #{tpu_custom_call.1} parent=179 // pred_check
          %p1539 = pneg %p580
        $region246: #{tpu_custom_call.1} parent=179 // pred_check_branch
          %1541 = sbr.rel (%p1539) target = $region248
        $region247: #{tpu_custom_call.1} parent=179 // pred_region
          %1542 = dma.done [#allocation28], 256
        $region248: #{tpu_custom_call.1} parent=179 // pred_fallthru
          _
        // Predicated region
        $region249: #{tpu_custom_call.1} parent=179 // pred_check
          %p1543 = pneg %p601
        $region250: #{tpu_custom_call.1} parent=179 // pred_check_branch
          %1545 = sbr.rel (%p1543) target = $region252
        $region251: #{tpu_custom_call.1} parent=179 // pred_region
          %1546 = dma.done [#allocation31], 16
        $region252: #{tpu_custom_call.1} parent=179 // pred_fallthru
          _
        // Predicated region
        $region253: #{tpu_custom_call.1} parent=179 // pred_check
          %p1547 = pneg %p643
        $region254: #{tpu_custom_call.1} parent=179 // pred_check_branch
          %1549 = sbr.rel (%p1547) target = $region256
        $region255: #{tpu_custom_call.1} parent=179 // pred_region
          %1550 = dma.done [#allocation31], 256
        $region256: #{tpu_custom_call.1} parent=179 // pred_fallthru
          _
        // Predicated region
        $region257: #{tpu_custom_call.1} parent=179 // pred_check
          %p1551 = pneg %p664
        $region258: #{tpu_custom_call.1} parent=179 // pred_check_branch
          %1553 = sbr.rel (%p1551) target = $region260
        $region259: #{tpu_custom_call.1} parent=179 // pred_region
          %1554 = dma.done [#allocation34], 256
        $region260: #{tpu_custom_call.1} parent=179 // pred_fallthru
          _
        // Predicated region
        $region261: #{tpu_custom_call.1} parent=179 // pred_check
          %p1555 = pneg %p685
        $region262: #{tpu_custom_call.1} parent=179 // pred_check_branch
          %1557 = sbr.rel (%p1555) target = $region264
        $region263: #{tpu_custom_call.1} parent=179 // pred_region
          %1558 = dma.done [#allocation34], 16
        $region264: #{tpu_custom_call.1} parent=179 // pred_fallthru
          _
        // Predicated region
        $region265: #{tpu_custom_call.1} parent=179 // pred_check
          %p1559 = pneg %p727
        $region266: #{tpu_custom_call.1} parent=179 // pred_check_branch
          %1561 = sbr.rel (%p1559) target = $region268
        $region267: #{tpu_custom_call.1} parent=179 // pred_region
          %1562 = dma.done [#allocation37], 256
        $region268: #{tpu_custom_call.1} parent=179 // pred_fallthru
          _
        // Predicated region
        $region269: #{tpu_custom_call.1} parent=179 // pred_check
          %p1563 = pneg %p748
        $region270: #{tpu_custom_call.1} parent=179 // pred_check_branch
          %1565 = sbr.rel (%p1563) target = $region272
        $region271: #{tpu_custom_call.1} parent=179 // pred_region
          %1566 = dma.done [#allocation37], 256
        $region272: #{tpu_custom_call.1} parent=179 // pred_fallthru
          _
        // Predicated region
        $region273: #{tpu_custom_call.1} parent=179 // pred_check
          %p1567 = pneg %p769
        $region274: #{tpu_custom_call.1} parent=179 // pred_check_branch
          %1569 = sbr.rel (%p1567) target = $region276
        $region275: #{tpu_custom_call.1} parent=179 // pred_region
          %1570 = dma.done [#allocation40], 16
        $region276: #{tpu_custom_call.1} parent=179 // pred_fallthru
          _
        // Predicated region
        $region277: #{tpu_custom_call.1} parent=179 // pred_check
          %p1571 = pneg %p811
        $region278: #{tpu_custom_call.1} parent=179 // pred_check_branch
          %1573 = sbr.rel (%p1571) target = $region280
        $region279: #{tpu_custom_call.1} parent=179 // pred_region
          %1574 = dma.done [#allocation40], 16
        $region280: #{tpu_custom_call.1} parent=179 // pred_fallthru
          _
        // Predicated region
        $region281: #{tpu_custom_call.1} parent=179 // pred_check
          %p1575 = pneg %p832
        $region282: #{tpu_custom_call.1} parent=179 // pred_check_branch
          %1577 = sbr.rel (%p1575) target = $region284
        $region283: #{tpu_custom_call.1} parent=179 // pred_region
          %1578 = dma.done [#allocation43], 256
        $region284: #{tpu_custom_call.1} parent=179 // pred_fallthru
          _
        // Predicated region
        $region285: #{tpu_custom_call.1} parent=179 // pred_check
          %p1579 = pneg %p853
        $region286: #{tpu_custom_call.1} parent=179 // pred_check_branch
          %1581 = sbr.rel (%p1579) target = $region288
        $region287: #{tpu_custom_call.1} parent=179 // pred_region
          %1582 = dma.done [#allocation43], 16
        $region288: #{tpu_custom_call.1} parent=179 // pred_fallthru
          _
        // Predicated region
        $region289: #{tpu_custom_call.1} parent=179 // pred_check
          %p1583 = pneg %p895
        $region290: #{tpu_custom_call.1} parent=179 // pred_check_branch
          %1585 = sbr.rel (%p1583) target = $region292
        $region291: #{tpu_custom_call.1} parent=179 // pred_region
          %1586 = dma.done [#allocation46], 256
        $region292: #{tpu_custom_call.1} parent=179 // pred_fallthru
          _
        // Predicated region
        $region293: #{tpu_custom_call.1} parent=179 // pred_check
          %p1587 = pneg %p937
        $region294: #{tpu_custom_call.1} parent=179 // pred_check_branch
          %1589 = sbr.rel (%p1587) target = $region296
        $region295: #{tpu_custom_call.1} parent=179 // pred_region
          %1590 = dma.done [#allocation46], 256
        $region296: #{tpu_custom_call.1} parent=179 // pred_fallthru
          _
        // Predicated region
        $region297: #{tpu_custom_call.1} parent=179 // pred_check
          %p1591 = pneg %p958
        $region298: #{tpu_custom_call.1} parent=179 // pred_check_branch
          %1593 = sbr.rel (%p1591) target = $region300
        $region299: #{tpu_custom_call.1} parent=179 // pred_region
          %1594 = dma.done [#allocation49], 256
        $region300: #{tpu_custom_call.1} parent=179 // pred_fallthru
          _
        %s1595 = sand.u32 %s127, 1
        %s1596 = scalar_lea.sflag [#allocation4], %s1595
        %s1597 = sand.u32 %s127, 1
        %s1598 = smul.addr %s1597, 8
        %s1599 = scalar_lea.vmem [#allocation3], %s1598
        %p1600 = pneg %p140
        %p1601 = pneg %p137
        %s1602 = sand.u32 %s119, 1
        %s1603 = scalar_lea.sflag [#allocation7], %s1602
        %s1604 = sand.u32 %s153, 1
        %s1605 = scalar_lea.vmem [#allocation6], %s1604
        %p1606 = pneg %p166
        %p1607 = pneg %p163
        %s1608 = sand.u32 %s119, 1
        %s1609 = scalar_lea.sflag [#allocation7], %s1608
        %s1610 = sand.u32 %s179, 1
        %s1611 = smul.addr %s1610, 8
        %s1612 = scalar_lea.vmem [#allocation8], %s1611
        %p1613 = pneg %p192
        %p1614 = pneg %p189
        %s1615 = sand.u32 %s119, 1
        %s1616 = scalar_lea.sflag [#allocation10], %s1615
        %s1617 = sand.u32 %s205, 1
        %s1618 = scalar_lea.vmem [#allocation9], %s1617
        %p1619 = pneg %p218
        %p1620 = pneg %p215
        %s1621 = sand.u32 %s119, 1
        %s1622 = scalar_lea.sflag [#allocation10], %s1621
        %s1623 = sand.u32 %s231, 1
        %s1624 = smul.addr %s1623, 8
        %s1625 = scalar_lea.vmem [#allocation11], %s1624
        %p1626 = pneg %p244
        %p1627 = pneg %p241
        %p1628 = pneg %p265
        %p1629 = pneg %p262
        %p1630 = pneg %p286
        %p1631 = pneg %p283
        %p1632 = pneg %p307
        %p1633 = pneg %p304
        %p1634 = pneg %p328
        %p1635 = pneg %p325
        %p1636 = pneg %p349
        %p1637 = pneg %p346
        %p1638 = pneg %p370
        %p1639 = pneg %p367
        %p1640 = pneg %p391
        %p1641 = pneg %p388
        %p1642 = pneg %p412
        %p1643 = pneg %p409
        %p1644 = pneg %p433
        %p1645 = pneg %p430
        %p1646 = pneg %p454
        %p1647 = pneg %p451
        %p1648 = pneg %p475
        %p1649 = pneg %p472
        %p1650 = pneg %p496
        %p1651 = pneg %p493
        %p1652 = pneg %p517
        %p1653 = pneg %p514
        %p1654 = pneg %p538
        %p1655 = pneg %p535
        %p1656 = pneg %p559
        %p1657 = pneg %p556
        %p1658 = pneg %p580
        %p1659 = pneg %p577
        %p1660 = pneg %p601
        %p1661 = pneg %p598
        %p1662 = pneg %p622
        %p1663 = pneg %p619
        %p1664 = pneg %p643
        %p1665 = pneg %p640
        %p1666 = pneg %p664
        %p1667 = pneg %p661
        %p1668 = pneg %p685
        %p1669 = pneg %p682
        %p1670 = pneg %p706
        %p1671 = pneg %p703
        %p1672 = pneg %p727
        %p1673 = pneg %p724
        %p1674 = pneg %p748
        %p1675 = pneg %p745
        %p1676 = pneg %p769
        %p1677 = pneg %p766
        %p1678 = pneg %p790
        %p1679 = pneg %p787
        %p1680 = pneg %p811
        %p1681 = pneg %p808
        %p1682 = pneg %p832
        %p1683 = pneg %p829
        %p1684 = pneg %p853
        %p1685 = pneg %p850
        %p1686 = pneg %p874
        %p1687 = pneg %p871
        %p1688 = pneg %p895
        %p1689 = pneg %p892
        %p1690 = pneg %p916
        %p1691 = pneg %p913
        %p1692 = pneg %p937
        %p1693 = pneg %p934
        %p1694 = pneg %p958
        %p1695 = pneg %p955
        %p1696 = pneg %p979
        %p1697 = pneg %p976
        %p1698 = pneg %p1005
        %p1699 = pneg %p1002
        %s1700 = sand.u32 %s992, 1
        %s1701 = scalar_lea.sflag [#allocation5], %s1700
        %s1702 = sand.u32 %s992, 1
        %s1703 = smul.addr %s1702, 8
        %s1704 = scalar_lea.vmem [#allocation50], %s1703
        %v1706 = vld [vmem:[%s1456] sm:$0xff]
        %v1707 = vmul.f32 %v1706, %v1706
        %vm1708 = vcmask 130048
        %v1709 = vsel %vm1708, %v1707, 0.0
        %1710 = vadd.xlane.f32.xlu0 %v1709
        %v1711 = vpop.xlane.xlu0 %1710
        %v1712 = vrsqrt.pop %v1711
        %v1713 = vmul.f32 %v1711, %v1712
        %vm1714 = vcmp.eq.f32.partialorder %v1711, inf
        %v1715 = vsel %vm1714, %v1711, %v1713
        %vm1716 = vcmp.eq.f32.partialorder %v1711, 0.0
        %v1717 = vand.u32 %v1711, 2147483648
        %v1718 = vsel %vm1716, %v1717, %v1715
        %v1719 = vmax.f32 %v1718, 1e-12
        %v1720 = vrcp.pop %v1719
        %v1721 = vmul.f32 %v1706, %v1720
        %v1722 = vld [vmem:[#allocation12] sm:$0xf]
        %v1723 = vld [vmem:[#allocation12 + $0x4] sm:$0xf]
        %v1724 = vpack.c.bf16 %v1721, %v1721
        %v1725 = vld [vmem:[#allocation14] sm:$0x1]
        %v1727 = vlaneseq
        %v1728 = vshrl.u32 %v1727, 7
        %v1729 = vsub.s32 0, %v1728
        %v1730 = vrot.slane %v1725, %v1729
        %v1734 = vunpack.c.l.b16 %v1722
        %v1735 = vunpack.c.l.b16 %v1723
        %v1736 = vpack.c.b16 %v1735, %v1734
        %v1739 = vsel %vm1708, %v1724, 0
        %1741 = vmatprep.subr.bf16.mxu0 0
        %1742 = vmatpush1.bf16.msra.mxu0 %v1736
        %1743 = vmatprep.subr.bf16.mxu0 0
        %1744 = vmatpush1.bf16.msra.mxu0 0
        %1745 = vmatprep.subr.bf16.mxu0 0
        %1746 = vmatpush1.bf16.msra.mxu0 0
        %1747 = vmatprep.subr.bf16.mxu0 0
        %1748 = vmatpush1.bf16.msra.mxu0 0
        %1749 = vmatprep.subr.bf16.mxu0 0
        %1750 = vmatpush1.bf16.msra.mxu0 0
        %1751 = vmatprep.subr.bf16.mxu0 0
        %1752 = vmatpush1.bf16.msra.mxu0 0
        %1753 = vmatprep.subr.bf16.mxu0 0
        %1754 = vmatpush1.bf16.msra.mxu0 0
        %1755 = vmatprep.subr.bf16.mxu0 0
        %1756 = vmatpush1.bf16.msra.mxu0 0
        %1757 = vmatprep.subr.bf16.mxu0 0
        %1758 = vmatpush1.bf16.msra.mxu0 0
        %1759 = vmatprep.subr.bf16.mxu0 0
        %1760 = vmatpush1.bf16.msra.mxu0 0
        %1761 = vmatprep.subr.bf16.mxu0 0
        %1762 = vmatpush1.bf16.msra.mxu0 0
        %1763 = vmatprep.subr.bf16.mxu0 0
        %1764 = vmatpush1.bf16.msra.mxu0 0
        %1765 = vmatprep.subr.bf16.mxu0 0
        %1766 = vmatpush1.bf16.msra.mxu0 0
        %1767 = vmatprep.subr.bf16.mxu0 0
        %1768 = vmatpush1.bf16.msra.mxu0 0
        %1769 = vmatprep.subr.bf16.mxu0 0
        %1770 = vmatpush1.bf16.msra.mxu0 0
        %1771 = vmatprep.subr.bf16.mxu0 0
        %1772 = vmatpush1.bf16.msra.mxu0 0
        %1773 = vmatprep.mubr.bf16.mxu0 0
        %1774 = vmatmul.mubr.bf16.gmra.mrb[0].mxu0 %v1739
        %v1775 = vpop.f32.mrb[0].mxu0
        %v1776 = vadd.f32 %v1730, %v1775
        %v1777 = vpop.f32.mrb[0].mxu0
        %v1778 = vpop.f32.mrb[0].mxu0
        %v1779 = vpop.f32.mrb[0].mxu0
        %1780 = vdwg.mxu0
        %v1781 = vld [vmem:[#allocation15] sm:$0x1]
        %v1783 = vlaneseq
        %v1784 = vshrl.u32 %v1783, 7
        %v1785 = vsub.s32 0, %v1784
        %v1786 = vrot.slane %v1781, %v1785
        %v1788 = vld [vmem:[%s1473] sm:$0xff]
        %v1789 = vld [vmem:[%s1464] sm:$0x1]
        %v1790 = vld [vmem:[%s1481] sm:$0x1]
        %v1791 = vld [vmem:[%s1490] sm:$0xff]
        %v1792 = vld [vmem:[#allocation17] sm:$0xf]
        %v1793 = vld [vmem:[#allocation17 + $0x4] sm:$0xf]
        %v1794 = vld [vmem:[#allocation17 + $0x8] sm:$0xf]
        %v1795 = vld [vmem:[#allocation17 + $0xc] sm:$0xf]
        %v1796 = vpack.c.bf16 %v1789, %v1789
        %v1797 = vld [vmem:[#allocation18] sm:$0x1]
        %v1802 = vunpack.c.l.b16 %v1792
        %v1803 = vunpack.c.l.b16 %v1793
        %v1804 = vunpack.c.l.b16 %v1794
        %v1805 = vunpack.c.l.b16 %v1795
        %v1806 = vpack.c.b16 %v1803, %v1802
        %v1807 = vpack.c.b16 %v1805, %v1804
        %vm1810 = vcmask 261120
        %v1812 = vsel %vm1810, %v1796, 0
        %1814 = vmatprep.subr.bf16.mxu0 0
        %1815 = vmatpush1.bf16.msra.mxu0 %v1806
        %1816 = vmatprep.subr.bf16.mxu0 0
        %1817 = vmatpush1.bf16.msra.mxu0 %v1807
        %1818 = vmatprep.subr.bf16.mxu0 0
        %1819 = vmatpush1.bf16.msra.mxu0 0
        %1820 = vmatprep.subr.bf16.mxu0 0
        %1821 = vmatpush1.bf16.msra.mxu0 0
        %1822 = vmatprep.subr.bf16.mxu0 0
        %1823 = vmatpush1.bf16.msra.mxu0 0
        %1824 = vmatprep.subr.bf16.mxu0 0
        %1825 = vmatpush1.bf16.msra.mxu0 0
        %1826 = vmatprep.subr.bf16.mxu0 0
        %1827 = vmatpush1.bf16.msra.mxu0 0
        %1828 = vmatprep.subr.bf16.mxu0 0
        %1829 = vmatpush1.bf16.msra.mxu0 0
        %1830 = vmatprep.subr.bf16.mxu0 0
        %1831 = vmatpush1.bf16.msra.mxu0 0
        %1832 = vmatprep.subr.bf16.mxu0 0
        %1833 = vmatpush1.bf16.msra.mxu0 0
        %1834 = vmatprep.subr.bf16.mxu0 0
        %1835 = vmatpush1.bf16.msra.mxu0 0
        %1836 = vmatprep.subr.bf16.mxu0 0
        %1837 = vmatpush1.bf16.msra.mxu0 0
        %1838 = vmatprep.subr.bf16.mxu0 0
        %1839 = vmatpush1.bf16.msra.mxu0 0
        %1840 = vmatprep.subr.bf16.mxu0 0
        %1841 = vmatpush1.bf16.msra.mxu0 0
        %1842 = vmatprep.subr.bf16.mxu0 0
        %1843 = vmatpush1.bf16.msra.mxu0 0
        %1844 = vmatprep.subr.bf16.mxu0 0
        %1845 = vmatpush1.bf16.msra.mxu0 0
        %1846 = vmatprep.mubr.bf16.mxu0 0
        %1847 = vmatmul.mubr.bf16.gmra.mrb[0].mxu0 %v1812
        %v1848 = vpop.f32.mrb[0].mxu0
        %v1849 = vadd.f32 %v1797, %v1848
        %v1850 = vpop.f32.mrb[0].mxu0
        %v1851 = vpop.f32.mrb[0].mxu0
        %v1852 = vpop.f32.mrb[0].mxu0
        %1853 = vdwg.mxu0
        %vm1854 = vcmp.gt.f32.partialorder %v1849, 0.0
        %v1855 = vmul.f32 %v1849, 1.442695
        %v1856 = vpow.pop %v1855
        %v1857 = vsub.f32 %v1856, 1.0
        %v1858 = vsel %vm1854, %v1849, %v1857
        %v1859 = vld [vmem:[#allocation21] sm:$0x1]
        %v1860 = vld [vmem:[#allocation2] sm:$0x1]
        %v1861 = vld [vmem:[%s29] sm:$0xf]
        %v1862 = vld [vmem:[%s29 + $0x4] sm:$0xf]
        %v1863 = vld [vmem:[%s29 + $0x8] sm:$0xf]
        %v1864 = vld [vmem:[%s29 + $0xc] sm:$0xf]
        %v1865 = vpack.c.bf16 %v1776, %v1776
        %v1866 = vld [vmem:[#allocation23] sm:$0x1]
        %v1868 = vlaneseq
        %v1869 = vshrl.u32 %v1868, 7
        %v1870 = vsub.s32 0, %v1869
        %v1871 = vrot.slane %v1866, %v1870
        %v1877 = vunpack.c.l.b16 %v1861
        %v1878 = vunpack.c.l.b16 %v1862
        %v1879 = vunpack.c.l.b16 %v1863
        %v1880 = vunpack.c.l.b16 %v1864
        %v1881 = vpack.c.b16 %v1878, %v1877
        %v1882 = vpack.c.b16 %v1880, %v1879
        %v1886 = vsel %vm1810, %v1865, 0
        %1888 = vmatprep.subr.bf16.mxu0 0
        %1889 = vmatpush1.bf16.msra.mxu0 %v1881
        %1890 = vmatprep.subr.bf16.mxu0 0
        %1891 = vmatpush1.bf16.msra.mxu0 %v1882
        %1892 = vmatprep.subr.bf16.mxu0 0
        %1893 = vmatpush1.bf16.msra.mxu0 0
        %1894 = vmatprep.subr.bf16.mxu0 0
        %1895 = vmatpush1.bf16.msra.mxu0 0
        %1896 = vmatprep.subr.bf16.mxu0 0
        %1897 = vmatpush1.bf16.msra.mxu0 0
        %1898 = vmatprep.subr.bf16.mxu0 0
        %1899 = vmatpush1.bf16.msra.mxu0 0
        %1900 = vmatprep.subr.bf16.mxu0 0
        %1901 = vmatpush1.bf16.msra.mxu0 0
        %1902 = vmatprep.subr.bf16.mxu0 0
        %1903 = vmatpush1.bf16.msra.mxu0 0
        %1904 = vmatprep.subr.bf16.mxu0 0
        %1905 = vmatpush1.bf16.msra.mxu0 0
        %1906 = vmatprep.subr.bf16.mxu0 0
        %1907 = vmatpush1.bf16.msra.mxu0 0
        %1908 = vmatprep.subr.bf16.mxu0 0
        %1909 = vmatpush1.bf16.msra.mxu0 0
        %1910 = vmatprep.subr.bf16.mxu0 0
        %1911 = vmatpush1.bf16.msra.mxu0 0
        %1912 = vmatprep.subr.bf16.mxu0 0
        %1913 = vmatpush1.bf16.msra.mxu0 0
        %1914 = vmatprep.subr.bf16.mxu0 0
        %1915 = vmatpush1.bf16.msra.mxu0 0
        %1916 = vmatprep.subr.bf16.mxu0 0
        %1917 = vmatpush1.bf16.msra.mxu0 0
        %1918 = vmatprep.subr.bf16.mxu0 0
        %1919 = vmatpush1.bf16.msra.mxu0 0
        %1920 = vmatprep.mubr.bf16.mxu0 0
        %1921 = vmatmul.mubr.bf16.gmra.mrb[0].mxu0 %v1886
        %v1922 = vpop.f32.mrb[0].mxu0
        %v1923 = vadd.f32 %v1871, %v1922
        %v1924 = vpop.f32.mrb[0].mxu0
        %v1925 = vpop.f32.mrb[0].mxu0
        %v1926 = vpop.f32.mrb[0].mxu0
        %1927 = vdwg.mxu0
        %v1928 = vld [vmem:[%s37] sm:$0xf]
        %v1929 = vld [vmem:[%s37 + $0x4] sm:$0xf]
        %v1930 = vld [vmem:[%s37 + $0x8] sm:$0xf]
        %v1931 = vld [vmem:[%s37 + $0xc] sm:$0xf]
        %v1932 = vld [vmem:[#allocation30] sm:$0x1]
        %v1934 = vlaneseq
        %v1935 = vshrl.u32 %v1934, 7
        %v1936 = vsub.s32 0, %v1935
        %v1937 = vrot.slane %v1932, %v1936
        %v1943 = vunpack.c.l.b16 %v1928
        %v1944 = vunpack.c.l.b16 %v1929
        %v1945 = vunpack.c.l.b16 %v1930
        %v1946 = vunpack.c.l.b16 %v1931
        %v1947 = vpack.c.b16 %v1944, %v1943
        %v1948 = vpack.c.b16 %v1946, %v1945
        %1951 = vmatprep.subr.bf16.mxu0 0
        %1952 = vmatpush1.bf16.msra.mxu0 %v1947
        %1953 = vmatprep.subr.bf16.mxu0 0
        %1954 = vmatpush1.bf16.msra.mxu0 %v1948
        %1955 = vmatprep.subr.bf16.mxu0 0
        %1956 = vmatpush1.bf16.msra.mxu0 0
        %1957 = vmatprep.subr.bf16.mxu0 0
        %1958 = vmatpush1.bf16.msra.mxu0 0
        %1959 = vmatprep.subr.bf16.mxu0 0
        %1960 = vmatpush1.bf16.msra.mxu0 0
        %1961 = vmatprep.subr.bf16.mxu0 0
        %1962 = vmatpush1.bf16.msra.mxu0 0
        %1963 = vmatprep.subr.bf16.mxu0 0
        %1964 = vmatpush1.bf16.msra.mxu0 0
        %1965 = vmatprep.subr.bf16.mxu0 0
        %1966 = vmatpush1.bf16.msra.mxu0 0
        %1967 = vmatprep.subr.bf16.mxu0 0
        %1968 = vmatpush1.bf16.msra.mxu0 0
        %1969 = vmatprep.subr.bf16.mxu0 0
        %1970 = vmatpush1.bf16.msra.mxu0 0
        %1971 = vmatprep.subr.bf16.mxu0 0
        %1972 = vmatpush1.bf16.msra.mxu0 0
        %1973 = vmatprep.subr.bf16.mxu0 0
        %1974 = vmatpush1.bf16.msra.mxu0 0
        %1975 = vmatprep.subr.bf16.mxu0 0
        %1976 = vmatpush1.bf16.msra.mxu0 0
        %1977 = vmatprep.subr.bf16.mxu0 0
        %1978 = vmatpush1.bf16.msra.mxu0 0
        %1979 = vmatprep.subr.bf16.mxu0 0
        %1980 = vmatpush1.bf16.msra.mxu0 0
        %1981 = vmatprep.subr.bf16.mxu0 0
        %1982 = vmatpush1.bf16.msra.mxu0 0
        %1983 = vmatprep.mubr.bf16.mxu0 0
        %1984 = vmatmul.mubr.bf16.gmra.mrb[0].mxu0 %v1886
        %v1985 = vpop.f32.mrb[0].mxu0
        %v1986 = vadd.f32 %v1937, %v1985
        %v1987 = vpop.f32.mrb[0].mxu0
        %v1988 = vpop.f32.mrb[0].mxu0
        %v1989 = vpop.f32.mrb[0].mxu0
        %1990 = vdwg.mxu0
        %v1991 = vld [vmem:[%s45] sm:$0xf]
        %v1992 = vld [vmem:[%s45 + $0x4] sm:$0xf]
        %v1993 = vld [vmem:[%s45 + $0x8] sm:$0xf]
        %v1994 = vld [vmem:[%s45 + $0xc] sm:$0xf]
        %v1995 = vld [vmem:[#allocation35] sm:$0x1]
        %v1997 = vlaneseq
        %v1998 = vshrl.u32 %v1997, 7
        %v1999 = vsub.s32 0, %v1998
        %v2000 = vrot.slane %v1995, %v1999
        %v2006 = vunpack.c.l.b16 %v1991
        %v2007 = vunpack.c.l.b16 %v1992
        %v2008 = vunpack.c.l.b16 %v1993
        %v2009 = vunpack.c.l.b16 %v1994
        %v2010 = vpack.c.b16 %v2007, %v2006
        %v2011 = vpack.c.b16 %v2009, %v2008
        %2014 = vmatprep.subr.bf16.mxu0 0
        %2015 = vmatpush1.bf16.msra.mxu0 %v2010
        %2016 = vmatprep.subr.bf16.mxu0 0
        %2017 = vmatpush1.bf16.msra.mxu0 %v2011
        %2018 = vmatprep.subr.bf16.mxu0 0
        %2019 = vmatpush1.bf16.msra.mxu0 0
        %2020 = vmatprep.subr.bf16.mxu0 0
        %2021 = vmatpush1.bf16.msra.mxu0 0
        %2022 = vmatprep.subr.bf16.mxu0 0
        %2023 = vmatpush1.bf16.msra.mxu0 0
        %2024 = vmatprep.subr.bf16.mxu0 0
        %2025 = vmatpush1.bf16.msra.mxu0 0
        %2026 = vmatprep.subr.bf16.mxu0 0
        %2027 = vmatpush1.bf16.msra.mxu0 0
        %2028 = vmatprep.subr.bf16.mxu0 0
        %2029 = vmatpush1.bf16.msra.mxu0 0
        %2030 = vmatprep.subr.bf16.mxu0 0
        %2031 = vmatpush1.bf16.msra.mxu0 0
        %2032 = vmatprep.subr.bf16.mxu0 0
        %2033 = vmatpush1.bf16.msra.mxu0 0
        %2034 = vmatprep.subr.bf16.mxu0 0
        %2035 = vmatpush1.bf16.msra.mxu0 0
        %2036 = vmatprep.subr.bf16.mxu0 0
        %2037 = vmatpush1.bf16.msra.mxu0 0
        %2038 = vmatprep.subr.bf16.mxu0 0
        %2039 = vmatpush1.bf16.msra.mxu0 0
        %2040 = vmatprep.subr.bf16.mxu0 0
        %2041 = vmatpush1.bf16.msra.mxu0 0
        %2042 = vmatprep.subr.bf16.mxu0 0
        %2043 = vmatpush1.bf16.msra.mxu0 0
        %2044 = vmatprep.subr.bf16.mxu0 0
        %2045 = vmatpush1.bf16.msra.mxu0 0
        %2046 = vmatprep.mubr.bf16.mxu0 0
        %2047 = vmatmul.mubr.bf16.gmra.mrb[0].mxu0 %v1886
        %v2048 = vpop.f32.mrb[0].mxu0
        %v2049 = vadd.f32 %v2000, %v2048
        %v2050 = vpop.f32.mrb[0].mxu0
        %v2051 = vpop.f32.mrb[0].mxu0
        %v2052 = vpop.f32.mrb[0].mxu0
        %2053 = vdwg.mxu0
        %v2054 = vld [vmem:[%s53] sm:$0xf]
        %v2055 = vld [vmem:[%s53 + $0x4] sm:$0xf]
        %v2056 = vld [vmem:[%s53 + $0x8] sm:$0xf]
        %v2057 = vld [vmem:[%s53 + $0xc] sm:$0xf]
        %v2058 = vld [vmem:[#allocation39] sm:$0x1]
        %v2060 = vlaneseq
        %v2061 = vshrl.u32 %v2060, 7
        %v2062 = vsub.s32 0, %v2061
        %v2063 = vrot.slane %v2058, %v2062
        %v2069 = vunpack.c.l.b16 %v2054
        %v2070 = vunpack.c.l.b16 %v2055
        %v2071 = vunpack.c.l.b16 %v2056
        %v2072 = vunpack.c.l.b16 %v2057
        %v2073 = vpack.c.b16 %v2070, %v2069
        %v2074 = vpack.c.b16 %v2072, %v2071
        %2077 = vmatprep.subr.bf16.mxu0 0
        %2078 = vmatpush1.bf16.msra.mxu0 %v2073
        %2079 = vmatprep.subr.bf16.mxu0 0
        %2080 = vmatpush1.bf16.msra.mxu0 %v2074
        %2081 = vmatprep.subr.bf16.mxu0 0
        %2082 = vmatpush1.bf16.msra.mxu0 0
        %2083 = vmatprep.subr.bf16.mxu0 0
        %2084 = vmatpush1.bf16.msra.mxu0 0
        %2085 = vmatprep.subr.bf16.mxu0 0
        %2086 = vmatpush1.bf16.msra.mxu0 0
        %2087 = vmatprep.subr.bf16.mxu0 0
        %2088 = vmatpush1.bf16.msra.mxu0 0
        %2089 = vmatprep.subr.bf16.mxu0 0
        %2090 = vmatpush1.bf16.msra.mxu0 0
        %2091 = vmatprep.subr.bf16.mxu0 0
        %2092 = vmatpush1.bf16.msra.mxu0 0
        %2093 = vmatprep.subr.bf16.mxu0 0
        %2094 = vmatpush1.bf16.msra.mxu0 0
        %2095 = vmatprep.subr.bf16.mxu0 0
        %2096 = vmatpush1.bf16.msra.mxu0 0
        %2097 = vmatprep.subr.bf16.mxu0 0
        %2098 = vmatpush1.bf16.msra.mxu0 0
        %2099 = vmatprep.subr.bf16.mxu0 0
        %2100 = vmatpush1.bf16.msra.mxu0 0
        %2101 = vmatprep.subr.bf16.mxu0 0
        %2102 = vmatpush1.bf16.msra.mxu0 0
        %2103 = vmatprep.subr.bf16.mxu0 0
        %2104 = vmatpush1.bf16.msra.mxu0 0
        %2105 = vmatprep.subr.bf16.mxu0 0
        %2106 = vmatpush1.bf16.msra.mxu0 0
        %2107 = vmatprep.subr.bf16.mxu0 0
        %2108 = vmatpush1.bf16.msra.mxu0 0
        %2109 = vmatprep.mubr.bf16.mxu0 0
        %2110 = vmatmul.mubr.bf16.gmra.mrb[0].mxu0 %v1886
        %v2111 = vpop.f32.mrb[0].mxu0
        %v2112 = vadd.f32 %v2063, %v2111
        %v2113 = vpop.f32.mrb[0].mxu0
        %v2114 = vpop.f32.mrb[0].mxu0
        %v2115 = vpop.f32.mrb[0].mxu0
        %2116 = vdwg.mxu0
        %v2117 = vld [vmem:[%s21] sm:$0xf]
        %v2118 = vld [vmem:[%s21 + $0x4] sm:$0xf]
        %v2119 = vld [vmem:[%s21 + $0x8] sm:$0xf]
        %v2120 = vld [vmem:[%s21 + $0xc] sm:$0xf]
        %v2121 = vpack.c.bf16 %v1858, %v1858
        %v2122 = vld [vmem:[#allocation20] sm:$0x1]
        %v2127 = vunpack.c.l.b16 %v2117
        %v2128 = vunpack.c.l.b16 %v2118
        %v2129 = vunpack.c.l.b16 %v2119
        %v2130 = vunpack.c.l.b16 %v2120
        %v2131 = vpack.c.b16 %v2128, %v2127
        %v2132 = vpack.c.b16 %v2130, %v2129
        %v2136 = vsel %vm1810, %v2121, 0
        %2138 = vmatprep.subr.bf16.mxu0 0
        %2139 = vmatpush1.bf16.msra.mxu0 %v2131
        %2140 = vmatprep.subr.bf16.mxu0 0
        %2141 = vmatpush1.bf16.msra.mxu0 %v2132
        %2142 = vmatprep.subr.bf16.mxu0 0
        %2143 = vmatpush1.bf16.msra.mxu0 0
        %2144 = vmatprep.subr.bf16.mxu0 0
        %2145 = vmatpush1.bf16.msra.mxu0 0
        %2146 = vmatprep.subr.bf16.mxu0 0
        %2147 = vmatpush1.bf16.msra.mxu0 0
        %2148 = vmatprep.subr.bf16.mxu0 0
        %2149 = vmatpush1.bf16.msra.mxu0 0
        %2150 = vmatprep.subr.bf16.mxu0 0
        %2151 = vmatpush1.bf16.msra.mxu0 0
        %2152 = vmatprep.subr.bf16.mxu0 0
        %2153 = vmatpush1.bf16.msra.mxu0 0
        %2154 = vmatprep.subr.bf16.mxu0 0
        %2155 = vmatpush1.bf16.msra.mxu0 0
        %2156 = vmatprep.subr.bf16.mxu0 0
        %2157 = vmatpush1.bf16.msra.mxu0 0
        %2158 = vmatprep.subr.bf16.mxu0 0
        %2159 = vmatpush1.bf16.msra.mxu0 0
        %2160 = vmatprep.subr.bf16.mxu0 0
        %2161 = vmatpush1.bf16.msra.mxu0 0
        %2162 = vmatprep.subr.bf16.mxu0 0
        %2163 = vmatpush1.bf16.msra.mxu0 0
        %2164 = vmatprep.subr.bf16.mxu0 0
        %2165 = vmatpush1.bf16.msra.mxu0 0
        %2166 = vmatprep.subr.bf16.mxu0 0
        %2167 = vmatpush1.bf16.msra.mxu0 0
        %2168 = vmatprep.subr.bf16.mxu0 0
        %2169 = vmatpush1.bf16.msra.mxu0 0
        %2170 = vmatprep.mubr.bf16.mxu0 0
        %2171 = vmatmul.mubr.bf16.gmra.mrb[0].mxu0 %v2136
        %v2172 = vpop.f32.mrb[0].mxu0
        %v2173 = vadd.f32 %v2122, %v2172
        %v2174 = vpop.f32.mrb[0].mxu0
        %v2175 = vpop.f32.mrb[0].mxu0
        %v2176 = vpop.f32.mrb[0].mxu0
        %2177 = vdwg.mxu0
        %v2178 = vmul.f32 %v2173, %v1859
        %v2179 = vpack.c.bf16 %v2178, %v2178
        %v2180 = vpack.c.bf16 %v1788, %v1788
        %2182 = vset.pattern.permute.xlu0 0
        %2183 = vperm.xlu0 %2182, %v1860
        %v2184 = vpop.permute.xlu0 %2183
        %v2186 = vlaneseq
        %v2187 = vshrl.u32 %v2186, 7
        %v2188 = vsub.s32 0, %v2187
        %v2189 = vrot.slane %v2184, %v2188
        %v2191 = vsel %vm1810, %v2179, 0
        %v2194 = vsel %vm1810, %v2180, 0
        %2196 = vmatprep.subr.bf16.mxu0 0
        %2197 = vmatpush1.bf16.xpose.msra.mxu0 %v2194
        %2198 = vmatprep.subr.bf16.mxu0 0
        %2199 = vmatpush1.bf16.xpose.msra.mxu0 0
        %2200 = vmatprep.subr.bf16.mxu0 0
        %2201 = vmatpush1.bf16.xpose.msra.mxu0 0
        %2202 = vmatprep.subr.bf16.mxu0 0
        %2203 = vmatpush1.bf16.xpose.msra.mxu0 0
        %2204 = vmatprep.subr.bf16.mxu0 0
        %2205 = vmatpush1.bf16.xpose.msra.mxu0 0
        %2206 = vmatprep.subr.bf16.mxu0 0
        %2207 = vmatpush1.bf16.xpose.msra.mxu0 0
        %2208 = vmatprep.subr.bf16.mxu0 0
        %2209 = vmatpush1.bf16.xpose.msra.mxu0 0
        %2210 = vmatprep.subr.bf16.mxu0 0
        %2211 = vmatpush1.bf16.xpose.msra.mxu0 0
        %2212 = vmatprep.subr.bf16.mxu0 0
        %2213 = vmatpush1.bf16.xpose.msra.mxu0 0
        %2214 = vmatprep.subr.bf16.mxu0 0
        %2215 = vmatpush1.bf16.xpose.msra.mxu0 0
        %2216 = vmatprep.subr.bf16.mxu0 0
        %2217 = vmatpush1.bf16.xpose.msra.mxu0 0
        %2218 = vmatprep.subr.bf16.mxu0 0
        %2219 = vmatpush1.bf16.xpose.msra.mxu0 0
        %2220 = vmatprep.subr.bf16.mxu0 0
        %2221 = vmatpush1.bf16.xpose.msra.mxu0 0
        %2222 = vmatprep.subr.bf16.mxu0 0
        %2223 = vmatpush1.bf16.xpose.msra.mxu0 0
        %2224 = vmatprep.subr.bf16.mxu0 0
        %2225 = vmatpush1.bf16.xpose.msra.mxu0 0
        %2226 = vmatprep.subr.bf16.mxu0 0
        %2227 = vmatpush1.bf16.xpose.msra.mxu0 0
        %2228 = vmatprep.mubr.bf16.mxu0 0
        %2229 = vmatmul.mubr.bf16.gmra.mrb[0].mxu0 %v2191
        %v2230 = vpop.f32.mrb[0].mxu0
        %v2231 = vadd.f32 %v2189, %v2230
        %v2232 = vpop.f32.mrb[0].mxu0
        %v2233 = vpop.f32.mrb[0].mxu0
        %v2234 = vpop.f32.mrb[0].mxu0
        %2235 = vdwg.mxu0
        %vm2236 = vcmp.gt.f32.partialorder %v1790, 0.5
        %v2237 = vsel %vm2236, -1e+30, %v2231
        %vm2238 = vcmask 57344
        %v2239 = vsel %vm2238, %v2237, -inf
        %2240 = vmax.xlane.f32.xlu0 %v2239
        %v2241 = vpop.xlane.xlu0 %2240
        %v2242 = vsub.f32 %v2237, %v2241
        %v2243 = vmul.f32 %v2242, 1.442695
        %v2244 = vpow.pop %v2243
        %v2245 = vsel %vm2238, %v2244, 0.0
        %2246 = vadd.xlane.f32.xlu0 %v2245
        %v2247 = vpop.xlane.xlu0 %2246
        %v2248 = vrcp.pop %v2247
        %v2249 = vmul.f32 %v2244, %v2248
        %v2250 = vpack.c.bf16 %v2249, %v2249
        %vm2251 = vcmask 64512
        %v2253 = vsel %vm2251, %v2250, 0
        %vm2255 = vcmask 1043456
        %v2256 = vsel %vm2255, %v2180, 0
        %2258 = vmatprep.subr.bf16.mxu0 0
        %2259 = vmatpush1.bf16.msra.mxu0 %v2256
        %2260 = vmatprep.subr.bf16.mxu0 0
        %2261 = vmatpush1.bf16.msra.mxu0 0
        %2262 = vmatprep.subr.bf16.mxu0 0
        %2263 = vmatpush1.bf16.msra.mxu0 0
        %2264 = vmatprep.subr.bf16.mxu0 0
        %2265 = vmatpush1.bf16.msra.mxu0 0
        %2266 = vmatprep.subr.bf16.mxu0 0
        %2267 = vmatpush1.bf16.msra.mxu0 0
        %2268 = vmatprep.subr.bf16.mxu0 0
        %2269 = vmatpush1.bf16.msra.mxu0 0
        %2270 = vmatprep.subr.bf16.mxu0 0
        %2271 = vmatpush1.bf16.msra.mxu0 0
        %2272 = vmatprep.subr.bf16.mxu0 0
        %2273 = vmatpush1.bf16.msra.mxu0 0
        %2274 = vmatprep.subr.bf16.mxu0 0
        %2275 = vmatpush1.bf16.msra.mxu0 0
        %2276 = vmatprep.subr.bf16.mxu0 0
        %2277 = vmatpush1.bf16.msra.mxu0 0
        %2278 = vmatprep.subr.bf16.mxu0 0
        %2279 = vmatpush1.bf16.msra.mxu0 0
        %2280 = vmatprep.subr.bf16.mxu0 0
        %2281 = vmatpush1.bf16.msra.mxu0 0
        %2282 = vmatprep.subr.bf16.mxu0 0
        %2283 = vmatpush1.bf16.msra.mxu0 0
        %2284 = vmatprep.subr.bf16.mxu0 0
        %2285 = vmatpush1.bf16.msra.mxu0 0
        %2286 = vmatprep.subr.bf16.mxu0 0
        %2287 = vmatpush1.bf16.msra.mxu0 0
        %2288 = vmatprep.subr.bf16.mxu0 0
        %2289 = vmatpush1.bf16.msra.mxu0 0
        %2290 = vmatprep.mubr.bf16.mxu0 0
        %2291 = vmatmul.mubr.bf16.gmra.mrb[0].mxu0 %v2253
        %v2292 = vpop.f32.mrb[0].mxu0
        %v2293 = vadd.f32 0.0, %v2292
        %v2294 = vpop.f32.mrb[0].mxu0
        %v2295 = vpop.f32.mrb[0].mxu0
        %v2296 = vpop.f32.mrb[0].mxu0
        %2297 = vdwg.mxu0
        %v2298 = vld [vmem:[#allocation24] sm:$0xf]
        %v2299 = vld [vmem:[#allocation24 + $0x4] sm:$0xf]
        %v2300 = vld [vmem:[#allocation24 + $0x8] sm:$0xf]
        %v2301 = vld [vmem:[#allocation24 + $0xc] sm:$0xf]
        %v2302 = vpack.c.bf16 %v1786, %v1786
        %v2303 = vld [vmem:[#allocation26] sm:$0x1]
        %v2305 = vlaneseq
        %v2306 = vshrl.u32 %v2305, 7
        %v2307 = vsub.s32 0, %v2306
        %v2308 = vrot.slane %v2303, %v2307
        %v2314 = vunpack.c.l.b16 %v2298
        %v2315 = vunpack.c.l.b16 %v2299
        %v2316 = vunpack.c.l.b16 %v2300
        %v2317 = vunpack.c.l.b16 %v2301
        %v2318 = vpack.c.b16 %v2315, %v2314
        %v2319 = vpack.c.b16 %v2317, %v2316
        %v2323 = vsel %vm1810, %v2302, 0
        %2325 = vmatprep.subr.bf16.mxu0 0
        %2326 = vmatpush1.bf16.msra.mxu0 %v2318
        %2327 = vmatprep.subr.bf16.mxu0 0
        %2328 = vmatpush1.bf16.msra.mxu0 %v2319
        %2329 = vmatprep.subr.bf16.mxu0 0
        %2330 = vmatpush1.bf16.msra.mxu0 0
        %2331 = vmatprep.subr.bf16.mxu0 0
        %2332 = vmatpush1.bf16.msra.mxu0 0
        %2333 = vmatprep.subr.bf16.mxu0 0
        %2334 = vmatpush1.bf16.msra.mxu0 0
        %2335 = vmatprep.subr.bf16.mxu0 0
        %2336 = vmatpush1.bf16.msra.mxu0 0
        %2337 = vmatprep.subr.bf16.mxu0 0
        %2338 = vmatpush1.bf16.msra.mxu0 0
        %2339 = vmatprep.subr.bf16.mxu0 0
        %2340 = vmatpush1.bf16.msra.mxu0 0
        %2341 = vmatprep.subr.bf16.mxu0 0
        %2342 = vmatpush1.bf16.msra.mxu0 0
        %2343 = vmatprep.subr.bf16.mxu0 0
        %2344 = vmatpush1.bf16.msra.mxu0 0
        %2345 = vmatprep.subr.bf16.mxu0 0
        %2346 = vmatpush1.bf16.msra.mxu0 0
        %2347 = vmatprep.subr.bf16.mxu0 0
        %2348 = vmatpush1.bf16.msra.mxu0 0
        %2349 = vmatprep.subr.bf16.mxu0 0
        %2350 = vmatpush1.bf16.msra.mxu0 0
        %2351 = vmatprep.subr.bf16.mxu0 0
        %2352 = vmatpush1.bf16.msra.mxu0 0
        %2353 = vmatprep.subr.bf16.mxu0 0
        %2354 = vmatpush1.bf16.msra.mxu0 0
        %2355 = vmatprep.subr.bf16.mxu0 0
        %2356 = vmatpush1.bf16.msra.mxu0 0
        %2357 = vmatprep.mubr.bf16.mxu0 0
        %2358 = vmatmul.mubr.bf16.gmra.mrb[0].mxu0 %v2323
        %v2359 = vpop.f32.mrb[0].mxu0
        %v2360 = vadd.f32 %v2308, %v2359
        %v2361 = vpop.f32.mrb[0].mxu0
        %v2362 = vpop.f32.mrb[0].mxu0
        %v2363 = vpop.f32.mrb[0].mxu0
        %2364 = vdwg.mxu0
        %v2365 = vmul.f32 %v1923, %v2360
        %v2366 = vld [vmem:[#allocation27] sm:$0xf]
        %v2367 = vld [vmem:[#allocation27 + $0x4] sm:$0xf]
        %v2368 = vld [vmem:[#allocation27 + $0x8] sm:$0xf]
        %v2369 = vld [vmem:[#allocation27 + $0xc] sm:$0xf]
        %v2374 = vunpack.c.l.b16 %v2366
        %v2375 = vunpack.c.l.b16 %v2367
        %v2376 = vunpack.c.l.b16 %v2368
        %v2377 = vunpack.c.l.b16 %v2369
        %v2378 = vpack.c.b16 %v2375, %v2374
        %v2379 = vpack.c.b16 %v2377, %v2376
        %2382 = vmatprep.subr.bf16.mxu0 0
        %2383 = vmatpush1.bf16.msra.mxu0 %v2378
        %2384 = vmatprep.subr.bf16.mxu0 0
        %2385 = vmatpush1.bf16.msra.mxu0 %v2379
        %2386 = vmatprep.subr.bf16.mxu0 0
        %2387 = vmatpush1.bf16.msra.mxu0 0
        %2388 = vmatprep.subr.bf16.mxu0 0
        %2389 = vmatpush1.bf16.msra.mxu0 0
        %2390 = vmatprep.subr.bf16.mxu0 0
        %2391 = vmatpush1.bf16.msra.mxu0 0
        %2392 = vmatprep.subr.bf16.mxu0 0
        %2393 = vmatpush1.bf16.msra.mxu0 0
        %2394 = vmatprep.subr.bf16.mxu0 0
        %2395 = vmatpush1.bf16.msra.mxu0 0
        %2396 = vmatprep.subr.bf16.mxu0 0
        %2397 = vmatpush1.bf16.msra.mxu0 0
        %2398 = vmatprep.subr.bf16.mxu0 0
        %2399 = vmatpush1.bf16.msra.mxu0 0
        %2400 = vmatprep.subr.bf16.mxu0 0
        %2401 = vmatpush1.bf16.msra.mxu0 0
        %2402 = vmatprep.subr.bf16.mxu0 0
        %2403 = vmatpush1.bf16.msra.mxu0 0
        %2404 = vmatprep.subr.bf16.mxu0 0
        %2405 = vmatpush1.bf16.msra.mxu0 0
        %2406 = vmatprep.subr.bf16.mxu0 0
        %2407 = vmatpush1.bf16.msra.mxu0 0
        %2408 = vmatprep.subr.bf16.mxu0 0
        %2409 = vmatpush1.bf16.msra.mxu0 0
        %2410 = vmatprep.subr.bf16.mxu0 0
        %2411 = vmatpush1.bf16.msra.mxu0 0
        %2412 = vmatprep.subr.bf16.mxu0 0
        %2413 = vmatpush1.bf16.msra.mxu0 0
        %2414 = vmatprep.mubr.bf16.mxu0 0
        %2415 = vmatmul.mubr.bf16.gmra.mrb[0].mxu0 %v2323
        %v2416 = vpop.f32.mrb[0].mxu0
        %v2417 = vadd.f32 0.0, %v2416
        %v2418 = vpop.f32.mrb[0].mxu0
        %v2419 = vpop.f32.mrb[0].mxu0
        %v2420 = vpop.f32.mrb[0].mxu0
        %2421 = vdwg.mxu0
        %v2422 = vadd.f32 %v1986, %v2417
        %v2423 = vld [vmem:[#allocation29] sm:$0xf]
        %v2424 = vld [vmem:[#allocation29 + $0x4] sm:$0xf]
        %v2425 = vld [vmem:[#allocation29 + $0x8] sm:$0xf]
        %v2426 = vld [vmem:[#allocation29 + $0xc] sm:$0xf]
        %v2427 = vpack.c.bf16 %v2365, %v2365
        %v2432 = vunpack.c.l.b16 %v2423
        %v2433 = vunpack.c.l.b16 %v2424
        %v2434 = vunpack.c.l.b16 %v2425
        %v2435 = vunpack.c.l.b16 %v2426
        %v2436 = vpack.c.b16 %v2433, %v2432
        %v2437 = vpack.c.b16 %v2435, %v2434
        %v2441 = vsel %vm1810, %v2427, 0
        %2443 = vmatprep.subr.bf16.mxu0 0
        %2444 = vmatpush1.bf16.msra.mxu0 %v2436
        %2445 = vmatprep.subr.bf16.mxu0 0
        %2446 = vmatpush1.bf16.msra.mxu0 %v2437
        %2447 = vmatprep.subr.bf16.mxu0 0
        %2448 = vmatpush1.bf16.msra.mxu0 0
        %2449 = vmatprep.subr.bf16.mxu0 0
        %2450 = vmatpush1.bf16.msra.mxu0 0
        %2451 = vmatprep.subr.bf16.mxu0 0
        %2452 = vmatpush1.bf16.msra.mxu0 0
        %2453 = vmatprep.subr.bf16.mxu0 0
        %2454 = vmatpush1.bf16.msra.mxu0 0
        %2455 = vmatprep.subr.bf16.mxu0 0
        %2456 = vmatpush1.bf16.msra.mxu0 0
        %2457 = vmatprep.subr.bf16.mxu0 0
        %2458 = vmatpush1.bf16.msra.mxu0 0
        %2459 = vmatprep.subr.bf16.mxu0 0
        %2460 = vmatpush1.bf16.msra.mxu0 0
        %2461 = vmatprep.subr.bf16.mxu0 0
        %2462 = vmatpush1.bf16.msra.mxu0 0
        %2463 = vmatprep.subr.bf16.mxu0 0
        %2464 = vmatpush1.bf16.msra.mxu0 0
        %2465 = vmatprep.subr.bf16.mxu0 0
        %2466 = vmatpush1.bf16.msra.mxu0 0
        %2467 = vmatprep.subr.bf16.mxu0 0
        %2468 = vmatpush1.bf16.msra.mxu0 0
        %2469 = vmatprep.subr.bf16.mxu0 0
        %2470 = vmatpush1.bf16.msra.mxu0 0
        %2471 = vmatprep.subr.bf16.mxu0 0
        %2472 = vmatpush1.bf16.msra.mxu0 0
        %2473 = vmatprep.subr.bf16.mxu0 0
        %2474 = vmatpush1.bf16.msra.mxu0 0
        %2475 = vmatprep.mubr.bf16.mxu0 0
        %2476 = vmatmul.mubr.bf16.gmra.mrb[0].mxu0 %v2441
        %v2477 = vpop.f32.mrb[0].mxu0
        %v2478 = vadd.f32 0.0, %v2477
        %v2479 = vpop.f32.mrb[0].mxu0
        %v2480 = vpop.f32.mrb[0].mxu0
        %v2481 = vpop.f32.mrb[0].mxu0
        %2482 = vdwg.mxu0
        %v2483 = vadd.f32 %v2422, %v2478
        %v2484 = vld [vmem:[#allocation32] sm:$0xf]
        %v2485 = vld [vmem:[#allocation32 + $0x4] sm:$0xf]
        %v2486 = vld [vmem:[#allocation32 + $0x8] sm:$0xf]
        %v2487 = vld [vmem:[#allocation32 + $0xc] sm:$0xf]
        %v2492 = vunpack.c.l.b16 %v2484
        %v2493 = vunpack.c.l.b16 %v2485
        %v2494 = vunpack.c.l.b16 %v2486
        %v2495 = vunpack.c.l.b16 %v2487
        %v2496 = vpack.c.b16 %v2493, %v2492
        %v2497 = vpack.c.b16 %v2495, %v2494
        %2500 = vmatprep.subr.bf16.mxu0 0
        %2501 = vmatpush1.bf16.msra.mxu0 %v2496
        %2502 = vmatprep.subr.bf16.mxu0 0
        %2503 = vmatpush1.bf16.msra.mxu0 %v2497
        %2504 = vmatprep.subr.bf16.mxu0 0
        %2505 = vmatpush1.bf16.msra.mxu0 0
        %2506 = vmatprep.subr.bf16.mxu0 0
        %2507 = vmatpush1.bf16.msra.mxu0 0
        %2508 = vmatprep.subr.bf16.mxu0 0
        %2509 = vmatpush1.bf16.msra.mxu0 0
        %2510 = vmatprep.subr.bf16.mxu0 0
        %2511 = vmatpush1.bf16.msra.mxu0 0
        %2512 = vmatprep.subr.bf16.mxu0 0
        %2513 = vmatpush1.bf16.msra.mxu0 0
        %2514 = vmatprep.subr.bf16.mxu0 0
        %2515 = vmatpush1.bf16.msra.mxu0 0
        %2516 = vmatprep.subr.bf16.mxu0 0
        %2517 = vmatpush1.bf16.msra.mxu0 0
        %2518 = vmatprep.subr.bf16.mxu0 0
        %2519 = vmatpush1.bf16.msra.mxu0 0
        %2520 = vmatprep.subr.bf16.mxu0 0
        %2521 = vmatpush1.bf16.msra.mxu0 0
        %2522 = vmatprep.subr.bf16.mxu0 0
        %2523 = vmatpush1.bf16.msra.mxu0 0
        %2524 = vmatprep.subr.bf16.mxu0 0
        %2525 = vmatpush1.bf16.msra.mxu0 0
        %2526 = vmatprep.subr.bf16.mxu0 0
        %2527 = vmatpush1.bf16.msra.mxu0 0
        %2528 = vmatprep.subr.bf16.mxu0 0
        %2529 = vmatpush1.bf16.msra.mxu0 0
        %2530 = vmatprep.subr.bf16.mxu0 0
        %2531 = vmatpush1.bf16.msra.mxu0 0
        %2532 = vmatprep.mubr.bf16.mxu0 0
        %2533 = vmatmul.mubr.bf16.gmra.mrb[0].mxu0 %v2323
        %v2534 = vpop.f32.mrb[0].mxu0
        %v2535 = vadd.f32 0.0, %v2534
        %v2536 = vpop.f32.mrb[0].mxu0
        %v2537 = vpop.f32.mrb[0].mxu0
        %v2538 = vpop.f32.mrb[0].mxu0
        %2539 = vdwg.mxu0
        %v2540 = vadd.f32 %v2049, %v2535
        %v2541 = vld [vmem:[#allocation33] sm:$0xf]
        %v2542 = vld [vmem:[#allocation33 + $0x4] sm:$0xf]
        %v2543 = vld [vmem:[#allocation33 + $0x8] sm:$0xf]
        %v2544 = vld [vmem:[#allocation33 + $0xc] sm:$0xf]
        %v2549 = vunpack.c.l.b16 %v2541
        %v2550 = vunpack.c.l.b16 %v2542
        %v2551 = vunpack.c.l.b16 %v2543
        %v2552 = vunpack.c.l.b16 %v2544
        %v2553 = vpack.c.b16 %v2550, %v2549
        %v2554 = vpack.c.b16 %v2552, %v2551
        %2557 = vmatprep.subr.bf16.mxu0 0
        %2558 = vmatpush1.bf16.msra.mxu0 %v2553
        %2559 = vmatprep.subr.bf16.mxu0 0
        %2560 = vmatpush1.bf16.msra.mxu0 %v2554
        %2561 = vmatprep.subr.bf16.mxu0 0
        %2562 = vmatpush1.bf16.msra.mxu0 0
        %2563 = vmatprep.subr.bf16.mxu0 0
        %2564 = vmatpush1.bf16.msra.mxu0 0
        %2565 = vmatprep.subr.bf16.mxu0 0
        %2566 = vmatpush1.bf16.msra.mxu0 0
        %2567 = vmatprep.subr.bf16.mxu0 0
        %2568 = vmatpush1.bf16.msra.mxu0 0
        %2569 = vmatprep.subr.bf16.mxu0 0
        %2570 = vmatpush1.bf16.msra.mxu0 0
        %2571 = vmatprep.subr.bf16.mxu0 0
        %2572 = vmatpush1.bf16.msra.mxu0 0
        %2573 = vmatprep.subr.bf16.mxu0 0
        %2574 = vmatpush1.bf16.msra.mxu0 0
        %2575 = vmatprep.subr.bf16.mxu0 0
        %2576 = vmatpush1.bf16.msra.mxu0 0
        %2577 = vmatprep.subr.bf16.mxu0 0
        %2578 = vmatpush1.bf16.msra.mxu0 0
        %2579 = vmatprep.subr.bf16.mxu0 0
        %2580 = vmatpush1.bf16.msra.mxu0 0
        %2581 = vmatprep.subr.bf16.mxu0 0
        %2582 = vmatpush1.bf16.msra.mxu0 0
        %2583 = vmatprep.subr.bf16.mxu0 0
        %2584 = vmatpush1.bf16.msra.mxu0 0
        %2585 = vmatprep.subr.bf16.mxu0 0
        %2586 = vmatpush1.bf16.msra.mxu0 0
        %2587 = vmatprep.subr.bf16.mxu0 0
        %2588 = vmatpush1.bf16.msra.mxu0 0
        %2589 = vmatprep.mubr.bf16.mxu0 0
        %2590 = vmatmul.mubr.bf16.gmra.mrb[0].mxu0 %v2441
        %v2591 = vpop.f32.mrb[0].mxu0
        %v2592 = vadd.f32 0.0, %v2591
        %v2593 = vpop.f32.mrb[0].mxu0
        %v2594 = vpop.f32.mrb[0].mxu0
        %v2595 = vpop.f32.mrb[0].mxu0
        %2596 = vdwg.mxu0
        %v2597 = vadd.f32 %v2540, %v2592
        %v2598 = vld [vmem:[%s61] sm:$0xf]
        %v2599 = vld [vmem:[%s61 + $0x4] sm:$0xf]
        %v2600 = vld [vmem:[%s61 + $0x8] sm:$0xf]
        %v2601 = vld [vmem:[%s61 + $0xc] sm:$0xf]
        %v2602 = vpack.c.bf16 %v2293, %v2293
        %v2603 = vld [vmem:[#allocation41] sm:$0x1]
        %v2608 = vunpack.c.l.b16 %v2598
        %v2609 = vunpack.c.l.b16 %v2599
        %v2610 = vunpack.c.l.b16 %v2600
        %v2611 = vunpack.c.l.b16 %v2601
        %v2612 = vpack.c.b16 %v2609, %v2608
        %v2613 = vpack.c.b16 %v2611, %v2610
        %v2617 = vsel %vm1810, %v2602, 0
        %2619 = vmatprep.subr.bf16.mxu0 0
        %2620 = vmatpush1.bf16.msra.mxu0 %v2612
        %2621 = vmatprep.subr.bf16.mxu0 0
        %2622 = vmatpush1.bf16.msra.mxu0 %v2613
        %2623 = vmatprep.subr.bf16.mxu0 0
        %2624 = vmatpush1.bf16.msra.mxu0 0
        %2625 = vmatprep.subr.bf16.mxu0 0
        %2626 = vmatpush1.bf16.msra.mxu0 0
        %2627 = vmatprep.subr.bf16.mxu0 0
        %2628 = vmatpush1.bf16.msra.mxu0 0
        %2629 = vmatprep.subr.bf16.mxu0 0
        %2630 = vmatpush1.bf16.msra.mxu0 0
        %2631 = vmatprep.subr.bf16.mxu0 0
        %2632 = vmatpush1.bf16.msra.mxu0 0
        %2633 = vmatprep.subr.bf16.mxu0 0
        %2634 = vmatpush1.bf16.msra.mxu0 0
        %2635 = vmatprep.subr.bf16.mxu0 0
        %2636 = vmatpush1.bf16.msra.mxu0 0
        %2637 = vmatprep.subr.bf16.mxu0 0
        %2638 = vmatpush1.bf16.msra.mxu0 0
        %2639 = vmatprep.subr.bf16.mxu0 0
        %2640 = vmatpush1.bf16.msra.mxu0 0
        %2641 = vmatprep.subr.bf16.mxu0 0
        %2642 = vmatpush1.bf16.msra.mxu0 0
        %2643 = vmatprep.subr.bf16.mxu0 0
        %2644 = vmatpush1.bf16.msra.mxu0 0
        %2645 = vmatprep.subr.bf16.mxu0 0
        %2646 = vmatpush1.bf16.msra.mxu0 0
        %2647 = vmatprep.subr.bf16.mxu0 0
        %2648 = vmatpush1.bf16.msra.mxu0 0
        %2649 = vmatprep.subr.bf16.mxu0 0
        %2650 = vmatpush1.bf16.msra.mxu0 0
        %2651 = vmatprep.mubr.bf16.mxu0 0
        %2652 = vmatmul.mubr.bf16.gmra.mrb[0].mxu0 %v2617
        %v2653 = vpop.f32.mrb[0].mxu0
        %v2654 = vadd.f32 %v2603, %v2653
        %v2655 = vpop.f32.mrb[0].mxu0
        %v2656 = vpop.f32.mrb[0].mxu0
        %v2657 = vpop.f32.mrb[0].mxu0
        %2658 = vdwg.mxu0
        %v2659 = vlaneseq
        %v2660 = vshrl.u32 %v2659, 7
        %v2661 = vsub.s32 0, %v2660
        %v2662 = vrot.slane %v2654, %v2661
        %v2663 = vmul.f32 %v2597, %v2662
        %v2664 = vld [vmem:[#allocation36] sm:$0xf]
        %v2665 = vld [vmem:[#allocation36 + $0x4] sm:$0xf]
        %v2666 = vld [vmem:[#allocation36 + $0x8] sm:$0xf]
        %v2667 = vld [vmem:[#allocation36 + $0xc] sm:$0xf]
        %v2672 = vunpack.c.l.b16 %v2664
        %v2673 = vunpack.c.l.b16 %v2665
        %v2674 = vunpack.c.l.b16 %v2666
        %v2675 = vunpack.c.l.b16 %v2667
        %v2676 = vpack.c.b16 %v2673, %v2672
        %v2677 = vpack.c.b16 %v2675, %v2674
        %2680 = vmatprep.subr.bf16.mxu0 0
        %2681 = vmatpush1.bf16.msra.mxu0 %v2676
        %2682 = vmatprep.subr.bf16.mxu0 0
        %2683 = vmatpush1.bf16.msra.mxu0 %v2677
        %2684 = vmatprep.subr.bf16.mxu0 0
        %2685 = vmatpush1.bf16.msra.mxu0 0
        %2686 = vmatprep.subr.bf16.mxu0 0
        %2687 = vmatpush1.bf16.msra.mxu0 0
        %2688 = vmatprep.subr.bf16.mxu0 0
        %2689 = vmatpush1.bf16.msra.mxu0 0
        %2690 = vmatprep.subr.bf16.mxu0 0
        %2691 = vmatpush1.bf16.msra.mxu0 0
        %2692 = vmatprep.subr.bf16.mxu0 0
        %2693 = vmatpush1.bf16.msra.mxu0 0
        %2694 = vmatprep.subr.bf16.mxu0 0
        %2695 = vmatpush1.bf16.msra.mxu0 0
        %2696 = vmatprep.subr.bf16.mxu0 0
        %2697 = vmatpush1.bf16.msra.mxu0 0
        %2698 = vmatprep.subr.bf16.mxu0 0
        %2699 = vmatpush1.bf16.msra.mxu0 0
        %2700 = vmatprep.subr.bf16.mxu0 0
        %2701 = vmatpush1.bf16.msra.mxu0 0
        %2702 = vmatprep.subr.bf16.mxu0 0
        %2703 = vmatpush1.bf16.msra.mxu0 0
        %2704 = vmatprep.subr.bf16.mxu0 0
        %2705 = vmatpush1.bf16.msra.mxu0 0
        %2706 = vmatprep.subr.bf16.mxu0 0
        %2707 = vmatpush1.bf16.msra.mxu0 0
        %2708 = vmatprep.subr.bf16.mxu0 0
        %2709 = vmatpush1.bf16.msra.mxu0 0
        %2710 = vmatprep.subr.bf16.mxu0 0
        %2711 = vmatpush1.bf16.msra.mxu0 0
        %2712 = vmatprep.mubr.bf16.mxu0 0
        %2713 = vmatmul.mubr.bf16.gmra.mrb[0].mxu0 %v2323
        %v2714 = vpop.f32.mrb[0].mxu0
        %v2715 = vadd.f32 0.0, %v2714
        %v2716 = vpop.f32.mrb[0].mxu0
        %v2717 = vpop.f32.mrb[0].mxu0
        %v2718 = vpop.f32.mrb[0].mxu0
        %2719 = vdwg.mxu0
        %v2720 = vadd.f32 %v2112, %v2715
        %v2721 = vld [vmem:[#allocation38] sm:$0xf]
        %v2722 = vld [vmem:[#allocation38 + $0x4] sm:$0xf]
        %v2723 = vld [vmem:[#allocation38 + $0x8] sm:$0xf]
        %v2724 = vld [vmem:[#allocation38 + $0xc] sm:$0xf]
        %v2729 = vunpack.c.l.b16 %v2721
        %v2730 = vunpack.c.l.b16 %v2722
        %v2731 = vunpack.c.l.b16 %v2723
        %v2732 = vunpack.c.l.b16 %v2724
        %v2733 = vpack.c.b16 %v2730, %v2729
        %v2734 = vpack.c.b16 %v2732, %v2731
        %2737 = vmatprep.subr.bf16.mxu0 0
        %2738 = vmatpush1.bf16.msra.mxu0 %v2733
        %2739 = vmatprep.subr.bf16.mxu0 0
        %2740 = vmatpush1.bf16.msra.mxu0 %v2734
        %2741 = vmatprep.subr.bf16.mxu0 0
        %2742 = vmatpush1.bf16.msra.mxu0 0
        %2743 = vmatprep.subr.bf16.mxu0 0
        %2744 = vmatpush1.bf16.msra.mxu0 0
        %2745 = vmatprep.subr.bf16.mxu0 0
        %2746 = vmatpush1.bf16.msra.mxu0 0
        %2747 = vmatprep.subr.bf16.mxu0 0
        %2748 = vmatpush1.bf16.msra.mxu0 0
        %2749 = vmatprep.subr.bf16.mxu0 0
        %2750 = vmatpush1.bf16.msra.mxu0 0
        %2751 = vmatprep.subr.bf16.mxu0 0
        %2752 = vmatpush1.bf16.msra.mxu0 0
        %2753 = vmatprep.subr.bf16.mxu0 0
        %2754 = vmatpush1.bf16.msra.mxu0 0
        %2755 = vmatprep.subr.bf16.mxu0 0
        %2756 = vmatpush1.bf16.msra.mxu0 0
        %2757 = vmatprep.subr.bf16.mxu0 0
        %2758 = vmatpush1.bf16.msra.mxu0 0
        %2759 = vmatprep.subr.bf16.mxu0 0
        %2760 = vmatpush1.bf16.msra.mxu0 0
        %2761 = vmatprep.subr.bf16.mxu0 0
        %2762 = vmatpush1.bf16.msra.mxu0 0
        %2763 = vmatprep.subr.bf16.mxu0 0
        %2764 = vmatpush1.bf16.msra.mxu0 0
        %2765 = vmatprep.subr.bf16.mxu0 0
        %2766 = vmatpush1.bf16.msra.mxu0 0
        %2767 = vmatprep.subr.bf16.mxu0 0
        %2768 = vmatpush1.bf16.msra.mxu0 0
        %2769 = vmatprep.mubr.bf16.mxu0 0
        %2770 = vmatmul.mubr.bf16.gmra.mrb[0].mxu0 %v2441
        %v2771 = vpop.f32.mrb[0].mxu0
        %v2772 = vadd.f32 0.0, %v2771
        %v2773 = vpop.f32.mrb[0].mxu0
        %v2774 = vpop.f32.mrb[0].mxu0
        %v2775 = vpop.f32.mrb[0].mxu0
        %2776 = vdwg.mxu0
        %v2777 = vadd.f32 %v2720, %v2772
        %v2778 = vld [vmem:[#allocation42] sm:$0xf]
        %v2779 = vld [vmem:[#allocation42 + $0x4] sm:$0xf]
        %v2780 = vld [vmem:[#allocation42 + $0x8] sm:$0xf]
        %v2781 = vld [vmem:[#allocation42 + $0xc] sm:$0xf]
        %v2782 = vld [vmem:[#allocation44] sm:$0x1]
        %v2787 = vunpack.c.l.b16 %v2778
        %v2788 = vunpack.c.l.b16 %v2779
        %v2789 = vunpack.c.l.b16 %v2780
        %v2790 = vunpack.c.l.b16 %v2781
        %v2791 = vpack.c.b16 %v2788, %v2787
        %v2792 = vpack.c.b16 %v2790, %v2789
        %2795 = vmatprep.subr.bf16.mxu0 0
        %2796 = vmatpush1.bf16.msra.mxu0 %v2791
        %2797 = vmatprep.subr.bf16.mxu0 0
        %2798 = vmatpush1.bf16.msra.mxu0 %v2792
        %2799 = vmatprep.subr.bf16.mxu0 0
        %2800 = vmatpush1.bf16.msra.mxu0 0
        %2801 = vmatprep.subr.bf16.mxu0 0
        %2802 = vmatpush1.bf16.msra.mxu0 0
        %2803 = vmatprep.subr.bf16.mxu0 0
        %2804 = vmatpush1.bf16.msra.mxu0 0
        %2805 = vmatprep.subr.bf16.mxu0 0
        %2806 = vmatpush1.bf16.msra.mxu0 0
        %2807 = vmatprep.subr.bf16.mxu0 0
        %2808 = vmatpush1.bf16.msra.mxu0 0
        %2809 = vmatprep.subr.bf16.mxu0 0
        %2810 = vmatpush1.bf16.msra.mxu0 0
        %2811 = vmatprep.subr.bf16.mxu0 0
        %2812 = vmatpush1.bf16.msra.mxu0 0
        %2813 = vmatprep.subr.bf16.mxu0 0
        %2814 = vmatpush1.bf16.msra.mxu0 0
        %2815 = vmatprep.subr.bf16.mxu0 0
        %2816 = vmatpush1.bf16.msra.mxu0 0
        %2817 = vmatprep.subr.bf16.mxu0 0
        %2818 = vmatpush1.bf16.msra.mxu0 0
        %2819 = vmatprep.subr.bf16.mxu0 0
        %2820 = vmatpush1.bf16.msra.mxu0 0
        %2821 = vmatprep.subr.bf16.mxu0 0
        %2822 = vmatpush1.bf16.msra.mxu0 0
        %2823 = vmatprep.subr.bf16.mxu0 0
        %2824 = vmatpush1.bf16.msra.mxu0 0
        %2825 = vmatprep.subr.bf16.mxu0 0
        %2826 = vmatpush1.bf16.msra.mxu0 0
        %2827 = vmatprep.mubr.bf16.mxu0 0
        %2828 = vmatmul.mubr.bf16.gmra.mrb[0].mxu0 %v2617
        %v2829 = vpop.f32.mrb[0].mxu0
        %v2830 = vadd.f32 %v2782, %v2829
        %v2831 = vpop.f32.mrb[0].mxu0
        %v2832 = vpop.f32.mrb[0].mxu0
        %v2833 = vpop.f32.mrb[0].mxu0
        %2834 = vdwg.mxu0
        %v2835 = vlaneseq
        %v2836 = vshrl.u32 %v2835, 7
        %v2837 = vsub.s32 0, %v2836
        %v2838 = vrot.slane %v2830, %v2837
        %v2839 = vmul.f32 %v2777, %v2838
        %v2840 = vpack.c.bf16 %v2483, %v2483
        %v2841 = vpack.c.bf16 %v2663, %v2663
        %v2843 = vsel %vm1810, %v2840, 0
        %v2846 = vsel %vm1810, %v2841, 0
        %2848 = vmatprep.subr.bf16.mxu0 0
        %2849 = vmatpush1.bf16.xpose.msra.mxu0 %v2846
        %2850 = vmatprep.subr.bf16.mxu0 0
        %2851 = vmatpush1.bf16.xpose.msra.mxu0 0
        %2852 = vmatprep.subr.bf16.mxu0 0
        %2853 = vmatpush1.bf16.xpose.msra.mxu0 0
        %2854 = vmatprep.subr.bf16.mxu0 0
        %2855 = vmatpush1.bf16.xpose.msra.mxu0 0
        %2856 = vmatprep.subr.bf16.mxu0 0
        %2857 = vmatpush1.bf16.xpose.msra.mxu0 0
        %2858 = vmatprep.subr.bf16.mxu0 0
        %2859 = vmatpush1.bf16.xpose.msra.mxu0 0
        %2860 = vmatprep.subr.bf16.mxu0 0
        %2861 = vmatpush1.bf16.xpose.msra.mxu0 0
        %2862 = vmatprep.subr.bf16.mxu0 0
        %2863 = vmatpush1.bf16.xpose.msra.mxu0 0
        %2864 = vmatprep.subr.bf16.mxu0 0
        %2865 = vmatpush1.bf16.xpose.msra.mxu0 0
        %2866 = vmatprep.subr.bf16.mxu0 0
        %2867 = vmatpush1.bf16.xpose.msra.mxu0 0
        %2868 = vmatprep.subr.bf16.mxu0 0
        %2869 = vmatpush1.bf16.xpose.msra.mxu0 0
        %2870 = vmatprep.subr.bf16.mxu0 0
        %2871 = vmatpush1.bf16.xpose.msra.mxu0 0
        %2872 = vmatprep.subr.bf16.mxu0 0
        %2873 = vmatpush1.bf16.xpose.msra.mxu0 0
        %2874 = vmatprep.subr.bf16.mxu0 0
        %2875 = vmatpush1.bf16.xpose.msra.mxu0 0
        %2876 = vmatprep.subr.bf16.mxu0 0
        %2877 = vmatpush1.bf16.xpose.msra.mxu0 0
        %2878 = vmatprep.subr.bf16.mxu0 0
        %2879 = vmatpush1.bf16.xpose.msra.mxu0 0
        %2880 = vmatprep.mubr.bf16.mxu0 0
        %2881 = vmatmul.mubr.bf16.gmra.mrb[0].mxu0 %v2843
        %v2882 = vpop.f32.mrb[0].mxu0
        %v2883 = vadd.f32 0.0, %v2882
        %v2884 = vpop.f32.mrb[0].mxu0
        %v2885 = vpop.f32.mrb[0].mxu0
        %v2886 = vpop.f32.mrb[0].mxu0
        %2887 = vdwg.mxu0
        %v2888 = vmul.f32 %v2883, 0.17677669
        %vm2889 = vcmp.gt.f32.partialorder %v1791, 0.5
        %v2890 = vsel %vm2889, -1e+30, %v2888
        %v2891 = vsel %vm2251, %v2890, -inf
        %2892 = vmax.xlane.f32.xlu0 %v2891
        %v2893 = vpop.xlane.xlu0 %2892
        %v2894 = vsub.f32 %v2890, %v2893
        %v2895 = vmul.f32 %v2894, 1.442695
        %v2896 = vpow.pop %v2895
        %v2897 = vsel %vm2251, %v2896, 0.0
        %2898 = vadd.xlane.f32.xlu0 %v2897
        %v2899 = vpop.xlane.xlu0 %2898
        %v2900 = vrcp.pop %v2899
        %v2901 = vmul.f32 %v2896, %v2900
        %v2902 = vpack.c.bf16 %v2901, %v2901
        %v2903 = vpack.c.bf16 %v2839, %v2839
        %v2905 = vsel %vm2251, %v2902, 0
        %v2908 = vsel %vm2255, %v2903, 0
        %2910 = vmatprep.subr.bf16.mxu0 0
        %2911 = vmatpush1.bf16.msra.mxu0 %v2908
        %2912 = vmatprep.subr.bf16.mxu0 0
        %2913 = vmatpush1.bf16.msra.mxu0 0
        %2914 = vmatprep.subr.bf16.mxu0 0
        %2915 = vmatpush1.bf16.msra.mxu0 0
        %2916 = vmatprep.subr.bf16.mxu0 0
        %2917 = vmatpush1.bf16.msra.mxu0 0
        %2918 = vmatprep.subr.bf16.mxu0 0
        %2919 = vmatpush1.bf16.msra.mxu0 0
        %2920 = vmatprep.subr.bf16.mxu0 0
        %2921 = vmatpush1.bf16.msra.mxu0 0
        %2922 = vmatprep.subr.bf16.mxu0 0
        %2923 = vmatpush1.bf16.msra.mxu0 0
        %2924 = vmatprep.subr.bf16.mxu0 0
        %2925 = vmatpush1.bf16.msra.mxu0 0
        %2926 = vmatprep.subr.bf16.mxu0 0
        %2927 = vmatpush1.bf16.msra.mxu0 0
        %2928 = vmatprep.subr.bf16.mxu0 0
        %2929 = vmatpush1.bf16.msra.mxu0 0
        %2930 = vmatprep.subr.bf16.mxu0 0
        %2931 = vmatpush1.bf16.msra.mxu0 0
        %2932 = vmatprep.subr.bf16.mxu0 0
        %2933 = vmatpush1.bf16.msra.mxu0 0
        %2934 = vmatprep.subr.bf16.mxu0 0
        %2935 = vmatpush1.bf16.msra.mxu0 0
        %2936 = vmatprep.subr.bf16.mxu0 0
        %2937 = vmatpush1.bf16.msra.mxu0 0
        %2938 = vmatprep.subr.bf16.mxu0 0
        %2939 = vmatpush1.bf16.msra.mxu0 0
        %2940 = vmatprep.subr.bf16.mxu0 0
        %2941 = vmatpush1.bf16.msra.mxu0 0
        %2942 = vmatprep.mubr.bf16.mxu0 0
        %2943 = vmatmul.mubr.bf16.gmra.mrb[0].mxu0 %v2905
        %v2944 = vpop.f32.mrb[0].mxu0
        %v2945 = vadd.f32 0.0, %v2944
        %v2946 = vpop.f32.mrb[0].mxu0
        %v2947 = vpop.f32.mrb[0].mxu0
        %v2948 = vpop.f32.mrb[0].mxu0
        %2949 = vdwg.mxu0
        %v2950 = vld [vmem:[%s69] sm:$0xf]
        %v2951 = vld [vmem:[%s69 + $0x4] sm:$0xf]
        %v2952 = vld [vmem:[%s69 + $0x8] sm:$0xf]
        %v2953 = vld [vmem:[%s69 + $0xc] sm:$0xf]
        %v2954 = vld [vmem:[#allocation45] sm:$0xf]
        %v2955 = vld [vmem:[#allocation45 + $0x4] sm:$0xf]
        %v2956 = vld [vmem:[#allocation45 + $0x8] sm:$0xf]
        %v2957 = vld [vmem:[#allocation45 + $0xc] sm:$0xf]
        %v2958 = vpack.c.bf16 %v2945, %v2945
        %v2963 = vunpack.c.l.b16 %v2954
        %v2964 = vunpack.c.l.b16 %v2955
        %v2965 = vunpack.c.l.b16 %v2956
        %v2966 = vunpack.c.l.b16 %v2957
        %v2967 = vpack.c.b16 %v2964, %v2963
        %v2968 = vpack.c.b16 %v2966, %v2965
        %v2972 = vsel %vm1810, %v2958, 0
        %2974 = vmatprep.subr.bf16.mxu0 0
        %2975 = vmatpush1.bf16.msra.mxu0 %v2967
        %2976 = vmatprep.subr.bf16.mxu0 0
        %2977 = vmatpush1.bf16.msra.mxu0 %v2968
        %2978 = vmatprep.subr.bf16.mxu0 0
        %2979 = vmatpush1.bf16.msra.mxu0 0
        %2980 = vmatprep.subr.bf16.mxu0 0
        %2981 = vmatpush1.bf16.msra.mxu0 0
        %2982 = vmatprep.subr.bf16.mxu0 0
        %2983 = vmatpush1.bf16.msra.mxu0 0
        %2984 = vmatprep.subr.bf16.mxu0 0
        %2985 = vmatpush1.bf16.msra.mxu0 0
        %2986 = vmatprep.subr.bf16.mxu0 0
        %2987 = vmatpush1.bf16.msra.mxu0 0
        %2988 = vmatprep.subr.bf16.mxu0 0
        %2989 = vmatpush1.bf16.msra.mxu0 0
        %2990 = vmatprep.subr.bf16.mxu0 0
        %2991 = vmatpush1.bf16.msra.mxu0 0
        %2992 = vmatprep.subr.bf16.mxu0 0
        %2993 = vmatpush1.bf16.msra.mxu0 0
        %2994 = vmatprep.subr.bf16.mxu0 0
        %2995 = vmatpush1.bf16.msra.mxu0 0
        %2996 = vmatprep.subr.bf16.mxu0 0
        %2997 = vmatpush1.bf16.msra.mxu0 0
        %2998 = vmatprep.subr.bf16.mxu0 0
        %2999 = vmatpush1.bf16.msra.mxu0 0
        %3000 = vmatprep.subr.bf16.mxu0 0
        %3001 = vmatpush1.bf16.msra.mxu0 0
        %3002 = vmatprep.subr.bf16.mxu0 0
        %3003 = vmatpush1.bf16.msra.mxu0 0
        %3004 = vmatprep.subr.bf16.mxu0 0
        %3005 = vmatpush1.bf16.msra.mxu0 0
        %3006 = vmatprep.mubr.bf16.mxu0 0
        %3007 = vmatmul.mubr.bf16.gmra.mrb[0].mxu0 %v2972
        %v3008 = vpop.f32.mrb[0].mxu0
        %v3009 = vadd.f32 0.0, %v3008
        %v3010 = vpop.f32.mrb[0].mxu0
        %v3011 = vpop.f32.mrb[0].mxu0
        %v3012 = vpop.f32.mrb[0].mxu0
        %3013 = vdwg.mxu0
        %v3018 = vunpack.c.l.b16 %v2950
        %v3019 = vunpack.c.l.b16 %v2951
        %v3020 = vunpack.c.l.b16 %v2952
        %v3021 = vunpack.c.l.b16 %v2953
        %v3022 = vpack.c.b16 %v3019, %v3018
        %v3023 = vpack.c.b16 %v3021, %v3020
        %3026 = vmatprep.subr.bf16.mxu0 0
        %3027 = vmatpush1.bf16.msra.mxu0 %v3022
        %3028 = vmatprep.subr.bf16.mxu0 0
        %3029 = vmatpush1.bf16.msra.mxu0 %v3023
        %3030 = vmatprep.subr.bf16.mxu0 0
        %3031 = vmatpush1.bf16.msra.mxu0 0
        %3032 = vmatprep.subr.bf16.mxu0 0
        %3033 = vmatpush1.bf16.msra.mxu0 0
        %3034 = vmatprep.subr.bf16.mxu0 0
        %3035 = vmatpush1.bf16.msra.mxu0 0
        %3036 = vmatprep.subr.bf16.mxu0 0
        %3037 = vmatpush1.bf16.msra.mxu0 0
        %3038 = vmatprep.subr.bf16.mxu0 0
        %3039 = vmatpush1.bf16.msra.mxu0 0
        %3040 = vmatprep.subr.bf16.mxu0 0
        %3041 = vmatpush1.bf16.msra.mxu0 0
        %3042 = vmatprep.subr.bf16.mxu0 0
        %3043 = vmatpush1.bf16.msra.mxu0 0
        %3044 = vmatprep.subr.bf16.mxu0 0
        %3045 = vmatpush1.bf16.msra.mxu0 0
        %3046 = vmatprep.subr.bf16.mxu0 0
        %3047 = vmatpush1.bf16.msra.mxu0 0
        %3048 = vmatprep.subr.bf16.mxu0 0
        %3049 = vmatpush1.bf16.msra.mxu0 0
        %3050 = vmatprep.subr.bf16.mxu0 0
        %3051 = vmatpush1.bf16.msra.mxu0 0
        %3052 = vmatprep.subr.bf16.mxu0 0
        %3053 = vmatpush1.bf16.msra.mxu0 0
        %3054 = vmatprep.subr.bf16.mxu0 0
        %3055 = vmatpush1.bf16.msra.mxu0 0
        %3056 = vmatprep.subr.bf16.mxu0 0
        %3057 = vmatpush1.bf16.msra.mxu0 0
        %3058 = vmatprep.mubr.bf16.mxu0 0
        %3059 = vmatmul.mubr.bf16.gmra.mrb[0].mxu0 %v2323
        %v3060 = vpop.f32.mrb[0].mxu0
        %v3061 = vadd.f32 %v3009, %v3060
        %v3062 = vpop.f32.mrb[0].mxu0
        %v3063 = vpop.f32.mrb[0].mxu0
        %v3064 = vpop.f32.mrb[0].mxu0
        %3065 = vdwg.mxu0
        %v3066 = vld [vmem:[%s73] sm:$0x1]
        %v3068 = vlaneseq
        %v3069 = vshrl.u32 %v3068, 7
        %v3070 = vsub.s32 0, %v3069
        %v3071 = vrot.slane %v3066, %v3070
        %v3073 = vadd.f32 %v3061, %v3071
        %s3074 = scalar_lea.vmem %s21, 16
        %v3075 = vld [vmem:[%s3074] sm:$0xf]
        %v3076 = vld [vmem:[%s3074 + $0x4] sm:$0xf]
        %v3077 = vld [vmem:[%s3074 + $0x8] sm:$0xf]
        %v3078 = vld [vmem:[%s3074 + $0xc] sm:$0xf]
        %s3079 = scalar_lea.vmem [#allocation20], 1
        %v3080 = vld [vmem:[%s3079] sm:$0x1]
        %v3085 = vunpack.c.l.b16 %v3075
        %v3086 = vunpack.c.l.b16 %v3076
        %v3087 = vunpack.c.l.b16 %v3077
        %v3088 = vunpack.c.l.b16 %v3078
        %v3089 = vpack.c.b16 %v3086, %v3085
        %v3090 = vpack.c.b16 %v3088, %v3087
        %3093 = vmatprep.subr.bf16.mxu0 0
        %3094 = vmatpush1.bf16.msra.mxu0 %v3089
        %3095 = vmatprep.subr.bf16.mxu0 0
        %3096 = vmatpush1.bf16.msra.mxu0 %v3090
        %3097 = vmatprep.subr.bf16.mxu0 0
        %3098 = vmatpush1.bf16.msra.mxu0 0
        %3099 = vmatprep.subr.bf16.mxu0 0
        %3100 = vmatpush1.bf16.msra.mxu0 0
        %3101 = vmatprep.subr.bf16.mxu0 0
        %3102 = vmatpush1.bf16.msra.mxu0 0
        %3103 = vmatprep.subr.bf16.mxu0 0
        %3104 = vmatpush1.bf16.msra.mxu0 0
        %3105 = vmatprep.subr.bf16.mxu0 0
        %3106 = vmatpush1.bf16.msra.mxu0 0
        %3107 = vmatprep.subr.bf16.mxu0 0
        %3108 = vmatpush1.bf16.msra.mxu0 0
        %3109 = vmatprep.subr.bf16.mxu0 0
        %3110 = vmatpush1.bf16.msra.mxu0 0
        %3111 = vmatprep.subr.bf16.mxu0 0
        %3112 = vmatpush1.bf16.msra.mxu0 0
        %3113 = vmatprep.subr.bf16.mxu0 0
        %3114 = vmatpush1.bf16.msra.mxu0 0
        %3115 = vmatprep.subr.bf16.mxu0 0
        %3116 = vmatpush1.bf16.msra.mxu0 0
        %3117 = vmatprep.subr.bf16.mxu0 0
        %3118 = vmatpush1.bf16.msra.mxu0 0
        %3119 = vmatprep.subr.bf16.mxu0 0
        %3120 = vmatpush1.bf16.msra.mxu0 0
        %3121 = vmatprep.subr.bf16.mxu0 0
        %3122 = vmatpush1.bf16.msra.mxu0 0
        %3123 = vmatprep.subr.bf16.mxu0 0
        %3124 = vmatpush1.bf16.msra.mxu0 0
        %3125 = vmatprep.mubr.bf16.mxu0 0
        %3126 = vmatmul.mubr.bf16.gmra.mrb[0].mxu0 %v2136
        %v3127 = vpop.f32.mrb[0].mxu0
        %v3128 = vadd.f32 %v3080, %v3127
        %v3129 = vpop.f32.mrb[0].mxu0
        %v3130 = vpop.f32.mrb[0].mxu0
        %v3131 = vpop.f32.mrb[0].mxu0
        %3132 = vdwg.mxu0
        %v3133 = vmul.f32 %v3128, %v1859
        %v3134 = vpack.c.bf16 %v3133, %v3133
        %v3136 = vsel %vm1810, %v3134, 0
        %3138 = vmatprep.subr.bf16.mxu0 0
        %3139 = vmatpush1.bf16.xpose.msra.mxu0 %v2194
        %3140 = vmatprep.subr.bf16.mxu0 0
        %3141 = vmatpush1.bf16.xpose.msra.mxu0 0
        %3142 = vmatprep.subr.bf16.mxu0 0
        %3143 = vmatpush1.bf16.xpose.msra.mxu0 0
        %3144 = vmatprep.subr.bf16.mxu0 0
        %3145 = vmatpush1.bf16.xpose.msra.mxu0 0
        %3146 = vmatprep.subr.bf16.mxu0 0
        %3147 = vmatpush1.bf16.xpose.msra.mxu0 0
        %3148 = vmatprep.subr.bf16.mxu0 0
        %3149 = vmatpush1.bf16.xpose.msra.mxu0 0
        %3150 = vmatprep.subr.bf16.mxu0 0
        %3151 = vmatpush1.bf16.xpose.msra.mxu0 0
        %3152 = vmatprep.subr.bf16.mxu0 0
        %3153 = vmatpush1.bf16.xpose.msra.mxu0 0
        %3154 = vmatprep.subr.bf16.mxu0 0
        %3155 = vmatpush1.bf16.xpose.msra.mxu0 0
        %3156 = vmatprep.subr.bf16.mxu0 0
        %3157 = vmatpush1.bf16.xpose.msra.mxu0 0
        %3158 = vmatprep.subr.bf16.mxu0 0
        %3159 = vmatpush1.bf16.xpose.msra.mxu0 0
        %3160 = vmatprep.subr.bf16.mxu0 0
        %3161 = vmatpush1.bf16.xpose.msra.mxu0 0
        %3162 = vmatprep.subr.bf16.mxu0 0
        %3163 = vmatpush1.bf16.xpose.msra.mxu0 0
        %3164 = vmatprep.subr.bf16.mxu0 0
        %3165 = vmatpush1.bf16.xpose.msra.mxu0 0
        %3166 = vmatprep.subr.bf16.mxu0 0
        %3167 = vmatpush1.bf16.xpose.msra.mxu0 0
        %3168 = vmatprep.subr.bf16.mxu0 0
        %3169 = vmatpush1.bf16.xpose.msra.mxu0 0
        %3170 = vmatprep.mubr.bf16.mxu0 0
        %3171 = vmatmul.mubr.bf16.gmra.mrb[0].mxu0 %v3136
        %v3172 = vpop.f32.mrb[0].mxu0
        %v3173 = vadd.f32 %v2189, %v3172
        %v3174 = vpop.f32.mrb[0].mxu0
        %v3175 = vpop.f32.mrb[0].mxu0
        %v3176 = vpop.f32.mrb[0].mxu0
        %3177 = vdwg.mxu0
        %v3178 = vsel %vm2236, -1e+30, %v3173
        %v3179 = vsel %vm2238, %v3178, -inf
        %3180 = vmax.xlane.f32.xlu0 %v3179
        %v3181 = vpop.xlane.xlu0 %3180
        %v3182 = vsub.f32 %v3178, %v3181
        %v3183 = vmul.f32 %v3182, 1.442695
        %v3184 = vpow.pop %v3183
        %v3185 = vsel %vm2238, %v3184, 0.0
        %3186 = vadd.xlane.f32.xlu0 %v3185
        %v3187 = vpop.xlane.xlu0 %3186
        %v3188 = vrcp.pop %v3187
        %v3189 = vmul.f32 %v3184, %v3188
        %v3190 = vpack.c.bf16 %v3189, %v3189
        %v3192 = vsel %vm2251, %v3190, 0
        %3194 = vmatprep.subr.bf16.mxu0 0
        %3195 = vmatpush1.bf16.msra.mxu0 %v2256
        %3196 = vmatprep.subr.bf16.mxu0 0
        %3197 = vmatpush1.bf16.msra.mxu0 0
        %3198 = vmatprep.subr.bf16.mxu0 0
        %3199 = vmatpush1.bf16.msra.mxu0 0
        %3200 = vmatprep.subr.bf16.mxu0 0
        %3201 = vmatpush1.bf16.msra.mxu0 0
        %3202 = vmatprep.subr.bf16.mxu0 0
        %3203 = vmatpush1.bf16.msra.mxu0 0
        %3204 = vmatprep.subr.bf16.mxu0 0
        %3205 = vmatpush1.bf16.msra.mxu0 0
        %3206 = vmatprep.subr.bf16.mxu0 0
        %3207 = vmatpush1.bf16.msra.mxu0 0
        %3208 = vmatprep.subr.bf16.mxu0 0
        %3209 = vmatpush1.bf16.msra.mxu0 0
        %3210 = vmatprep.subr.bf16.mxu0 0
        %3211 = vmatpush1.bf16.msra.mxu0 0
        %3212 = vmatprep.subr.bf16.mxu0 0
        %3213 = vmatpush1.bf16.msra.mxu0 0
        %3214 = vmatprep.subr.bf16.mxu0 0
        %3215 = vmatpush1.bf16.msra.mxu0 0
        %3216 = vmatprep.subr.bf16.mxu0 0
        %3217 = vmatpush1.bf16.msra.mxu0 0
        %3218 = vmatprep.subr.bf16.mxu0 0
        %3219 = vmatpush1.bf16.msra.mxu0 0
        %3220 = vmatprep.subr.bf16.mxu0 0
        %3221 = vmatpush1.bf16.msra.mxu0 0
        %3222 = vmatprep.subr.bf16.mxu0 0
        %3223 = vmatpush1.bf16.msra.mxu0 0
        %3224 = vmatprep.subr.bf16.mxu0 0
        %3225 = vmatpush1.bf16.msra.mxu0 0
        %3226 = vmatprep.mubr.bf16.mxu0 0
        %3227 = vmatmul.mubr.bf16.gmra.mrb[0].mxu0 %v3192
        %v3228 = vpop.f32.mrb[0].mxu0
        %v3229 = vadd.f32 0.0, %v3228
        %v3230 = vpop.f32.mrb[0].mxu0
        %v3231 = vpop.f32.mrb[0].mxu0
        %v3232 = vpop.f32.mrb[0].mxu0
        %3233 = vdwg.mxu0
        %v3234 = vpack.c.bf16 %v3073, %v3073
        %v3236 = vsel %vm1810, %v3234, 0
        %3238 = vmatprep.subr.bf16.mxu0 0
        %3239 = vmatpush1.bf16.msra.mxu0 %v2318
        %3240 = vmatprep.subr.bf16.mxu0 0
        %3241 = vmatpush1.bf16.msra.mxu0 %v2319
        %3242 = vmatprep.subr.bf16.mxu0 0
        %3243 = vmatpush1.bf16.msra.mxu0 0
        %3244 = vmatprep.subr.bf16.mxu0 0
        %3245 = vmatpush1.bf16.msra.mxu0 0
        %3246 = vmatprep.subr.bf16.mxu0 0
        %3247 = vmatpush1.bf16.msra.mxu0 0
        %3248 = vmatprep.subr.bf16.mxu0 0
        %3249 = vmatpush1.bf16.msra.mxu0 0
        %3250 = vmatprep.subr.bf16.mxu0 0
        %3251 = vmatpush1.bf16.msra.mxu0 0
        %3252 = vmatprep.subr.bf16.mxu0 0
        %3253 = vmatpush1.bf16.msra.mxu0 0
        %3254 = vmatprep.subr.bf16.mxu0 0
        %3255 = vmatpush1.bf16.msra.mxu0 0
        %3256 = vmatprep.subr.bf16.mxu0 0
        %3257 = vmatpush1.bf16.msra.mxu0 0
        %3258 = vmatprep.subr.bf16.mxu0 0
        %3259 = vmatpush1.bf16.msra.mxu0 0
        %3260 = vmatprep.subr.bf16.mxu0 0
        %3261 = vmatpush1.bf16.msra.mxu0 0
        %3262 = vmatprep.subr.bf16.mxu0 0
        %3263 = vmatpush1.bf16.msra.mxu0 0
        %3264 = vmatprep.subr.bf16.mxu0 0
        %3265 = vmatpush1.bf16.msra.mxu0 0
        %3266 = vmatprep.subr.bf16.mxu0 0
        %3267 = vmatpush1.bf16.msra.mxu0 0
        %3268 = vmatprep.subr.bf16.mxu0 0
        %3269 = vmatpush1.bf16.msra.mxu0 0
        %3270 = vmatprep.mubr.bf16.mxu0 0
        %3271 = vmatmul.mubr.bf16.gmra.mrb[0].mxu0 %v3236
        %v3272 = vpop.f32.mrb[0].mxu0
        %v3273 = vadd.f32 %v2308, %v3272
        %v3274 = vpop.f32.mrb[0].mxu0
        %v3275 = vpop.f32.mrb[0].mxu0
        %v3276 = vpop.f32.mrb[0].mxu0
        %3277 = vdwg.mxu0
        %v3278 = vmul.f32 %v1923, %v3273
        %3279 = vmatprep.subr.bf16.mxu0 0
        %3280 = vmatpush1.bf16.msra.mxu0 %v2378
        %3281 = vmatprep.subr.bf16.mxu0 0
        %3282 = vmatpush1.bf16.msra.mxu0 %v2379
        %3283 = vmatprep.subr.bf16.mxu0 0
        %3284 = vmatpush1.bf16.msra.mxu0 0
        %3285 = vmatprep.subr.bf16.mxu0 0
        %3286 = vmatpush1.bf16.msra.mxu0 0
        %3287 = vmatprep.subr.bf16.mxu0 0
        %3288 = vmatpush1.bf16.msra.mxu0 0
        %3289 = vmatprep.subr.bf16.mxu0 0
        %3290 = vmatpush1.bf16.msra.mxu0 0
        %3291 = vmatprep.subr.bf16.mxu0 0
        %3292 = vmatpush1.bf16.msra.mxu0 0
        %3293 = vmatprep.subr.bf16.mxu0 0
        %3294 = vmatpush1.bf16.msra.mxu0 0
        %3295 = vmatprep.subr.bf16.mxu0 0
        %3296 = vmatpush1.bf16.msra.mxu0 0
        %3297 = vmatprep.subr.bf16.mxu0 0
        %3298 = vmatpush1.bf16.msra.mxu0 0
        %3299 = vmatprep.subr.bf16.mxu0 0
        %3300 = vmatpush1.bf16.msra.mxu0 0
        %3301 = vmatprep.subr.bf16.mxu0 0
        %3302 = vmatpush1.bf16.msra.mxu0 0
        %3303 = vmatprep.subr.bf16.mxu0 0
        %3304 = vmatpush1.bf16.msra.mxu0 0
        %3305 = vmatprep.subr.bf16.mxu0 0
        %3306 = vmatpush1.bf16.msra.mxu0 0
        %3307 = vmatprep.subr.bf16.mxu0 0
        %3308 = vmatpush1.bf16.msra.mxu0 0
        %3309 = vmatprep.subr.bf16.mxu0 0
        %3310 = vmatpush1.bf16.msra.mxu0 0
        %3311 = vmatprep.mubr.bf16.mxu0 0
        %3312 = vmatmul.mubr.bf16.gmra.mrb[0].mxu0 %v3236
        %v3313 = vpop.f32.mrb[0].mxu0
        %v3314 = vadd.f32 0.0, %v3313
        %v3315 = vpop.f32.mrb[0].mxu0
        %v3316 = vpop.f32.mrb[0].mxu0
        %v3317 = vpop.f32.mrb[0].mxu0
        %3318 = vdwg.mxu0
        %v3319 = vadd.f32 %v1986, %v3314
        %v3320 = vpack.c.bf16 %v3278, %v3278
        %v3322 = vsel %vm1810, %v3320, 0
        %3324 = vmatprep.subr.bf16.mxu0 0
        %3325 = vmatpush1.bf16.msra.mxu0 %v2436
        %3326 = vmatprep.subr.bf16.mxu0 0
        %3327 = vmatpush1.bf16.msra.mxu0 %v2437
        %3328 = vmatprep.subr.bf16.mxu0 0
        %3329 = vmatpush1.bf16.msra.mxu0 0
        %3330 = vmatprep.subr.bf16.mxu0 0
        %3331 = vmatpush1.bf16.msra.mxu0 0
        %3332 = vmatprep.subr.bf16.mxu0 0
        %3333 = vmatpush1.bf16.msra.mxu0 0
        %3334 = vmatprep.subr.bf16.mxu0 0
        %3335 = vmatpush1.bf16.msra.mxu0 0
        %3336 = vmatprep.subr.bf16.mxu0 0
        %3337 = vmatpush1.bf16.msra.mxu0 0
        %3338 = vmatprep.subr.bf16.mxu0 0
        %3339 = vmatpush1.bf16.msra.mxu0 0
        %3340 = vmatprep.subr.bf16.mxu0 0
        %3341 = vmatpush1.bf16.msra.mxu0 0
        %3342 = vmatprep.subr.bf16.mxu0 0
        %3343 = vmatpush1.bf16.msra.mxu0 0
        %3344 = vmatprep.subr.bf16.mxu0 0
        %3345 = vmatpush1.bf16.msra.mxu0 0
        %3346 = vmatprep.subr.bf16.mxu0 0
        %3347 = vmatpush1.bf16.msra.mxu0 0
        %3348 = vmatprep.subr.bf16.mxu0 0
        %3349 = vmatpush1.bf16.msra.mxu0 0
        %3350 = vmatprep.subr.bf16.mxu0 0
        %3351 = vmatpush1.bf16.msra.mxu0 0
        %3352 = vmatprep.subr.bf16.mxu0 0
        %3353 = vmatpush1.bf16.msra.mxu0 0
        %3354 = vmatprep.subr.bf16.mxu0 0
        %3355 = vmatpush1.bf16.msra.mxu0 0
        %3356 = vmatprep.mubr.bf16.mxu0 0
        %3357 = vmatmul.mubr.bf16.gmra.mrb[0].mxu0 %v3322
        %v3358 = vpop.f32.mrb[0].mxu0
        %v3359 = vadd.f32 0.0, %v3358
        %v3360 = vpop.f32.mrb[0].mxu0
        %v3361 = vpop.f32.mrb[0].mxu0
        %v3362 = vpop.f32.mrb[0].mxu0
        %3363 = vdwg.mxu0
        %v3364 = vadd.f32 %v3319, %v3359
        %3365 = vmatprep.subr.bf16.mxu0 0
        %3366 = vmatpush1.bf16.msra.mxu0 %v2496
        %3367 = vmatprep.subr.bf16.mxu0 0
        %3368 = vmatpush1.bf16.msra.mxu0 %v2497
        %3369 = vmatprep.subr.bf16.mxu0 0
        %3370 = vmatpush1.bf16.msra.mxu0 0
        %3371 = vmatprep.subr.bf16.mxu0 0
        %3372 = vmatpush1.bf16.msra.mxu0 0
        %3373 = vmatprep.subr.bf16.mxu0 0
        %3374 = vmatpush1.bf16.msra.mxu0 0
        %3375 = vmatprep.subr.bf16.mxu0 0
        %3376 = vmatpush1.bf16.msra.mxu0 0
        %3377 = vmatprep.subr.bf16.mxu0 0
        %3378 = vmatpush1.bf16.msra.mxu0 0
        %3379 = vmatprep.subr.bf16.mxu0 0
        %3380 = vmatpush1.bf16.msra.mxu0 0
        %3381 = vmatprep.subr.bf16.mxu0 0
        %3382 = vmatpush1.bf16.msra.mxu0 0
        %3383 = vmatprep.subr.bf16.mxu0 0
        %3384 = vmatpush1.bf16.msra.mxu0 0
        %3385 = vmatprep.subr.bf16.mxu0 0
        %3386 = vmatpush1.bf16.msra.mxu0 0
        %3387 = vmatprep.subr.bf16.mxu0 0
        %3388 = vmatpush1.bf16.msra.mxu0 0
        %3389 = vmatprep.subr.bf16.mxu0 0
        %3390 = vmatpush1.bf16.msra.mxu0 0
        %3391 = vmatprep.subr.bf16.mxu0 0
        %3392 = vmatpush1.bf16.msra.mxu0 0
        %3393 = vmatprep.subr.bf16.mxu0 0
        %3394 = vmatpush1.bf16.msra.mxu0 0
        %3395 = vmatprep.subr.bf16.mxu0 0
        %3396 = vmatpush1.bf16.msra.mxu0 0
        %3397 = vmatprep.mubr.bf16.mxu0 0
        %3398 = vmatmul.mubr.bf16.gmra.mrb[0].mxu0 %v3236
        %v3399 = vpop.f32.mrb[0].mxu0
        %v3400 = vadd.f32 0.0, %v3399
        %v3401 = vpop.f32.mrb[0].mxu0
        %v3402 = vpop.f32.mrb[0].mxu0
        %v3403 = vpop.f32.mrb[0].mxu0
        %3404 = vdwg.mxu0
        %v3405 = vadd.f32 %v2049, %v3400
        %3406 = vmatprep.subr.bf16.mxu0 0
        %3407 = vmatpush1.bf16.msra.mxu0 %v2553
        %3408 = vmatprep.subr.bf16.mxu0 0
        %3409 = vmatpush1.bf16.msra.mxu0 %v2554
        %3410 = vmatprep.subr.bf16.mxu0 0
        %3411 = vmatpush1.bf16.msra.mxu0 0
        %3412 = vmatprep.subr.bf16.mxu0 0
        %3413 = vmatpush1.bf16.msra.mxu0 0
        %3414 = vmatprep.subr.bf16.mxu0 0
        %3415 = vmatpush1.bf16.msra.mxu0 0
        %3416 = vmatprep.subr.bf16.mxu0 0
        %3417 = vmatpush1.bf16.msra.mxu0 0
        %3418 = vmatprep.subr.bf16.mxu0 0
        %3419 = vmatpush1.bf16.msra.mxu0 0
        %3420 = vmatprep.subr.bf16.mxu0 0
        %3421 = vmatpush1.bf16.msra.mxu0 0
        %3422 = vmatprep.subr.bf16.mxu0 0
        %3423 = vmatpush1.bf16.msra.mxu0 0
        %3424 = vmatprep.subr.bf16.mxu0 0
        %3425 = vmatpush1.bf16.msra.mxu0 0
        %3426 = vmatprep.subr.bf16.mxu0 0
        %3427 = vmatpush1.bf16.msra.mxu0 0
        %3428 = vmatprep.subr.bf16.mxu0 0
        %3429 = vmatpush1.bf16.msra.mxu0 0
        %3430 = vmatprep.subr.bf16.mxu0 0
        %3431 = vmatpush1.bf16.msra.mxu0 0
        %3432 = vmatprep.subr.bf16.mxu0 0
        %3433 = vmatpush1.bf16.msra.mxu0 0
        %3434 = vmatprep.subr.bf16.mxu0 0
        %3435 = vmatpush1.bf16.msra.mxu0 0
        %3436 = vmatprep.subr.bf16.mxu0 0
        %3437 = vmatpush1.bf16.msra.mxu0 0
        %3438 = vmatprep.mubr.bf16.mxu0 0
        %3439 = vmatmul.mubr.bf16.gmra.mrb[0].mxu0 %v3322
        %v3440 = vpop.f32.mrb[0].mxu0
        %v3441 = vadd.f32 0.0, %v3440
        %v3442 = vpop.f32.mrb[0].mxu0
        %v3443 = vpop.f32.mrb[0].mxu0
        %v3444 = vpop.f32.mrb[0].mxu0
        %3445 = vdwg.mxu0
        %v3446 = vadd.f32 %v3405, %v3441
        %v3447 = vpack.c.bf16 %v3229, %v3229
        %v3449 = vsel %vm1810, %v3447, 0
        %3451 = vmatprep.subr.bf16.mxu0 0
        %3452 = vmatpush1.bf16.msra.mxu0 %v2612
        %3453 = vmatprep.subr.bf16.mxu0 0
        %3454 = vmatpush1.bf16.msra.mxu0 %v2613
        %3455 = vmatprep.subr.bf16.mxu0 0
        %3456 = vmatpush1.bf16.msra.mxu0 0
        %3457 = vmatprep.subr.bf16.mxu0 0
        %3458 = vmatpush1.bf16.msra.mxu0 0
        %3459 = vmatprep.subr.bf16.mxu0 0
        %3460 = vmatpush1.bf16.msra.mxu0 0
        %3461 = vmatprep.subr.bf16.mxu0 0
        %3462 = vmatpush1.bf16.msra.mxu0 0
        %3463 = vmatprep.subr.bf16.mxu0 0
        %3464 = vmatpush1.bf16.msra.mxu0 0
        %3465 = vmatprep.subr.bf16.mxu0 0
        %3466 = vmatpush1.bf16.msra.mxu0 0
        %3467 = vmatprep.subr.bf16.mxu0 0
        %3468 = vmatpush1.bf16.msra.mxu0 0
        %3469 = vmatprep.subr.bf16.mxu0 0
        %3470 = vmatpush1.bf16.msra.mxu0 0
        %3471 = vmatprep.subr.bf16.mxu0 0
        %3472 = vmatpush1.bf16.msra.mxu0 0
        %3473 = vmatprep.subr.bf16.mxu0 0
        %3474 = vmatpush1.bf16.msra.mxu0 0
        %3475 = vmatprep.subr.bf16.mxu0 0
        %3476 = vmatpush1.bf16.msra.mxu0 0
        %3477 = vmatprep.subr.bf16.mxu0 0
        %3478 = vmatpush1.bf16.msra.mxu0 0
        %3479 = vmatprep.subr.bf16.mxu0 0
        %3480 = vmatpush1.bf16.msra.mxu0 0
        %3481 = vmatprep.subr.bf16.mxu0 0
        %3482 = vmatpush1.bf16.msra.mxu0 0
        %3483 = vmatprep.mubr.bf16.mxu0 0
        %3484 = vmatmul.mubr.bf16.gmra.mrb[0].mxu0 %v3449
        %v3485 = vpop.f32.mrb[0].mxu0
        %v3486 = vadd.f32 %v2603, %v3485
        %v3487 = vpop.f32.mrb[0].mxu0
        %v3488 = vpop.f32.mrb[0].mxu0
        %v3489 = vpop.f32.mrb[0].mxu0
        %3490 = vdwg.mxu0
        %v3491 = vlaneseq
        %v3492 = vshrl.u32 %v3491, 7
        %v3493 = vsub.s32 0, %v3492
        %v3494 = vrot.slane %v3486, %v3493
        %v3495 = vmul.f32 %v3446, %v3494
        %3496 = vmatprep.subr.bf16.mxu0 0
        %3497 = vmatpush1.bf16.msra.mxu0 %v2676
        %3498 = vmatprep.subr.bf16.mxu0 0
        %3499 = vmatpush1.bf16.msra.mxu0 %v2677
        %3500 = vmatprep.subr.bf16.mxu0 0
        %3501 = vmatpush1.bf16.msra.mxu0 0
        %3502 = vmatprep.subr.bf16.mxu0 0
        %3503 = vmatpush1.bf16.msra.mxu0 0
        %3504 = vmatprep.subr.bf16.mxu0 0
        %3505 = vmatpush1.bf16.msra.mxu0 0
        %3506 = vmatprep.subr.bf16.mxu0 0
        %3507 = vmatpush1.bf16.msra.mxu0 0
        %3508 = vmatprep.subr.bf16.mxu0 0
        %3509 = vmatpush1.bf16.msra.mxu0 0
        %3510 = vmatprep.subr.bf16.mxu0 0
        %3511 = vmatpush1.bf16.msra.mxu0 0
        %3512 = vmatprep.subr.bf16.mxu0 0
        %3513 = vmatpush1.bf16.msra.mxu0 0
        %3514 = vmatprep.subr.bf16.mxu0 0
        %3515 = vmatpush1.bf16.msra.mxu0 0
        %3516 = vmatprep.subr.bf16.mxu0 0
        %3517 = vmatpush1.bf16.msra.mxu0 0
        %3518 = vmatprep.subr.bf16.mxu0 0
        %3519 = vmatpush1.bf16.msra.mxu0 0
        %3520 = vmatprep.subr.bf16.mxu0 0
        %3521 = vmatpush1.bf16.msra.mxu0 0
        %3522 = vmatprep.subr.bf16.mxu0 0
        %3523 = vmatpush1.bf16.msra.mxu0 0
        %3524 = vmatprep.subr.bf16.mxu0 0
        %3525 = vmatpush1.bf16.msra.mxu0 0
        %3526 = vmatprep.subr.bf16.mxu0 0
        %3527 = vmatpush1.bf16.msra.mxu0 0
        %3528 = vmatprep.mubr.bf16.mxu0 0
        %3529 = vmatmul.mubr.bf16.gmra.mrb[0].mxu0 %v3236
        %v3530 = vpop.f32.mrb[0].mxu0
        %v3531 = vadd.f32 0.0, %v3530
        %v3532 = vpop.f32.mrb[0].mxu0
        %v3533 = vpop.f32.mrb[0].mxu0
        %v3534 = vpop.f32.mrb[0].mxu0
        %3535 = vdwg.mxu0
        %v3536 = vadd.f32 %v2112, %v3531
        %3537 = vmatprep.subr.bf16.mxu0 0
        %3538 = vmatpush1.bf16.msra.mxu0 %v2733
        %3539 = vmatprep.subr.bf16.mxu0 0
        %3540 = vmatpush1.bf16.msra.mxu0 %v2734
        %3541 = vmatprep.subr.bf16.mxu0 0
        %3542 = vmatpush1.bf16.msra.mxu0 0
        %3543 = vmatprep.subr.bf16.mxu0 0
        %3544 = vmatpush1.bf16.msra.mxu0 0
        %3545 = vmatprep.subr.bf16.mxu0 0
        %3546 = vmatpush1.bf16.msra.mxu0 0
        %3547 = vmatprep.subr.bf16.mxu0 0
        %3548 = vmatpush1.bf16.msra.mxu0 0
        %3549 = vmatprep.subr.bf16.mxu0 0
        %3550 = vmatpush1.bf16.msra.mxu0 0
        %3551 = vmatprep.subr.bf16.mxu0 0
        %3552 = vmatpush1.bf16.msra.mxu0 0
        %3553 = vmatprep.subr.bf16.mxu0 0
        %3554 = vmatpush1.bf16.msra.mxu0 0
        %3555 = vmatprep.subr.bf16.mxu0 0
        %3556 = vmatpush1.bf16.msra.mxu0 0
        %3557 = vmatprep.subr.bf16.mxu0 0
        %3558 = vmatpush1.bf16.msra.mxu0 0
        %3559 = vmatprep.subr.bf16.mxu0 0
        %3560 = vmatpush1.bf16.msra.mxu0 0
        %3561 = vmatprep.subr.bf16.mxu0 0
        %3562 = vmatpush1.bf16.msra.mxu0 0
        %3563 = vmatprep.subr.bf16.mxu0 0
        %3564 = vmatpush1.bf16.msra.mxu0 0
        %3565 = vmatprep.subr.bf16.mxu0 0
        %3566 = vmatpush1.bf16.msra.mxu0 0
        %3567 = vmatprep.subr.bf16.mxu0 0
        %3568 = vmatpush1.bf16.msra.mxu0 0
        %3569 = vmatprep.mubr.bf16.mxu0 0
        %3570 = vmatmul.mubr.bf16.gmra.mrb[0].mxu0 %v3322
        %v3571 = vpop.f32.mrb[0].mxu0
        %v3572 = vadd.f32 0.0, %v3571
        %v3573 = vpop.f32.mrb[0].mxu0
        %v3574 = vpop.f32.mrb[0].mxu0
        %v3575 = vpop.f32.mrb[0].mxu0
        %3576 = vdwg.mxu0
        %v3577 = vadd.f32 %v3536, %v3572
        %3578 = vmatprep.subr.bf16.mxu0 0
        %3579 = vmatpush1.bf16.msra.mxu0 %v2791
        %3580 = vmatprep.subr.bf16.mxu0 0
        %3581 = vmatpush1.bf16.msra.mxu0 %v2792
        %3582 = vmatprep.subr.bf16.mxu0 0
        %3583 = vmatpush1.bf16.msra.mxu0 0
        %3584 = vmatprep.subr.bf16.mxu0 0
        %3585 = vmatpush1.bf16.msra.mxu0 0
        %3586 = vmatprep.subr.bf16.mxu0 0
        %3587 = vmatpush1.bf16.msra.mxu0 0
        %3588 = vmatprep.subr.bf16.mxu0 0
        %3589 = vmatpush1.bf16.msra.mxu0 0
        %3590 = vmatprep.subr.bf16.mxu0 0
        %3591 = vmatpush1.bf16.msra.mxu0 0
        %3592 = vmatprep.subr.bf16.mxu0 0
        %3593 = vmatpush1.bf16.msra.mxu0 0
        %3594 = vmatprep.subr.bf16.mxu0 0
        %3595 = vmatpush1.bf16.msra.mxu0 0
        %3596 = vmatprep.subr.bf16.mxu0 0
        %3597 = vmatpush1.bf16.msra.mxu0 0
        %3598 = vmatprep.subr.bf16.mxu0 0
        %3599 = vmatpush1.bf16.msra.mxu0 0
        %3600 = vmatprep.subr.bf16.mxu0 0
        %3601 = vmatpush1.bf16.msra.mxu0 0
        %3602 = vmatprep.subr.bf16.mxu0 0
        %3603 = vmatpush1.bf16.msra.mxu0 0
        %3604 = vmatprep.subr.bf16.mxu0 0
        %3605 = vmatpush1.bf16.msra.mxu0 0
        %3606 = vmatprep.subr.bf16.mxu0 0
        %3607 = vmatpush1.bf16.msra.mxu0 0
        %3608 = vmatprep.subr.bf16.mxu0 0
        %3609 = vmatpush1.bf16.msra.mxu0 0
        %3610 = vmatprep.mubr.bf16.mxu0 0
        %3611 = vmatmul.mubr.bf16.gmra.mrb[0].mxu0 %v3449
        %v3612 = vpop.f32.mrb[0].mxu0
        %v3613 = vadd.f32 %v2782, %v3612
        %v3614 = vpop.f32.mrb[0].mxu0
        %v3615 = vpop.f32.mrb[0].mxu0
        %v3616 = vpop.f32.mrb[0].mxu0
        %3617 = vdwg.mxu0
        %v3618 = vlaneseq
        %v3619 = vshrl.u32 %v3618, 7
        %v3620 = vsub.s32 0, %v3619
        %v3621 = vrot.slane %v3613, %v3620
        %v3622 = vmul.f32 %v3577, %v3621
        %v3623 = vpack.c.bf16 %v3364, %v3364
        %v3624 = vpack.c.bf16 %v3495, %v3495
        %v3626 = vsel %vm1810, %v3623, 0
        %v3629 = vsel %vm1810, %v3624, 0
        %3631 = vmatprep.subr.bf16.mxu0 0
        %3632 = vmatpush1.bf16.xpose.msra.mxu0 %v3629
        %3633 = vmatprep.subr.bf16.mxu0 0
        %3634 = vmatpush1.bf16.xpose.msra.mxu0 0
        %3635 = vmatprep.subr.bf16.mxu0 0
        %3636 = vmatpush1.bf16.xpose.msra.mxu0 0
        %3637 = vmatprep.subr.bf16.mxu0 0
        %3638 = vmatpush1.bf16.xpose.msra.mxu0 0
        %3639 = vmatprep.subr.bf16.mxu0 0
        %3640 = vmatpush1.bf16.xpose.msra.mxu0 0
        %3641 = vmatprep.subr.bf16.mxu0 0
        %3642 = vmatpush1.bf16.xpose.msra.mxu0 0
        %3643 = vmatprep.subr.bf16.mxu0 0
        %3644 = vmatpush1.bf16.xpose.msra.mxu0 0
        %3645 = vmatprep.subr.bf16.mxu0 0
        %3646 = vmatpush1.bf16.xpose.msra.mxu0 0
        %3647 = vmatprep.subr.bf16.mxu0 0
        %3648 = vmatpush1.bf16.xpose.msra.mxu0 0
        %3649 = vmatprep.subr.bf16.mxu0 0
        %3650 = vmatpush1.bf16.xpose.msra.mxu0 0
        %3651 = vmatprep.subr.bf16.mxu0 0
        %3652 = vmatpush1.bf16.xpose.msra.mxu0 0
        %3653 = vmatprep.subr.bf16.mxu0 0
        %3654 = vmatpush1.bf16.xpose.msra.mxu0 0
        %3655 = vmatprep.subr.bf16.mxu0 0
        %3656 = vmatpush1.bf16.xpose.msra.mxu0 0
        %3657 = vmatprep.subr.bf16.mxu0 0
        %3658 = vmatpush1.bf16.xpose.msra.mxu0 0
        %3659 = vmatprep.subr.bf16.mxu0 0
        %3660 = vmatpush1.bf16.xpose.msra.mxu0 0
        %3661 = vmatprep.subr.bf16.mxu0 0
        %3662 = vmatpush1.bf16.xpose.msra.mxu0 0
        %3663 = vmatprep.mubr.bf16.mxu0 0
        %3664 = vmatmul.mubr.bf16.gmra.mrb[0].mxu0 %v3626
        %v3665 = vpop.f32.mrb[0].mxu0
        %v3666 = vadd.f32 0.0, %v3665
        %v3667 = vpop.f32.mrb[0].mxu0
        %v3668 = vpop.f32.mrb[0].mxu0
        %v3669 = vpop.f32.mrb[0].mxu0
        %3670 = vdwg.mxu0
        %v3671 = vmul.f32 %v3666, 0.17677669
        %v3672 = vsel %vm2889, -1e+30, %v3671
        %v3673 = vsel %vm2251, %v3672, -inf
        %3674 = vmax.xlane.f32.xlu0 %v3673
        %v3675 = vpop.xlane.xlu0 %3674
        %v3676 = vsub.f32 %v3672, %v3675
        %v3677 = vmul.f32 %v3676, 1.442695
        %v3678 = vpow.pop %v3677
        %v3679 = vsel %vm2251, %v3678, 0.0
        %3680 = vadd.xlane.f32.xlu0 %v3679
        %v3681 = vpop.xlane.xlu0 %3680
        %v3682 = vrcp.pop %v3681
        %v3683 = vmul.f32 %v3678, %v3682
        %v3684 = vpack.c.bf16 %v3683, %v3683
        %v3685 = vpack.c.bf16 %v3622, %v3622
        %v3687 = vsel %vm2251, %v3684, 0
        %v3690 = vsel %vm2255, %v3685, 0
        %3692 = vmatprep.subr.bf16.mxu0 0
        %3693 = vmatpush1.bf16.msra.mxu0 %v3690
        %3694 = vmatprep.subr.bf16.mxu0 0
        %3695 = vmatpush1.bf16.msra.mxu0 0
        %3696 = vmatprep.subr.bf16.mxu0 0
        %3697 = vmatpush1.bf16.msra.mxu0 0
        %3698 = vmatprep.subr.bf16.mxu0 0
        %3699 = vmatpush1.bf16.msra.mxu0 0
        %3700 = vmatprep.subr.bf16.mxu0 0
        %3701 = vmatpush1.bf16.msra.mxu0 0
        %3702 = vmatprep.subr.bf16.mxu0 0
        %3703 = vmatpush1.bf16.msra.mxu0 0
        %3704 = vmatprep.subr.bf16.mxu0 0
        %3705 = vmatpush1.bf16.msra.mxu0 0
        %3706 = vmatprep.subr.bf16.mxu0 0
        %3707 = vmatpush1.bf16.msra.mxu0 0
        %3708 = vmatprep.subr.bf16.mxu0 0
        %3709 = vmatpush1.bf16.msra.mxu0 0
        %3710 = vmatprep.subr.bf16.mxu0 0
        %3711 = vmatpush1.bf16.msra.mxu0 0
        %3712 = vmatprep.subr.bf16.mxu0 0
        %3713 = vmatpush1.bf16.msra.mxu0 0
        %3714 = vmatprep.subr.bf16.mxu0 0
        %3715 = vmatpush1.bf16.msra.mxu0 0
        %3716 = vmatprep.subr.bf16.mxu0 0
        %3717 = vmatpush1.bf16.msra.mxu0 0
        %3718 = vmatprep.subr.bf16.mxu0 0
        %3719 = vmatpush1.bf16.msra.mxu0 0
        %3720 = vmatprep.subr.bf16.mxu0 0
        %3721 = vmatpush1.bf16.msra.mxu0 0
        %3722 = vmatprep.subr.bf16.mxu0 0
        %3723 = vmatpush1.bf16.msra.mxu0 0
        %3724 = vmatprep.mubr.bf16.mxu0 0
        %3725 = vmatmul.mubr.bf16.gmra.mrb[0].mxu0 %v3687
        %v3726 = vpop.f32.mrb[0].mxu0
        %v3727 = vadd.f32 0.0, %v3726
        %v3728 = vpop.f32.mrb[0].mxu0
        %v3729 = vpop.f32.mrb[0].mxu0
        %v3730 = vpop.f32.mrb[0].mxu0
        %3731 = vdwg.mxu0
        %v3732 = vpack.c.bf16 %v3727, %v3727
        %v3734 = vsel %vm1810, %v3732, 0
        %3736 = vmatprep.subr.bf16.mxu0 0
        %3737 = vmatpush1.bf16.msra.mxu0 %v2967
        %3738 = vmatprep.subr.bf16.mxu0 0
        %3739 = vmatpush1.bf16.msra.mxu0 %v2968
        %3740 = vmatprep.subr.bf16.mxu0 0
        %3741 = vmatpush1.bf16.msra.mxu0 0
        %3742 = vmatprep.subr.bf16.mxu0 0
        %3743 = vmatpush1.bf16.msra.mxu0 0
        %3744 = vmatprep.subr.bf16.mxu0 0
        %3745 = vmatpush1.bf16.msra.mxu0 0
        %3746 = vmatprep.subr.bf16.mxu0 0
        %3747 = vmatpush1.bf16.msra.mxu0 0
        %3748 = vmatprep.subr.bf16.mxu0 0
        %3749 = vmatpush1.bf16.msra.mxu0 0
        %3750 = vmatprep.subr.bf16.mxu0 0
        %3751 = vmatpush1.bf16.msra.mxu0 0
        %3752 = vmatprep.subr.bf16.mxu0 0
        %3753 = vmatpush1.bf16.msra.mxu0 0
        %3754 = vmatprep.subr.bf16.mxu0 0
        %3755 = vmatpush1.bf16.msra.mxu0 0
        %3756 = vmatprep.subr.bf16.mxu0 0
        %3757 = vmatpush1.bf16.msra.mxu0 0
        %3758 = vmatprep.subr.bf16.mxu0 0
        %3759 = vmatpush1.bf16.msra.mxu0 0
        %3760 = vmatprep.subr.bf16.mxu0 0
        %3761 = vmatpush1.bf16.msra.mxu0 0
        %3762 = vmatprep.subr.bf16.mxu0 0
        %3763 = vmatpush1.bf16.msra.mxu0 0
        %3764 = vmatprep.subr.bf16.mxu0 0
        %3765 = vmatpush1.bf16.msra.mxu0 0
        %3766 = vmatprep.subr.bf16.mxu0 0
        %3767 = vmatpush1.bf16.msra.mxu0 0
        %3768 = vmatprep.mubr.bf16.mxu0 0
        %3769 = vmatmul.mubr.bf16.gmra.mrb[0].mxu0 %v3734
        %v3770 = vpop.f32.mrb[0].mxu0
        %v3771 = vadd.f32 0.0, %v3770
        %v3772 = vpop.f32.mrb[0].mxu0
        %v3773 = vpop.f32.mrb[0].mxu0
        %v3774 = vpop.f32.mrb[0].mxu0
        %3775 = vdwg.mxu0
        %3776 = vmatprep.subr.bf16.mxu0 0
        %3777 = vmatpush1.bf16.msra.mxu0 %v3022
        %3778 = vmatprep.subr.bf16.mxu0 0
        %3779 = vmatpush1.bf16.msra.mxu0 %v3023
        %3780 = vmatprep.subr.bf16.mxu0 0
        %3781 = vmatpush1.bf16.msra.mxu0 0
        %3782 = vmatprep.subr.bf16.mxu0 0
        %3783 = vmatpush1.bf16.msra.mxu0 0
        %3784 = vmatprep.subr.bf16.mxu0 0
        %3785 = vmatpush1.bf16.msra.mxu0 0
        %3786 = vmatprep.subr.bf16.mxu0 0
        %3787 = vmatpush1.bf16.msra.mxu0 0
        %3788 = vmatprep.subr.bf16.mxu0 0
        %3789 = vmatpush1.bf16.msra.mxu0 0
        %3790 = vmatprep.subr.bf16.mxu0 0
        %3791 = vmatpush1.bf16.msra.mxu0 0
        %3792 = vmatprep.subr.bf16.mxu0 0
        %3793 = vmatpush1.bf16.msra.mxu0 0
        %3794 = vmatprep.subr.bf16.mxu0 0
        %3795 = vmatpush1.bf16.msra.mxu0 0
        %3796 = vmatprep.subr.bf16.mxu0 0
        %3797 = vmatpush1.bf16.msra.mxu0 0
        %3798 = vmatprep.subr.bf16.mxu0 0
        %3799 = vmatpush1.bf16.msra.mxu0 0
        %3800 = vmatprep.subr.bf16.mxu0 0
        %3801 = vmatpush1.bf16.msra.mxu0 0
        %3802 = vmatprep.subr.bf16.mxu0 0
        %3803 = vmatpush1.bf16.msra.mxu0 0
        %3804 = vmatprep.subr.bf16.mxu0 0
        %3805 = vmatpush1.bf16.msra.mxu0 0
        %3806 = vmatprep.subr.bf16.mxu0 0
        %3807 = vmatpush1.bf16.msra.mxu0 0
        %3808 = vmatprep.mubr.bf16.mxu0 0
        %3809 = vmatmul.mubr.bf16.gmra.mrb[0].mxu0 %v3236
        %v3810 = vpop.f32.mrb[0].mxu0
        %v3811 = vadd.f32 %v3771, %v3810
        %v3812 = vpop.f32.mrb[0].mxu0
        %v3813 = vpop.f32.mrb[0].mxu0
        %v3814 = vpop.f32.mrb[0].mxu0
        %3815 = vdwg.mxu0
        %v3816 = vadd.f32 %v3811, %v3071
        %v3817 = vld [vmem:[#allocation47] sm:$0xf]
        %v3818 = vld [vmem:[#allocation47 + $0x4] sm:$0xf]
        %v3819 = vld [vmem:[#allocation47 + $0x8] sm:$0xf]
        %v3820 = vld [vmem:[#allocation47 + $0xc] sm:$0xf]
        %v3821 = vld [vmem:[#allocation48] sm:$0xf]
        %v3822 = vld [vmem:[#allocation48 + $0x4] sm:$0xf]
        %v3823 = vld [vmem:[#allocation48 + $0x8] sm:$0xf]
        %v3824 = vld [vmem:[#allocation48 + $0xc] sm:$0xf]
        %v3825 = vpack.c.bf16 %v3816, %v3816
        %v3830 = vunpack.c.l.b16 %v3821
        %v3831 = vunpack.c.l.b16 %v3822
        %v3832 = vunpack.c.l.b16 %v3823
        %v3833 = vunpack.c.l.b16 %v3824
        %v3834 = vpack.c.b16 %v3831, %v3830
        %v3835 = vpack.c.b16 %v3833, %v3832
        %v3839 = vsel %vm1810, %v3825, 0
        %3841 = vmatprep.subr.bf16.mxu0 0
        %3842 = vmatpush1.bf16.msra.mxu0 %v3834
        %3843 = vmatprep.subr.bf16.mxu0 0
        %3844 = vmatpush1.bf16.msra.mxu0 %v3835
        %3845 = vmatprep.subr.bf16.mxu0 0
        %3846 = vmatpush1.bf16.msra.mxu0 0
        %3847 = vmatprep.subr.bf16.mxu0 0
        %3848 = vmatpush1.bf16.msra.mxu0 0
        %3849 = vmatprep.subr.bf16.mxu0 0
        %3850 = vmatpush1.bf16.msra.mxu0 0
        %3851 = vmatprep.subr.bf16.mxu0 0
        %3852 = vmatpush1.bf16.msra.mxu0 0
        %3853 = vmatprep.subr.bf16.mxu0 0
        %3854 = vmatpush1.bf16.msra.mxu0 0
        %3855 = vmatprep.subr.bf16.mxu0 0
        %3856 = vmatpush1.bf16.msra.mxu0 0
        %3857 = vmatprep.subr.bf16.mxu0 0
        %3858 = vmatpush1.bf16.msra.mxu0 0
        %3859 = vmatprep.subr.bf16.mxu0 0
        %3860 = vmatpush1.bf16.msra.mxu0 0
        %3861 = vmatprep.subr.bf16.mxu0 0
        %3862 = vmatpush1.bf16.msra.mxu0 0
        %3863 = vmatprep.subr.bf16.mxu0 0
        %3864 = vmatpush1.bf16.msra.mxu0 0
        %3865 = vmatprep.subr.bf16.mxu0 0
        %3866 = vmatpush1.bf16.msra.mxu0 0
        %3867 = vmatprep.subr.bf16.mxu0 0
        %3868 = vmatpush1.bf16.msra.mxu0 0
        %3869 = vmatprep.subr.bf16.mxu0 0
        %3870 = vmatpush1.bf16.msra.mxu0 0
        %3871 = vmatprep.subr.bf16.mxu0 0
        %3872 = vmatpush1.bf16.msra.mxu0 0
        %3873 = vmatprep.mubr.bf16.mxu0 0
        %3874 = vmatmul.mubr.bf16.gmra.mrb[0].mxu0 %v3839
        %v3875 = vpop.f32.mrb[0].mxu0
        %v3876 = vadd.f32 0.0, %v3875
        %v3877 = vpop.f32.mrb[0].mxu0
        %v3878 = vpop.f32.mrb[0].mxu0
        %v3879 = vpop.f32.mrb[0].mxu0
        %3880 = vdwg.mxu0
        %v3885 = vunpack.c.l.b16 %v3817
        %v3886 = vunpack.c.l.b16 %v3818
        %v3887 = vunpack.c.l.b16 %v3819
        %v3888 = vunpack.c.l.b16 %v3820
        %v3889 = vpack.c.b16 %v3886, %v3885
        %v3890 = vpack.c.b16 %v3888, %v3887
        %3893 = vmatprep.subr.bf16.mxu0 0
        %3894 = vmatpush1.bf16.msra.mxu0 %v3889
        %3895 = vmatprep.subr.bf16.mxu0 0
        %3896 = vmatpush1.bf16.msra.mxu0 %v3890
        %3897 = vmatprep.subr.bf16.mxu0 0
        %3898 = vmatpush1.bf16.msra.mxu0 0
        %3899 = vmatprep.subr.bf16.mxu0 0
        %3900 = vmatpush1.bf16.msra.mxu0 0
        %3901 = vmatprep.subr.bf16.mxu0 0
        %3902 = vmatpush1.bf16.msra.mxu0 0
        %3903 = vmatprep.subr.bf16.mxu0 0
        %3904 = vmatpush1.bf16.msra.mxu0 0
        %3905 = vmatprep.subr.bf16.mxu0 0
        %3906 = vmatpush1.bf16.msra.mxu0 0
        %3907 = vmatprep.subr.bf16.mxu0 0
        %3908 = vmatpush1.bf16.msra.mxu0 0
        %3909 = vmatprep.subr.bf16.mxu0 0
        %3910 = vmatpush1.bf16.msra.mxu0 0
        %3911 = vmatprep.subr.bf16.mxu0 0
        %3912 = vmatpush1.bf16.msra.mxu0 0
        %3913 = vmatprep.subr.bf16.mxu0 0
        %3914 = vmatpush1.bf16.msra.mxu0 0
        %3915 = vmatprep.subr.bf16.mxu0 0
        %3916 = vmatpush1.bf16.msra.mxu0 0
        %3917 = vmatprep.subr.bf16.mxu0 0
        %3918 = vmatpush1.bf16.msra.mxu0 0
        %3919 = vmatprep.subr.bf16.mxu0 0
        %3920 = vmatpush1.bf16.msra.mxu0 0
        %3921 = vmatprep.subr.bf16.mxu0 0
        %3922 = vmatpush1.bf16.msra.mxu0 0
        %3923 = vmatprep.subr.bf16.mxu0 0
        %3924 = vmatpush1.bf16.msra.mxu0 0
        %3925 = vmatprep.mubr.bf16.mxu0 0
        %3926 = vmatmul.mubr.bf16.gmra.mrb[0].mxu0 %v1886
        %v3927 = vpop.f32.mrb[0].mxu0
        %v3928 = vadd.f32 %v3876, %v3927
        %v3929 = vpop.f32.mrb[0].mxu0
        %v3930 = vpop.f32.mrb[0].mxu0
        %v3931 = vpop.f32.mrb[0].mxu0
        %3932 = vdwg.mxu0
        %v3933 = vld [vmem:[%s79] sm:$0x1]
        %v3935 = vlaneseq
        %v3936 = vshrl.u32 %v3935, 7
        %v3937 = vsub.s32 0, %v3936
        %v3938 = vrot.slane %v3933, %v3937
        %v3940 = vadd.f32 %v3928, %v3938
        %3941 = vst.msk [vmem:[%s1704] sm:$0xff] %vm1810, %v3940
        %s3942 = sand.u32 %s992, 1
        %s3943 = scalar_lea.sflag [#allocation5], %s3942
        %s3944 = sand.u32 %s992, 1
        %s3945 = smul.addr %s3944, 8
        %s3946 = scalar_lea.vmem [#allocation50], %s3945
        // Predicated region
        $region301: #{tpu_custom_call.1} parent=179 // pred_check
          %p3947 = pneg %p1002
        $region302: #{tpu_custom_call.1} parent=179 // pred_check_branch
          %3949 = sbr.rel (%p3947) target = $region304
        $region303: #{tpu_custom_call.1} parent=179 // pred_region
          %s3951 = ssub.s32 128, 128
          %3952 = vsyncadd %s3943, %s3951
          %s3953 = smul.addr %s119, 128
          %s3954 = scalar_lea.hbm %s81, %s3953
          %s3956 = sshll.u32 %s3946, 4
          %s3957 = int_to_ptr.vmem [resolvable:$true] %s3956
          %3959 = dma.vmem_to_hbm [thread:$0]  %s3957, 128, %s3954, %s3943
        $region304: #{tpu_custom_call.1} parent=179 // pred_fallthru
          _
      $region180: #{tpu_custom_call.1} parent=5 // pred_fallthru
        _
      %p3960 = scmp.le.s32.totalorder 2, %s114
      // Predicated region
      $region305: #{tpu_custom_call.1} parent=5 // pred_check
        %p3961 = pneg %p3960
      $region306: #{tpu_custom_call.1} parent=5 // pred_check_branch
        %3963 = sbr.rel (%p3961) target = $region308
      $region307: #{tpu_custom_call.1} parent=5 // pred_region
        %s3964 = ssub.s32 %s114, 2
        // Predicated region
        $region309: #{tpu_custom_call.1} parent=307 // pred_check
          %p3965 = pneg %p1008
        $region310: #{tpu_custom_call.1} parent=307 // pred_check_branch
          %3967 = sbr.rel (%p3965) target = $region312
        $region311: #{tpu_custom_call.1} parent=307 // pred_region
          %s3968 = sand.u32 %s993, 1
          %s3969 = scalar_lea.sflag [#allocation5], %s3968
          %s3970 = sand.u32 %s993, 1
          %s3971 = smul.addr %s3970, 8
          %s3972 = scalar_lea.vmem [#allocation50], %s3971
          %3973 = dma.done %s3969, 128
        $region312: #{tpu_custom_call.1} parent=307 // pred_fallthru
          _
      $region308: #{tpu_custom_call.1} parent=5 // pred_fallthru
        _
    $region6: #{tpu_custom_call.1} parent=1 // loop_footer
      %s118 = sadd.s32 1, %s114
    $region7: #{tpu_custom_call.1} parent=1 // loop_footer_branch
      %113 = sbr.rel target = $region3
    $region8: #{tpu_custom_call.1} parent=1 // loop_exit
      _
    %3974 = vsyncpa [#allocation4], 1
    %s3975 = scalar_lea.sflag [#allocation4], 1
    %3976 = vsyncpa %s3975, 1
    %3977 = vsyncpa [#allocation7], 1
    %s3978 = scalar_lea.sflag [#allocation7], 1
    %3979 = vsyncpa %s3978, 1
    %3980 = vsyncpa [#allocation10], 1
    %s3981 = scalar_lea.sflag [#allocation10], 1
    %3982 = vsyncpa %s3981, 1
    %3983 = vsyncpa [#allocation13], 1
    %3984 = vsyncpa [#allocation16], 1
    %3985 = vsyncpa [#allocation19], 1
    %3986 = vsyncpa [#allocation22], 1
    %3987 = vsyncpa [#allocation25], 1
    %3988 = vsyncpa [#allocation28], 1
    %3989 = vsyncpa [#allocation31], 1
    %3990 = vsyncpa [#allocation34], 1
    %3991 = vsyncpa [#allocation37], 1
    %3992 = vsyncpa [#allocation40], 1
    %3993 = vsyncpa [#allocation43], 1
    %3994 = vsyncpa [#allocation46], 1
    %3995 = vsyncpa [#allocation49], 1
    %3996 = vsyncpa [#allocation5], 1
    %s3997 = scalar_lea.sflag [#allocation5], 1
    %3998 = vsyncpa %s3997, 1

</llo_original>
